<compile_context>
chip_gen: v5e
topology: v5e:2x2
jax: 0.10.0
libtpu: 0.0.40
codegen_flags: <defaults>
</compile_context>

<pallas_src>
import functools
import math

import jax
import jax.numpy as jnp
from jax import lax
from jax.experimental import pallas as pl
from jax.experimental.pallas import tpu as pltpu

NUM_GROUPS = 32
GPAD = 128                       # lane-dense padding of the group one-hot matrix
EPS = 1e-6
VMEM_LIMIT = 48 * 1024 * 1024    # safe on v5e/v6e (128 MiB phys) and v7x (64 MiB)


def _pick_tile(n, max_tile):
    """Largest power-of-two tile <= max_tile that divides n (fallback: n)."""
    t = max_tile
    while t >= 8:
        if n % t == 0:
            return t
        t //= 2
    return n


# ---------------------------------------------------------------------------
# Pass 1: GroupNorm statistics -> per-channel affine so that h = x * a + b
# ---------------------------------------------------------------------------
def gn_stats_kernel(x_ref, gamma_ref, beta_ref, gmat_ref, ab_ref,
                    sum_ref, sumsq_ref, *, n_elems):
    s = pl.program_id(1)

    @pl.when(s == 0)
    def _():
        sum_ref[...] = jnp.zeros_like(sum_ref)
        sumsq_ref[...] = jnp.zeros_like(sumsq_ref)

    x = x_ref[...]                                           # (TS, C) f32
    sum_ref[...] += jnp.sum(x, axis=0, keepdims=True)        # (1, C)
    sumsq_ref[...] += jnp.sum(x * x, axis=0, keepdims=True)  # (1, C)

    @pl.when(s == pl.num_programs(1) - 1)
    def _():
        G = gmat_ref[...]                                    # (C, GPAD) one-hot
        # one fused gather of [sum; sumsq] into group space
        stats_c = jnp.concatenate([sum_ref[...], sumsq_ref[...]], axis=0)  # (2,C)
        stats_g = jnp.dot(stats_c, G, preferred_element_type=jnp.float32)  # (2,GPAD)
        mean_g = stats_g[0:1, :] / n_elems
        var_g = jnp.maximum(stats_g[1:2, :] / n_elems - mean_g * mean_g, 0.0)
        inv_std_g = lax.rsqrt(var_g + EPS)
        # one fused scatter of [mean; inv_std] back to channel space
        mi_g = jnp.concatenate([mean_g, inv_std_g], axis=0)                # (2,GPAD)
        mi_c = lax.dot_general(mi_g, G, (((1,), (1,)), ((), ())),
                               preferred_element_type=jnp.float32)         # (2,C)
        a = gamma_ref[...] * mi_c[1:2, :]
        b = beta_ref[...] - mi_c[0:1, :] * a
        ab_ref[...] = jnp.concatenate([a, b], axis=0)                      # (2,C)


# ---------------------------------------------------------------------------
# Pass 2: apply GroupNorm affine + q/k/v 1x1 convs (bf16 outputs, q pre-scaled)
# ---------------------------------------------------------------------------
def qkv_proj_kernel(x_ref, ab_ref, wq_ref, bq_ref, wk_ref, bk_ref,
                    wv_ref, bv_ref, q_ref, k_ref, v_ref, *, scale):
    x = x_ref[...]                                           # (TP, C) f32
    a = ab_ref[0:1, :]
    b = ab_ref[1:2, :]
    h = (x * a + b).astype(jnp.bfloat16)
    q = jnp.dot(h, wq_ref[...], preferred_element_type=jnp.float32) + bq_ref[...]
    k = jnp.dot(h, wk_ref[...], preferred_element_type=jnp.float32) + bk_ref[...]
    v = jnp.dot(h, wv_ref[...], preferred_element_type=jnp.float32) + bv_ref[...]
    q_ref[...] = (q * scale).astype(jnp.bfloat16)            # 1/sqrt(C) folded in
    k_ref[...] = k.astype(jnp.bfloat16)
    v_ref[...] = v.astype(jnp.bfloat16)


# ---------------------------------------------------------------------------
# Pass 3: flash attention (online softmax) + proj_out + residual
# ---------------------------------------------------------------------------
def flash_attn_kernel(q_ref, k_ref, v_ref, x_ref, wp_ref, bp_ref, o_ref,
                      m_ref, l_ref, acc_ref):
    ki = pl.program_id(2)

    @pl.when(ki == 0)
    def _():
        m_ref[...] = jnp.full_like(m_ref, -jnp.inf)
        l_ref[...] = jnp.zeros_like(l_ref)
        acc_ref[...] = jnp.zeros_like(acc_ref)

    # (TQ, C)·(TK, C)^T in bf16, f32 accumulation.  q is already scaled.
    s = lax.dot_general(q_ref[...], k_ref[...], (((1,), (1,)), ((), ())),
                        preferred_element_type=jnp.float32)          # (TQ, TK)
    m_prev = m_ref[...]
    m_new = jnp.maximum(m_prev, jnp.max(s, axis=-1, keepdims=True))
    alpha = jnp.exp(m_prev - m_new)
    p = jnp.exp(s - m_new)
    l_ref[...] = alpha * l_ref[...] + jnp.sum(p, axis=-1, keepdims=True)
    acc_ref[...] = alpha * acc_ref[...] + jnp.dot(
        p.astype(jnp.bfloat16), v_ref[...], preferred_element_type=jnp.float32)
    m_ref[...] = m_new

    @pl.when(ki == pl.num_programs(2) - 1)
    def _():
        ctx = acc_ref[...] * pl.reciprocal(l_ref[...], approx=True)  # (TQ, C)
        proj = jnp.dot(ctx.astype(jnp.bfloat16), wp_ref[...],
                       preferred_element_type=jnp.float32) + bp_ref[...]
        o_ref[...] = x_ref[...] + proj


# ---------------------------------------------------------------------------
# Wrapper
# ---------------------------------------------------------------------------
def attn_block(x_nchw, params):
    """x_nchw: (B, C, H, W) float32, C % 32 == 0."""
    B, C, H, W = x_nchw.shape
    assert C % NUM_GROUPS == 0
    S = H * W
    x_seq = jnp.transpose(x_nchw, (0, 2, 3, 1)).reshape(B, S, C)

    gamma = params["gamma"].reshape(1, C).astype(jnp.float32)
    beta = params["beta"].reshape(1, C).astype(jnp.float32)
    gidx = jnp.repeat(jnp.arange(NUM_GROUPS), C // NUM_GROUPS)       # (C,)
    gmat = jax.nn.one_hot(gidx, GPAD, dtype=jnp.float32)             # (C, GPAD)

    # weights pre-cast to bf16 (half the DMA / VMEM); biases stay f32
    wq = params["wq"].T.astype(jnp.bfloat16)
    wk = params["wk"].T.astype(jnp.bfloat16)
    wv = params["wv"].T.astype(jnp.bfloat16)
    wp = params["wp"].T.astype(jnp.bfloat16)
    bq = params["bq"].reshape(1, C).astype(jnp.float32)
    bk = params["bk"].reshape(1, C).astype(jnp.float32)
    bv = params["bv"].reshape(1, C).astype(jnp.float32)
    bp = params["bp"].reshape(1, C).astype(jnp.float32)

    def cparams(sem):
        return pltpu.CompilerParams(dimension_semantics=sem,
                                    vmem_limit_bytes=VMEM_LIMIT)

    # ---- pass 1: GroupNorm statistics ------------------------------------
    TS = _pick_tile(S, 1024)
    ab = pl.pallas_call(
        functools.partial(gn_stats_kernel,
                          n_elems=float(S * (C // NUM_GROUPS))),
        out_shape=jax.ShapeDtypeStruct((B, 2, C), jnp.float32),
        grid_spec=pltpu.PrefetchScalarGridSpec(
            num_scalar_prefetch=0,
            grid=(B, S // TS),
            in_specs=[
                pl.BlockSpec((None, TS, C), lambda b, s: (b, s, 0)),
                pl.BlockSpec((1, C), lambda b, s: (0, 0)),
                pl.BlockSpec((1, C), lambda b, s: (0, 0)),
                pl.BlockSpec((C, GPAD), lambda b, s: (0, 0)),
            ],
            out_specs=pl.BlockSpec((None, 2, C), lambda b, s: (b, 0, 0)),
            scratch_shapes=[pltpu.VMEM((1, C), jnp.float32),
                            pltpu.VMEM((1, C), jnp.float32)]),
        compiler_params=cparams(("parallel", "arbitrary")),
    )(x_seq, gamma, beta, gmat)

    # ---- pass 2: norm-apply + q/k/v projections (bf16) --------------------
    TP = _pick_tile(S, 512)
    qkv_shape = jax.ShapeDtypeStruct((B, S, C), jnp.bfloat16)
    q, k, v = pl.pallas_call(
        functools.partial(qkv_proj_kernel, scale=1.0 / math.sqrt(C)),
        out_shape=(qkv_shape, qkv_shape, qkv_shape),
        grid_spec=pltpu.PrefetchScalarGridSpec(
            num_scalar_prefetch=0,
            grid=(B, S // TP),
            in_specs=[
                pl.BlockSpec((None, TP, C), lambda b, s: (b, s, 0)),   # x
                pl.BlockSpec((None, 2, C), lambda b, s: (b, 0, 0)),    # affine
                pl.BlockSpec((C, C), lambda b, s: (0, 0)),             # Wq^T
                pl.BlockSpec((1, C), lambda b, s: (0, 0)),             # bq
                pl.BlockSpec((C, C), lambda b, s: (0, 0)),             # Wk^T
                pl.BlockSpec((1, C), lambda b, s: (0, 0)),             # bk
                pl.BlockSpec((C, C), lambda b, s: (0, 0)),             # Wv^T
                pl.BlockSpec((1, C), lambda b, s: (0, 0)),             # bv
            ],
            out_specs=[pl.BlockSpec((None, TP, C), lambda b, s: (b, s, 0))] * 3),
        compiler_params=cparams(("parallel", "parallel")),
    )(x_seq, ab, wq, bq, wk, bk, wv, bv)

    # ---- pass 3: flash attention + proj_out + residual --------------------
    TQ = _pick_tile(S, 512)
    TK = _pick_tile(S, 512)
    out = pl.pallas_call(
        flash_attn_kernel,
        out_shape=jax.ShapeDtypeStruct((B, S, C), jnp.float32),
        grid_spec=pltpu.PrefetchScalarGridSpec(
            num_scalar_prefetch=0,
            grid=(B, S // TQ, S // TK),
            in_specs=[
                pl.BlockSpec((None, TQ, C), lambda b, qi, ki: (b, qi, 0)),  # q
                pl.BlockSpec((None, TK, C), lambda b, qi, ki: (b, ki, 0)),  # k
                pl.BlockSpec((None, TK, C), lambda b, qi, ki: (b, ki, 0)),  # v
                pl.BlockSpec((None, TQ, C), lambda b, qi, ki: (b, qi, 0)),  # x (residual)
                pl.BlockSpec((C, C), lambda b, qi, ki: (0, 0)),             # Wproj^T
                pl.BlockSpec((1, C), lambda b, qi, ki: (0, 0)),             # bproj
            ],
            out_specs=pl.BlockSpec((None, TQ, C), lambda b, qi, ki: (b, qi, 0)),
            scratch_shapes=[pltpu.VMEM((TQ, 1), jnp.float32),   # running max
                            pltpu.VMEM((TQ, 1), jnp.float32),   # running denom
                            pltpu.VMEM((TQ, C), jnp.float32)]), # accumulator
        compiler_params=cparams(("parallel", "parallel", "arbitrary")),
    )(q, k, v, x_seq, wp, bp)

    return jnp.transpose(out.reshape(B, H, W, C), (0, 3, 1, 2))


# ---------------------------------------------------------------------------
# Params + pure-JAX reference (mirrors the PyTorch forward, f32 throughout)
# ---------------------------------------------------------------------------
def init_params(key, C):
    ks = jax.random.split(key, 10)
    mk = lambda k, shape, s=0.05: (jax.random.normal(k, shape, jnp.float32) * s)
    return {
        "gamma": 1.0 + mk(ks[0], (C,), 0.1),
        "beta": mk(ks[1], (C,), 0.1),
        "wq": mk(ks[2], (C, C)), "bq": mk(ks[3], (C,)),
        "wk": mk(ks[4], (C, C)), "bk": mk(ks[5], (C,)),
        "wv": mk(ks[6], (C, C)), "bv": mk(ks[7], (C,)),
        "wp": mk(ks[8], (C, C)), "bp": mk(ks[9], (C,)),
    }


def ref_attn_block(x, p):
    B, C, H, W = x.shape
    g = C // NUM_GROUPS
    xg = x.reshape(B, NUM_GROUPS, g, H, W)
    mean = xg.mean(axis=(2, 3, 4), keepdims=True)
    var = ((xg - mean) ** 2).mean(axis=(2, 3, 4), keepdims=True)
    h = ((xg - mean) / jnp.sqrt(var + EPS)).reshape(B, C, H, W)
    h = h * p["gamma"][None, :, None, None] + p["beta"][None, :, None, None]
    hs = jnp.transpose(h, (0, 2, 3, 1)).reshape(B, H * W, C)
    q = hs @ p["wq"].T + p["bq"]
    k = hs @ p["wk"].T + p["bk"]
    v = hs @ p["wv"].T + p["bv"]
    logits = jnp.einsum("bsc,btc->bst", q, k) / math.sqrt(C)
    attn = jax.nn.softmax(logits, axis=-1)
    ctx = jnp.einsum("bst,btc->bsc", attn, v)
    proj = ctx @ p["wp"].T + p["bp"]
    proj = jnp.transpose(proj.reshape(B, H, W, C), (0, 3, 1, 2))
    return x + proj


if __name__ == "__main__":
    key = jax.random.PRNGKey(0)
    kx, kp = jax.random.split(key)
    # GroupNorm(32, C) needs C % 32 == 0; C=128 keeps every block lane-dense.
    B, C, H, W = 2, 128, 16, 16
    x = jax.random.normal(kx, (B, C, H, W), jnp.float32)
    params = init_params(kp, C)

    y = jax.block_until_ready(jax.jit(attn_block)(x, params))
    y_ref = ref_attn_block(x, params)

    assert y.shape == (B, C, H, W)
    max_err = float(jnp.max(jnp.abs(y - y_ref)))
    # bf16 MXU operands + approx reciprocal => relax tolerance vs f32 reference
    assert jnp.allclose(y, y_ref, atol=2e-2, rtol=2e-2), \
        f"mismatch vs reference (max abs err {max_err})"
    print("KERNEL_OK")
</pallas_src>

<mosaic_0001>
module attributes {stable_mosaic.version = 11 : i64} {
  func.func @flash_attn_kernel(%arg0: i32, %arg1: i32, %arg2: i32, %arg3: memref<1x256x128xbf16, #tpu.memory_space<vmem>>, %arg4: memref<1x256x128xbf16, #tpu.memory_space<vmem>>, %arg5: memref<1x256x128xbf16, #tpu.memory_space<vmem>>, %arg6: memref<1x256x128xf32, #tpu.memory_space<vmem>>, %arg7: memref<128x128xbf16, #tpu.memory_space<vmem>>, %arg8: memref<1x128xf32, #tpu.memory_space<vmem>>, %arg9: memref<1x256x128xf32, #tpu.memory_space<vmem>>, %arg10: memref<256x1xf32, #tpu.memory_space<vmem>>, %arg11: memref<256x1xf32, #tpu.memory_space<vmem>>, %arg12: memref<256x128xf32, #tpu.memory_space<vmem>>) attributes {dimension_semantics = [#tpu.dimension_semantics<parallel>, #tpu.dimension_semantics<parallel>, #tpu.dimension_semantics<arbitrary>], iteration_bounds = array<i64: 2, 1, 1>, scalar_prefetch = 0 : i64, scratch_operands = 3 : i64, tpu.core_type = #tpu.core_type<tc>, window_params = [{transform_indices = @transform_0, window_bounds = array<i64: 1, 256, 128>}, {transform_indices = @transform_1, window_bounds = array<i64: 1, 256, 128>}, {transform_indices = @transform_2, window_bounds = array<i64: 1, 256, 128>}, {transform_indices = @transform_3, window_bounds = array<i64: 1, 256, 128>}, {pipeline_mode = #tpu.pipeline_mode<synchronous>, transform_indices = @transform_4, window_bounds = array<i64: 128, 128>}, {pipeline_mode = #tpu.pipeline_mode<synchronous>, transform_indices = @transform_5, window_bounds = array<i64: 1, 128>}, {transform_indices = @transform_6, window_bounds = array<i64: 1, 256, 128>}]} {
    %c0_i32 = arith.constant 0 : i32
    %0 = arith.cmpi eq, %arg2, %c0_i32 : i32
    %1 = arith.extui %0 : i1 to i32
    %c0_i32_0 = arith.constant 0 : i32
    %2 = arith.cmpi ne, %1, %c0_i32_0 : i32
    scf.if %2 {
      %cst_26 = arith.constant 0xFF800000 : f32
      %36 = vector.broadcast %cst_26 : f32 to vector<256x1xf32>
      %c0_27 = arith.constant 0 : index
      %c0_28 = arith.constant 0 : index
      %37 = vector.load %arg10[%c0_27, %c0_28] : memref<256x1xf32, #tpu.memory_space<vmem>>, vector<256x1xf32>
      tpu.vector_store %arg10[%c0_27, %c0_28], %36 {strides = array<i32>} : memref<256x1xf32, #tpu.memory_space<vmem>>, vector<256x1xf32>,
      %cst_29 = arith.constant 0.000000e+00 : f32
      %38 = vector.broadcast %cst_29 : f32 to vector<256x1xf32>
      %c0_30 = arith.constant 0 : index
      %c0_31 = arith.constant 0 : index
      %39 = vector.load %arg11[%c0_30, %c0_31] : memref<256x1xf32, #tpu.memory_space<vmem>>, vector<256x1xf32>
      tpu.vector_store %arg11[%c0_30, %c0_31], %38 {strides = array<i32>} : memref<256x1xf32, #tpu.memory_space<vmem>>, vector<256x1xf32>,
      %cst_32 = arith.constant 0.000000e+00 : f32
      %40 = vector.broadcast %cst_32 : f32 to vector<256x128xf32>
      %c0_33 = arith.constant 0 : index
      %c0_34 = arith.constant 0 : index
      %41 = vector.load %arg12[%c0_33, %c0_34] : memref<256x128xf32, #tpu.memory_space<vmem>>, vector<256x128xf32>
      tpu.vector_store %arg12[%c0_33, %c0_34], %40 {strides = array<i32>} : memref<256x128xf32, #tpu.memory_space<vmem>>, vector<256x128xf32>,
    } else {
    }
    %c0 = arith.constant 0 : index
    %c0_1 = arith.constant 0 : index
    %c0_2 = arith.constant 0 : index
    %3 = vector.load %arg3[%c0, %c0_1, %c0_2] : memref<1x256x128xbf16, #tpu.memory_space<vmem>>, vector<1x256x128xbf16>
    %4 = vector.shape_cast %3 : vector<1x256x128xbf16> to vector<256x128xbf16>
    %c0_3 = arith.constant 0 : index
    %c0_4 = arith.constant 0 : index
    %c0_5 = arith.constant 0 : index
    %5 = vector.load %arg4[%c0_3, %c0_4, %c0_5] : memref<1x256x128xbf16, #tpu.memory_space<vmem>>, vector<1x256x128xbf16>
    %6 = vector.shape_cast %5 : vector<1x256x128xbf16> to vector<256x128xbf16>
    %cst = arith.constant dense<0.000000e+00> : vector<256x256xf32>
    %7 = tpu.matmul %4, %6, %cst {dimension_numbers = #tpu.dot_dimension_numbers<[1], [1], [0], [0], [0, 0, 1, 0], [], []>} : vector<256x128xbf16>, vector<256x128xbf16>, vector<256x256xf32> -> vector<256x256xf32>
    %c0_6 = arith.constant 0 : index
    %c0_7 = arith.constant 0 : index
    %8 = vector.load %arg10[%c0_6, %c0_7] : memref<256x1xf32, #tpu.memory_space<vmem>>, vector<256x1xf32>
    %cst_8 = arith.constant dense<0xFF800000> : vector<256xf32>
    %9 = vector.multi_reduction <maximumf>, %7, %cst_8 [1] : vector<256x256xf32> to vector<256xf32>
    %10 = vector.shape_cast %9 : vector<256xf32> to vector<256x1xf32>
    %11 = arith.maximumf %8, %10 : vector<256x1xf32>
    %12 = arith.subf %8, %11 : vector<256x1xf32>
    %13 = math.exp %12 : vector<256x1xf32>
    %14 = vector.broadcast %11 : vector<256x1xf32> to vector<256x256xf32>
    %15 = arith.subf %7, %14 : vector<256x256xf32>
    %16 = math.exp %15 : vector<256x256xf32>
    %c0_9 = arith.constant 0 : index
    %c0_10 = arith.constant 0 : index
    %17 = vector.load %arg11[%c0_9, %c0_10] : memref<256x1xf32, #tpu.memory_space<vmem>>, vector<256x1xf32>
    %18 = arith.mulf %13, %17 : vector<256x1xf32>
    %cst_11 = arith.constant dense<0.000000e+00> : vector<256xf32>
    %19 = vector.multi_reduction <add>, %16, %cst_11 [1] : vector<256x256xf32> to vector<256xf32>
    %20 = vector.shape_cast %19 : vector<256xf32> to vector<256x1xf32>
    %21 = arith.addf %18, %20 : vector<256x1xf32>
    %c0_12 = arith.constant 0 : index
    %c0_13 = arith.constant 0 : index
    %22 = vector.load %arg11[%c0_12, %c0_13] : memref<256x1xf32, #tpu.memory_space<vmem>>, vector<256x1xf32>
    tpu.vector_store %arg11[%c0_12, %c0_13], %21 {strides = array<i32>} : memref<256x1xf32, #tpu.memory_space<vmem>>, vector<256x1xf32>,
    %c0_14 = arith.constant 0 : index
    %c0_15 = arith.constant 0 : index
    %23 = vector.load %arg12[%c0_14, %c0_15] : memref<256x128xf32, #tpu.memory_space<vmem>>, vector<256x128xf32>
    %24 = vector.broadcast %13 : vector<256x1xf32> to vector<256x128xf32>
    %25 = arith.mulf %24, %23 : vector<256x128xf32>
    %26 = arith.truncf %16 : vector<256x256xf32> to vector<256x256xbf16>
    %c0_16 = arith.constant 0 : index
    %c0_17 = arith.constant 0 : index
    %c0_18 = arith.constant 0 : index
    %27 = vector.load %arg5[%c0_16, %c0_17, %c0_18] : memref<1x256x128xbf16, #tpu.memory_space<vmem>>, vector<1x256x128xbf16>
    %28 = vector.shape_cast %27 : vector<1x256x128xbf16> to vector<256x128xbf16>
    %cst_19 = arith.constant dense<0.000000e+00> : vector<256x128xf32>
    %29 = tpu.matmul %26, %28, %cst_19 {dimension_numbers = #tpu.dot_dimension_numbers<[1], [0], [0], [1], [0, 0, 1, 1], [], []>} : vector<256x256xbf16>, vector<256x128xbf16>, vector<256x128xf32> -> vector<256x128xf32>
    %30 = arith.addf %25, %29 : vector<256x128xf32>
    %c0_20 = arith.constant 0 : index
    %c0_21 = arith.constant 0 : index
    %31 = vector.load %arg12[%c0_20, %c0_21] : memref<256x128xf32, #tpu.memory_space<vmem>>, vector<256x128xf32>
    tpu.vector_store %arg12[%c0_20, %c0_21], %30 {strides = array<i32>} : memref<256x128xf32, #tpu.memory_space<vmem>>, vector<256x128xf32>,
    %c0_22 = arith.constant 0 : index
    %c0_23 = arith.constant 0 : index
    %32 = vector.load %arg10[%c0_22, %c0_23] : memref<256x1xf32, #tpu.memory_space<vmem>>, vector<256x1xf32>
    tpu.vector_store %arg10[%c0_22, %c0_23], %11 {strides = array<i32>} : memref<256x1xf32, #tpu.memory_space<vmem>>, vector<256x1xf32>,
    %c0_i32_24 = arith.constant 0 : i32
    %33 = arith.cmpi eq, %arg2, %c0_i32_24 : i32
    %34 = arith.extui %33 : i1 to i32
    %c0_i32_25 = arith.constant 0 : i32
    %35 = arith.cmpi ne, %34, %c0_i32_25 : i32
    scf.if %35 {
      %c0_26 = arith.constant 0 : index
      %c0_27 = arith.constant 0 : index
      %36 = vector.load %arg12[%c0_26, %c0_27] : memref<256x128xf32, #tpu.memory_space<vmem>>, vector<256x128xf32>
      %c0_28 = arith.constant 0 : index
      %c0_29 = arith.constant 0 : index
      %37 = vector.load %arg11[%c0_28, %c0_29] : memref<256x1xf32, #tpu.memory_space<vmem>>, vector<256x1xf32>
      %38 = tpu.reciprocal %37 {approx = true} : vector<256x1xf32> -> vector<256x1xf32>
      %39 = vector.broadcast %38 : vector<256x1xf32> to vector<256x128xf32>
      %40 = arith.mulf %36, %39 : vector<256x128xf32>
      %41 = arith.truncf %40 : vector<256x128xf32> to vector<256x128xbf16>
      %c0_30 = arith.constant 0 : index
      %c0_31 = arith.constant 0 : index
      %42 = vector.load %arg7[%c0_30, %c0_31] : memref<128x128xbf16, #tpu.memory_space<vmem>>, vector<128x128xbf16>
      %cst_32 = arith.constant dense<0.000000e+00> : vector<256x128xf32>
      %43 = tpu.matmul %41, %42, %cst_32 {dimension_numbers = #tpu.dot_dimension_numbers<[1], [0], [0], [1], [0, 0, 1, 1], [], []>} : vector<256x128xbf16>, vector<128x128xbf16>, vector<256x128xf32> -> vector<256x128xf32>
      %c0_33 = arith.constant 0 : index
      %c0_34 = arith.constant 0 : index
      %44 = vector.load %arg8[%c0_33, %c0_34] : memref<1x128xf32, #tpu.memory_space<vmem>>, vector<1x128xf32>
      %45 = vector.broadcast %44 : vector<1x128xf32> to vector<256x128xf32>
      %46 = arith.addf %43, %45 : vector<256x128xf32>
      %c0_35 = arith.constant 0 : index
      %c0_36 = arith.constant 0 : index
      %c0_37 = arith.constant 0 : index
      %47 = vector.load %arg6[%c0_35, %c0_36, %c0_37] : memref<1x256x128xf32, #tpu.memory_space<vmem>>, vector<1x256x128xf32>
      %48 = vector.shape_cast %47 : vector<1x256x128xf32> to vector<256x128xf32>
      %49 = arith.addf %48, %46 : vector<256x128xf32>
      %c0_38 = arith.constant 0 : index
      %c0_39 = arith.constant 0 : index
      %c0_40 = arith.constant 0 : index
      %50 = vector.load %arg9[%c0_38, %c0_39, %c0_40] : memref<1x256x128xf32, #tpu.memory_space<vmem>>, vector<1x256x128xf32>
      %51 = vector.shape_cast %50 : vector<1x256x128xf32> to vector<256x128xf32>
      %52 = vector.shape_cast %49 : vector<256x128xf32> to vector<1x256x128xf32>
      tpu.vector_store %arg9[%c0_38, %c0_39, %c0_40], %52 {strides = array<i32>} : memref<1x256x128xf32, #tpu.memory_space<vmem>>, vector<1x256x128xf32>,
    } else {
    }
    return
  }
  func.func @transform_0(%arg0: i32, %arg1: i32, %arg2: i32) -> (i32, i32, i32) {
    %c0_i32 = arith.constant 0 : i32
    %c0_i32_0 = arith.constant 0 : i32
    return %arg0, %arg1, %c0_i32 : i32, i32, i32
  }
  func.func @transform_1(%arg0: i32, %arg1: i32, %arg2: i32) -> (i32, i32, i32) {
    %c0_i32 = arith.constant 0 : i32
    %c0_i32_0 = arith.constant 0 : i32
    return %arg0, %arg2, %c0_i32 : i32, i32, i32
  }
  func.func @transform_2(%arg0: i32, %arg1: i32, %arg2: i32) -> (i32, i32, i32) {
    %c0_i32 = arith.constant 0 : i32
    %c0_i32_0 = arith.constant 0 : i32
    return %arg0, %arg2, %c0_i32 : i32, i32, i32
  }
  func.func @transform_3(%arg0: i32, %arg1: i32, %arg2: i32) -> (i32, i32, i32) {
    %c0_i32 = arith.constant 0 : i32
    %c0_i32_0 = arith.constant 0 : i32
    return %arg0, %arg1, %c0_i32 : i32, i32, i32
  }
  func.func @transform_4(%arg0: i32, %arg1: i32, %arg2: i32) -> (i32, i32) {
    %c0_i32 = arith.constant 0 : i32
    %c0_i32_0 = arith.constant 0 : i32
    %c0_i32_1 = arith.constant 0 : i32
    return %c0_i32, %c0_i32_0 : i32, i32
  }
  func.func @transform_5(%arg0: i32, %arg1: i32, %arg2: i32) -> (i32, i32) {
    %c0_i32 = arith.constant 0 : i32
    %c0_i32_0 = arith.constant 0 : i32
    %c0_i32_1 = arith.constant 0 : i32
    return %c0_i32, %c0_i32_0 : i32, i32
  }
  func.func @transform_6(%arg0: i32, %arg1: i32, %arg2: i32) -> (i32, i32, i32) {
    %c0_i32 = arith.constant 0 : i32
    %c0_i32_0 = arith.constant 0 : i32
    return %arg0, %arg1, %c0_i32 : i32, i32, i32
  }
}

module attributes {stable_mosaic.version = 11 : i64} {
  func.func @qkv_proj_kernel(%arg0: i32, %arg1: i32, %arg2: memref<1x256x128xf32, #tpu.memory_space<vmem>>, %arg3: memref<1x2x128xf32, #tpu.memory_space<vmem>>, %arg4: memref<128x128xbf16, #tpu.memory_space<vmem>>, %arg5: memref<1x128xf32, #tpu.memory_space<vmem>>, %arg6: memref<128x128xbf16, #tpu.memory_space<vmem>>, %arg7: memref<1x128xf32, #tpu.memory_space<vmem>>, %arg8: memref<128x128xbf16, #tpu.memory_space<vmem>>, %arg9: memref<1x128xf32, #tpu.memory_space<vmem>>, %arg10: memref<1x256x128xbf16, #tpu.memory_space<vmem>>, %arg11: memref<1x256x128xbf16, #tpu.memory_space<vmem>>, %arg12: memref<1x256x128xbf16, #tpu.memory_space<vmem>>) attributes {dimension_semantics = [#tpu.dimension_semantics<parallel>, #tpu.dimension_semantics<parallel>], iteration_bounds = array<i64: 2, 1>, scalar_prefetch = 0 : i64, scratch_operands = 0 : i64, tpu.core_type = #tpu.core_type<tc>, window_params = [{transform_indices = @transform_0, window_bounds = array<i64: 1, 256, 128>}, {transform_indices = @transform_1, window_bounds = array<i64: 1, 2, 128>}, {pipeline_mode = #tpu.pipeline_mode<synchronous>, transform_indices = @transform_2, window_bounds = array<i64: 128, 128>}, {pipeline_mode = #tpu.pipeline_mode<synchronous>, transform_indices = @transform_3, window_bounds = array<i64: 1, 128>}, {pipeline_mode = #tpu.pipeline_mode<synchronous>, transform_indices = @transform_4, window_bounds = array<i64: 128, 128>}, {pipeline_mode = #tpu.pipeline_mode<synchronous>, transform_indices = @transform_5, window_bounds = array<i64: 1, 128>}, {pipeline_mode = #tpu.pipeline_mode<synchronous>, transform_indices = @transform_6, window_bounds = array<i64: 128, 128>}, {pipeline_mode = #tpu.pipeline_mode<synchronous>, transform_indices = @transform_7, window_bounds = array<i64: 1, 128>}, {transform_indices = @transform_8, window_bounds = array<i64: 1, 256, 128>}, {transform_indices = @transform_9, window_bounds = array<i64: 1, 256, 128>}, {transform_indices = @transform_10, window_bounds = array<i64: 1, 256, 128>}]} {
    %c0 = arith.constant 0 : index
    %c0_0 = arith.constant 0 : index
    %c0_1 = arith.constant 0 : index
    %0 = vector.load %arg2[%c0, %c0_0, %c0_1] : memref<1x256x128xf32, #tpu.memory_space<vmem>>, vector<1x256x128xf32>
    %1 = vector.shape_cast %0 : vector<1x256x128xf32> to vector<256x128xf32>
    %c0_2 = arith.constant 0 : index
    %c0_3 = arith.constant 0 : index
    %c0_4 = arith.constant 0 : index
    %2 = vector.load %arg3[%c0_2, %c0_3, %c0_4] : memref<1x2x128xf32, #tpu.memory_space<vmem>>, vector<1x1x128xf32>
    %3 = vector.shape_cast %2 : vector<1x1x128xf32> to vector<1x128xf32>
    %c0_5 = arith.constant 0 : index
    %c1 = arith.constant 1 : index
    %c0_6 = arith.constant 0 : index
    %4 = vector.load %arg3[%c0_5, %c1, %c0_6] : memref<1x2x128xf32, #tpu.memory_space<vmem>>, vector<1x1x128xf32>
    %5 = vector.shape_cast %4 : vector<1x1x128xf32> to vector<1x128xf32>
    %6 = vector.broadcast %3 : vector<1x128xf32> to vector<256x128xf32>
    %7 = arith.mulf %1, %6 : vector<256x128xf32>
    %8 = vector.broadcast %5 : vector<1x128xf32> to vector<256x128xf32>
    %9 = arith.addf %7, %8 : vector<256x128xf32>
    %10 = arith.truncf %9 : vector<256x128xf32> to vector<256x128xbf16>
    %c0_7 = arith.constant 0 : index
    %c0_8 = arith.constant 0 : index
    %11 = vector.load %arg4[%c0_7, %c0_8] : memref<128x128xbf16, #tpu.memory_space<vmem>>, vector<128x128xbf16>
    %cst = arith.constant dense<0.000000e+00> : vector<256x128xf32>
    %12 = tpu.matmul %10, %11, %cst {dimension_numbers = #tpu.dot_dimension_numbers<[1], [0], [0], [1], [0, 0, 1, 1], [], []>} : vector<256x128xbf16>, vector<128x128xbf16>, vector<256x128xf32> -> vector<256x128xf32>
    %c0_9 = arith.constant 0 : index
    %c0_10 = arith.constant 0 : index
    %13 = vector.load %arg5[%c0_9, %c0_10] : memref<1x128xf32, #tpu.memory_space<vmem>>, vector<1x128xf32>
    %14 = vector.broadcast %13 : vector<1x128xf32> to vector<256x128xf32>
    %15 = arith.addf %12, %14 : vector<256x128xf32>
    %c0_11 = arith.constant 0 : index
    %c0_12 = arith.constant 0 : index
    %16 = vector.load %arg6[%c0_11, %c0_12] : memref<128x128xbf16, #tpu.memory_space<vmem>>, vector<128x128xbf16>
    %cst_13 = arith.constant dense<0.000000e+00> : vector<256x128xf32>
    %17 = tpu.matmul %10, %16, %cst_13 {dimension_numbers = #tpu.dot_dimension_numbers<[1], [0], [0], [1], [0, 0, 1, 1], [], []>} : vector<256x128xbf16>, vector<128x128xbf16>, vector<256x128xf32> -> vector<256x128xf32>
    %c0_14 = arith.constant 0 : index
    %c0_15 = arith.constant 0 : index
    %18 = vector.load %arg7[%c0_14, %c0_15] : memref<1x128xf32, #tpu.memory_space<vmem>>, vector<1x128xf32>
    %19 = vector.broadcast %18 : vector<1x128xf32> to vector<256x128xf32>
    %20 = arith.addf %17, %19 : vector<256x128xf32>
    %c0_16 = arith.constant 0 : index
    %c0_17 = arith.constant 0 : index
    %21 = vector.load %arg8[%c0_16, %c0_17] : memref<128x128xbf16, #tpu.memory_space<vmem>>, vector<128x128xbf16>
    %cst_18 = arith.constant dense<0.000000e+00> : vector<256x128xf32>
    %22 = tpu.matmul %10, %21, %cst_18 {dimension_numbers = #tpu.dot_dimension_numbers<[1], [0], [0], [1], [0, 0, 1, 1], [], []>} : vector<256x128xbf16>, vector<128x128xbf16>, vector<256x128xf32> -> vector<256x128xf32>
    %c0_19 = arith.constant 0 : index
    %c0_20 = arith.constant 0 : index
    %23 = vector.load %arg9[%c0_19, %c0_20] : memref<1x128xf32, #tpu.memory_space<vmem>>, vector<1x128xf32>
    %24 = vector.broadcast %23 : vector<1x128xf32> to vector<256x128xf32>
    %25 = arith.addf %22, %24 : vector<256x128xf32>
    %cst_21 = arith.constant 0.0883883461 : f32
    %26 = vector.broadcast %cst_21 : f32 to vector<256x128xf32>
    %27 = arith.mulf %15, %26 : vector<256x128xf32>
    %28 = arith.truncf %27 : vector<256x128xf32> to vector<256x128xbf16>
    %c0_22 = arith.constant 0 : index
    %c0_23 = arith.constant 0 : index
    %c0_24 = arith.constant 0 : index
    %29 = vector.load %arg10[%c0_22, %c0_23, %c0_24] : memref<1x256x128xbf16, #tpu.memory_space<vmem>>, vector<1x256x128xbf16>
    %30 = vector.shape_cast %29 : vector<1x256x128xbf16> to vector<256x128xbf16>
    %31 = vector.shape_cast %28 : vector<256x128xbf16> to vector<1x256x128xbf16>
    tpu.vector_store %arg10[%c0_22, %c0_23, %c0_24], %31 {strides = array<i32>} : memref<1x256x128xbf16, #tpu.memory_space<vmem>>, vector<1x256x128xbf16>,
    %32 = arith.truncf %20 : vector<256x128xf32> to vector<256x128xbf16>
    %c0_25 = arith.constant 0 : index
    %c0_26 = arith.constant 0 : index
    %c0_27 = arith.constant 0 : index
    %33 = vector.load %arg11[%c0_25, %c0_26, %c0_27] : memref<1x256x128xbf16, #tpu.memory_space<vmem>>, vector<1x256x128xbf16>
    %34 = vector.shape_cast %33 : vector<1x256x128xbf16> to vector<256x128xbf16>
    %35 = vector.shape_cast %32 : vector<256x128xbf16> to vector<1x256x128xbf16>
    tpu.vector_store %arg11[%c0_25, %c0_26, %c0_27], %35 {strides = array<i32>} : memref<1x256x128xbf16, #tpu.memory_space<vmem>>, vector<1x256x128xbf16>,
    %36 = arith.truncf %25 : vector<256x128xf32> to vector<256x128xbf16>
    %c0_28 = arith.constant 0 : index
    %c0_29 = arith.constant 0 : index
    %c0_30 = arith.constant 0 : index
    %37 = vector.load %arg12[%c0_28, %c0_29, %c0_30] : memref<1x256x128xbf16, #tpu.memory_space<vmem>>, vector<1x256x128xbf16>
    %38 = vector.shape_cast %37 : vector<1x256x128xbf16> to vector<256x128xbf16>
    %39 = vector.shape_cast %36 : vector<256x128xbf16> to vector<1x256x128xbf16>
    tpu.vector_store %arg12[%c0_28, %c0_29, %c0_30], %39 {strides = array<i32>} : memref<1x256x128xbf16, #tpu.memory_space<vmem>>, vector<1x256x128xbf16>,
    return
  }
  func.func @transform_0(%arg0: i32, %arg1: i32) -> (i32, i32, i32) {
    %c0_i32 = arith.constant 0 : i32
    %c0_i32_0 = arith.constant 0 : i32
    return %arg0, %arg1, %c0_i32 : i32, i32, i32
  }
  func.func @transform_1(%arg0: i32, %arg1: i32) -> (i32, i32, i32) {
    %c0_i32 = arith.constant 0 : i32
    %c0_i32_0 = arith.constant 0 : i32
    %c0_i32_1 = arith.constant 0 : i32
    return %arg0, %c0_i32, %c0_i32_0 : i32, i32, i32
  }
  func.func @transform_2(%arg0: i32, %arg1: i32) -> (i32, i32) {
    %c0_i32 = arith.constant 0 : i32
    %c0_i32_0 = arith.constant 0 : i32
    %c0_i32_1 = arith.constant 0 : i32
    return %c0_i32, %c0_i32_0 : i32, i32
  }
  func.func @transform_3(%arg0: i32, %arg1: i32) -> (i32, i32) {
    %c0_i32 = arith.constant 0 : i32
    %c0_i32_0 = arith.constant 0 : i32
    %c0_i32_1 = arith.constant 0 : i32
    return %c0_i32, %c0_i32_0 : i32, i32
  }
  func.func @transform_4(%arg0: i32, %arg1: i32) -> (i32, i32) {
    %c0_i32 = arith.constant 0 : i32
    %c0_i32_0 = arith.constant 0 : i32
    %c0_i32_1 = arith.constant 0 : i32
    return %c0_i32, %c0_i32_0 : i32, i32
  }
  func.func @transform_5(%arg0: i32, %arg1: i32) -> (i32, i32) {
    %c0_i32 = arith.constant 0 : i32
    %c0_i32_0 = arith.constant 0 : i32
    %c0_i32_1 = arith.constant 0 : i32
    return %c0_i32, %c0_i32_0 : i32, i32
  }
  func.func @transform_6(%arg0: i32, %arg1: i32) -> (i32, i32) {
    %c0_i32 = arith.constant 0 : i32
    %c0_i32_0 = arith.constant 0 : i32
    %c0_i32_1 = arith.constant 0 : i32
    return %c0_i32, %c0_i32_0 : i32, i32
  }
  func.func @transform_7(%arg0: i32, %arg1: i32) -> (i32, i32) {
    %c0_i32 = arith.constant 0 : i32
    %c0_i32_0 = arith.constant 0 : i32
    %c0_i32_1 = arith.constant 0 : i32
    return %c0_i32, %c0_i32_0 : i32, i32
  }
  func.func @transform_8(%arg0: i32, %arg1: i32) -> (i32, i32, i32) {
    %c0_i32 = arith.constant 0 : i32
    %c0_i32_0 = arith.constant 0 : i32
    return %arg0, %arg1, %c0_i32 : i32, i32, i32
  }
  func.func @transform_9(%arg0: i32, %arg1: i32) -> (i32, i32, i32) {
    %c0_i32 = arith.constant 0 : i32
    %c0_i32_0 = arith.constant 0 : i32
    return %arg0, %arg1, %c0_i32 : i32, i32, i32
  }
  func.func @transform_10(%arg0: i32, %arg1: i32) -> (i32, i32, i32) {
    %c0_i32 = arith.constant 0 : i32
    %c0_i32_0 = arith.constant 0 : i32
    return %arg0, %arg1, %c0_i32 : i32, i32, i32
  }
}

module attributes {stable_mosaic.version = 11 : i64} {
  func.func @gn_stats_kernel(%arg0: i32, %arg1: i32, %arg2: memref<1x256x128xf32, #tpu.memory_space<vmem>>, %arg3: memref<1x128xf32, #tpu.memory_space<vmem>>, %arg4: memref<1x128xf32, #tpu.memory_space<vmem>>, %arg5: memref<128x128xf32, #tpu.memory_space<vmem>>, %arg6: memref<1x2x128xf32, #tpu.memory_space<vmem>>, %arg7: memref<1x128xf32, #tpu.memory_space<vmem>>, %arg8: memref<1x128xf32, #tpu.memory_space<vmem>>) attributes {dimension_semantics = [#tpu.dimension_semantics<parallel>, #tpu.dimension_semantics<arbitrary>], iteration_bounds = array<i64: 2, 1>, scalar_prefetch = 0 : i64, scratch_operands = 2 : i64, tpu.core_type = #tpu.core_type<tc>, window_params = [{transform_indices = @transform_0, window_bounds = array<i64: 1, 256, 128>}, {pipeline_mode = #tpu.pipeline_mode<synchronous>, transform_indices = @transform_1, window_bounds = array<i64: 1, 128>}, {pipeline_mode = #tpu.pipeline_mode<synchronous>, transform_indices = @transform_2, window_bounds = array<i64: 1, 128>}, {pipeline_mode = #tpu.pipeline_mode<synchronous>, transform_indices = @transform_3, window_bounds = array<i64: 128, 128>}, {transform_indices = @transform_4, window_bounds = array<i64: 1, 2, 128>}]} {
    %c0_i32 = arith.constant 0 : i32
    %0 = arith.cmpi eq, %arg1, %c0_i32 : i32
    %1 = arith.extui %0 : i1 to i32
    %c0_i32_0 = arith.constant 0 : i32
    %2 = arith.cmpi ne, %1, %c0_i32_0 : i32
    scf.if %2 {
      %cst_14 = arith.constant 0.000000e+00 : f32
      %19 = vector.broadcast %cst_14 : f32 to vector<1x128xf32>
      %c0_15 = arith.constant 0 : index
      %c0_16 = arith.constant 0 : index
      %20 = vector.load %arg7[%c0_15, %c0_16] : memref<1x128xf32, #tpu.memory_space<vmem>>, vector<1x128xf32>
      tpu.vector_store %arg7[%c0_15, %c0_16], %19 {strides = array<i32>} : memref<1x128xf32, #tpu.memory_space<vmem>>, vector<1x128xf32>,
      %cst_17 = arith.constant 0.000000e+00 : f32
      %21 = vector.broadcast %cst_17 : f32 to vector<1x128xf32>
      %c0_18 = arith.constant 0 : index
      %c0_19 = arith.constant 0 : index
      %22 = vector.load %arg8[%c0_18, %c0_19] : memref<1x128xf32, #tpu.memory_space<vmem>>, vector<1x128xf32>
      tpu.vector_store %arg8[%c0_18, %c0_19], %21 {strides = array<i32>} : memref<1x128xf32, #tpu.memory_space<vmem>>, vector<1x128xf32>,
    } else {
    }
    %c0 = arith.constant 0 : index
    %c0_1 = arith.constant 0 : index
    %c0_2 = arith.constant 0 : index
    %3 = vector.load %arg2[%c0, %c0_1, %c0_2] : memref<1x256x128xf32, #tpu.memory_space<vmem>>, vector<1x256x128xf32>
    %4 = vector.shape_cast %3 : vector<1x256x128xf32> to vector<256x128xf32>
    %c0_3 = arith.constant 0 : index
    %c0_4 = arith.constant 0 : index
    %5 = vector.load %arg7[%c0_3, %c0_4] : memref<1x128xf32, #tpu.memory_space<vmem>>, vector<1x128xf32>
    %cst = arith.constant dense<0.000000e+00> : vector<128xf32>
    %6 = vector.multi_reduction <add>, %4, %cst [0] : vector<256x128xf32> to vector<128xf32>
    %7 = vector.shape_cast %6 : vector<128xf32> to vector<1x128xf32>
    %8 = arith.addf %5, %7 : vector<1x128xf32>
    %c0_5 = arith.constant 0 : index
    %c0_6 = arith.constant 0 : index
    %9 = vector.load %arg7[%c0_5, %c0_6] : memref<1x128xf32, #tpu.memory_space<vmem>>, vector<1x128xf32>
    tpu.vector_store %arg7[%c0_5, %c0_6], %8 {strides = array<i32>} : memref<1x128xf32, #tpu.memory_space<vmem>>, vector<1x128xf32>,
    %c0_7 = arith.constant 0 : index
    %c0_8 = arith.constant 0 : index
    %10 = vector.load %arg8[%c0_7, %c0_8] : memref<1x128xf32, #tpu.memory_space<vmem>>, vector<1x128xf32>
    %11 = arith.mulf %4, %4 : vector<256x128xf32>
    %cst_9 = arith.constant dense<0.000000e+00> : vector<128xf32>
    %12 = vector.multi_reduction <add>, %11, %cst_9 [0] : vector<256x128xf32> to vector<128xf32>
    %13 = vector.shape_cast %12 : vector<128xf32> to vector<1x128xf32>
    %14 = arith.addf %10, %13 : vector<1x128xf32>
    %c0_10 = arith.constant 0 : index
    %c0_11 = arith.constant 0 : index
    %15 = vector.load %arg8[%c0_10, %c0_11] : memref<1x128xf32, #tpu.memory_space<vmem>>, vector<1x128xf32>
    tpu.vector_store %arg8[%c0_10, %c0_11], %14 {strides = array<i32>} : memref<1x128xf32, #tpu.memory_space<vmem>>, vector<1x128xf32>,
    %c0_i32_12 = arith.constant 0 : i32
    %16 = arith.cmpi eq, %arg1, %c0_i32_12 : i32
    %17 = arith.extui %16 : i1 to i32
    %c0_i32_13 = arith.constant 0 : i32
    %18 = arith.cmpi ne, %17, %c0_i32_13 : i32
    scf.if %18 {
      %c0_14 = arith.constant 0 : index
      %c0_15 = arith.constant 0 : index
      %19 = vector.load %arg5[%c0_14, %c0_15] : memref<128x128xf32, #tpu.memory_space<vmem>>, vector<128x128xf32>
      %c0_16 = arith.constant 0 : index
      %c0_17 = arith.constant 0 : index
      %20 = vector.load %arg7[%c0_16, %c0_17] : memref<1x128xf32, #tpu.memory_space<vmem>>, vector<1x128xf32>
      %c0_18 = arith.constant 0 : index
      %c0_19 = arith.constant 0 : index
      %21 = vector.load %arg8[%c0_18, %c0_19] : memref<1x128xf32, #tpu.memory_space<vmem>>, vector<1x128xf32>
      %22 = tpu.concatenate %20, %21 in 0 : vector<1x128xf32>, vector<1x128xf32> -> vector<2x128xf32>
      %cst_20 = arith.constant dense<0.000000e+00> : vector<2x128xf32>
      %23 = tpu.matmul %22, %19, %cst_20 {dimension_numbers = #tpu.dot_dimension_numbers<[1], [0], [0], [1], [0, 0, 1, 1], [], []>} : vector<2x128xf32>, vector<128x128xf32>, vector<2x128xf32> -> vector<2x128xf32>
      %24 = vector.extract_strided_slice %23 {offsets = [0, 0], sizes = [1, 128], strides = [1, 1]} : vector<2x128xf32> to vector<1x128xf32>
      %cst_21 = arith.constant 1.024000e+03 : f32
      %25 = vector.broadcast %cst_21 : f32 to vector<1x128xf32>
      %26 = arith.divf %24, %25 : vector<1x128xf32>
      %27 = vector.extract_strided_slice %23 {offsets = [1, 0], sizes = [1, 128], strides = [1, 1]} : vector<2x128xf32> to vector<1x128xf32>
      %cst_22 = arith.constant 1.024000e+03 : f32
      %28 = vector.broadcast %cst_22 : f32 to vector<1x128xf32>
      %29 = arith.divf %27, %28 : vector<1x128xf32>
      %30 = arith.mulf %26, %26 : vector<1x128xf32>
      %31 = arith.subf %29, %30 : vector<1x128xf32>
      %cst_23 = arith.constant 0.000000e+00 : f32
      %32 = vector.broadcast %cst_23 : f32 to vector<1x128xf32>
      %33 = arith.maximumf %31, %32 : vector<1x128xf32>
      %cst_24 = arith.constant 9.99999997E-7 : f32
      %34 = vector.broadcast %cst_24 : f32 to vector<1x128xf32>
      %35 = arith.addf %33, %34 : vector<1x128xf32>
      %36 = math.rsqrt %35 : vector<1x128xf32>
      %37 = tpu.concatenate %26, %36 in 0 : vector<1x128xf32>, vector<1x128xf32> -> vector<2x128xf32>
      %cst_25 = arith.constant dense<0.000000e+00> : vector<2x128xf32>
      %38 = tpu.matmul %37, %19, %cst_25 {dimension_numbers = #tpu.dot_dimension_numbers<[1], [1], [0], [0], [0, 0, 1, 0], [], []>} : vector<2x128xf32>, vector<128x128xf32>, vector<2x128xf32> -> vector<2x128xf32>
      %c0_26 = arith.constant 0 : index
      %c0_27 = arith.constant 0 : index
      %39 = vector.load %arg3[%c0_26, %c0_27] : memref<1x128xf32, #tpu.memory_space<vmem>>, vector<1x128xf32>
      %40 = vector.extract_strided_slice %38 {offsets = [1, 0], sizes = [1, 128], strides = [1, 1]} : vector<2x128xf32> to vector<1x128xf32>
      %41 = arith.mulf %39, %40 : vector<1x128xf32>
      %c0_28 = arith.constant 0 : index
      %c0_29 = arith.constant 0 : index
      %42 = vector.load %arg4[%c0_28, %c0_29] : memref<1x128xf32, #tpu.memory_space<vmem>>, vector<1x128xf32>
      %43 = vector.extract_strided_slice %38 {offsets = [0, 0], sizes = [1, 128], strides = [1, 1]} : vector<2x128xf32> to vector<1x128xf32>
      %44 = arith.mulf %43, %41 : vector<1x128xf32>
      %45 = arith.subf %42, %44 : vector<1x128xf32>
      %46 = tpu.concatenate %41, %45 in 0 : vector<1x128xf32>, vector<1x128xf32> -> vector<2x128xf32>
      %c0_30 = arith.constant 0 : index
      %c0_31 = arith.constant 0 : index
      %c0_32 = arith.constant 0 : index
      %47 = vector.load %arg6[%c0_30, %c0_31, %c0_32] : memref<1x2x128xf32, #tpu.memory_space<vmem>>, vector<1x2x128xf32>
      %48 = vector.shape_cast %47 : vector<1x2x128xf32> to vector<2x128xf32>
      %49 = vector.shape_cast %46 : vector<2x128xf32> to vector<1x2x128xf32>
      tpu.vector_store %arg6[%c0_30, %c0_31, %c0_32], %49 {strides = array<i32>} : memref<1x2x128xf32, #tpu.memory_space<vmem>>, vector<1x2x128xf32>,
    } else {
    }
    return
  }
  func.func @transform_0(%arg0: i32, %arg1: i32) -> (i32, i32, i32) {
    %c0_i32 = arith.constant 0 : i32
    %c0_i32_0 = arith.constant 0 : i32
    return %arg0, %arg1, %c0_i32 : i32, i32, i32
  }
  func.func @transform_1(%arg0: i32, %arg1: i32) -> (i32, i32) {
    %c0_i32 = arith.constant 0 : i32
    %c0_i32_0 = arith.constant 0 : i32
    %c0_i32_1 = arith.constant 0 : i32
    return %c0_i32, %c0_i32_0 : i32, i32
  }
  func.func @transform_2(%arg0: i32, %arg1: i32) -> (i32, i32) {
    %c0_i32 = arith.constant 0 : i32
    %c0_i32_0 = arith.constant 0 : i32
    %c0_i32_1 = arith.constant 0 : i32
    return %c0_i32, %c0_i32_0 : i32, i32
  }
  func.func @transform_3(%arg0: i32, %arg1: i32) -> (i32, i32) {
    %c0_i32 = arith.constant 0 : i32
    %c0_i32_0 = arith.constant 0 : i32
    %c0_i32_1 = arith.constant 0 : i32
    return %c0_i32, %c0_i32_0 : i32, i32
  }
  func.func @transform_4(%arg0: i32, %arg1: i32) -> (i32, i32, i32) {
    %c0_i32 = arith.constant 0 : i32
    %c0_i32_0 = arith.constant 0 : i32
    %c0_i32_1 = arith.constant 0 : i32
    return %arg0, %c0_i32, %c0_i32_0 : i32, i32, i32
  }
}

</mosaic_0001>

<llo_original>
// kernel: eq.1
$region0: #{eq.1}
  %s0 = inlined_call_operand.vmem [shape: s32[32,4], index: 0, kind: input, shape index: {}]
  %s1 = inlined_call_operand.vmem [shape: s32[128], index: 1, kind: output, shape index: {}]
  $region1: #{eq.1} parent=0
    #allocation0 [shape = 'u8[4096]{0}', space=vmem, size = 0x1000, scoped, tag = 'scoped mem for output reshape']
    %v2 = vld [vmem:[%s0] sm:$0x1]
    %vm3 = vcmask 31744
    %4 = vst.msk [vmem:[#allocation0] sm:$0x1] %vm3, %v2
    %s5 = scalar_lea.vmem %s0, 31
    %v6 = vld [vmem:[%s5] sm:$0x1]
    %7 = vrot.lane.b32.xlu0 %v6, 124
    %v8 = vpop.permute.xlu0 %7
    %vm9 = vcmask 1048544
    %10 = vst.msk [vmem:[#allocation0] sm:$0x1] %vm9, %v8
    %s11 = scalar_lea.vmem %s0, 30
    %v12 = vld [vmem:[%s11] sm:$0x1]
    %13 = vrot.lane.b32.xlu0 %v12, 120
    %v14 = vpop.permute.xlu0 %13
    %vm15 = vcmask 1015744
    %16 = vst.msk [vmem:[#allocation0] sm:$0x1] %vm15, %v14
    %s17 = scalar_lea.vmem %s0, 29
    %v18 = vld [vmem:[%s17] sm:$0x1]
    %19 = vrot.lane.b32.xlu0 %v18, 116
    %v20 = vpop.permute.xlu0 %19
    %vm21 = vcmask 982944
    %22 = vst.msk [vmem:[#allocation0] sm:$0x1] %vm21, %v20
    %s23 = scalar_lea.vmem %s0, 28
    %v24 = vld [vmem:[%s23] sm:$0x1]
    %25 = vrot.lane.b32.xlu0 %v24, 112
    %v26 = vpop.permute.xlu0 %25
    %vm27 = vcmask 950144
    %28 = vst.msk [vmem:[#allocation0] sm:$0x1] %vm27, %v26
    %s29 = scalar_lea.vmem %s0, 27
    %v30 = vld [vmem:[%s29] sm:$0x1]
    %31 = vrot.lane.b32.xlu0 %v30, 108
    %v32 = vpop.permute.xlu0 %31
    %vm33 = vcmask 917344
    %34 = vst.msk [vmem:[#allocation0] sm:$0x1] %vm33, %v32
    %s35 = scalar_lea.vmem %s0, 26
    %v36 = vld [vmem:[%s35] sm:$0x1]
    %37 = vrot.lane.b32.xlu0 %v36, 104
    %v38 = vpop.permute.xlu0 %37
    %vm39 = vcmask 884544
    %40 = vst.msk [vmem:[#allocation0] sm:$0x1] %vm39, %v38
    %s41 = scalar_lea.vmem %s0, 25
    %v42 = vld [vmem:[%s41] sm:$0x1]
    %43 = vrot.lane.b32.xlu0 %v42, 100
    %v44 = vpop.permute.xlu0 %43
    %vm45 = vcmask 851744
    %46 = vst.msk [vmem:[#allocation0] sm:$0x1] %vm45, %v44
    %s47 = scalar_lea.vmem %s0, 24
    %v48 = vld [vmem:[%s47] sm:$0x1]
    %49 = vrot.lane.b32.xlu0 %v48, 96
    %v50 = vpop.permute.xlu0 %49
    %vm51 = vcmask 818944
    %52 = vst.msk [vmem:[#allocation0] sm:$0x1] %vm51, %v50
    %s53 = scalar_lea.vmem %s0, 23
    %v54 = vld [vmem:[%s53] sm:$0x1]
    %55 = vrot.lane.b32.xlu0 %v54, 92
    %v56 = vpop.permute.xlu0 %55
    %vm57 = vcmask 786144
    %58 = vst.msk [vmem:[#allocation0] sm:$0x1] %vm57, %v56
    %s59 = scalar_lea.vmem %s0, 22
    %v60 = vld [vmem:[%s59] sm:$0x1]
    %61 = vrot.lane.b32.xlu0 %v60, 88
    %v62 = vpop.permute.xlu0 %61
    %vm63 = vcmask 753344
    %64 = vst.msk [vmem:[#allocation0] sm:$0x1] %vm63, %v62
    %s65 = scalar_lea.vmem %s0, 21
    %v66 = vld [vmem:[%s65] sm:$0x1]
    %67 = vrot.lane.b32.xlu0 %v66, 84
    %v68 = vpop.permute.xlu0 %67
    %vm69 = vcmask 720544
    %70 = vst.msk [vmem:[#allocation0] sm:$0x1] %vm69, %v68
    %s71 = scalar_lea.vmem %s0, 20
    %v72 = vld [vmem:[%s71] sm:$0x1]
    %73 = vrot.lane.b32.xlu0 %v72, 80
    %v74 = vpop.permute.xlu0 %73
    %vm75 = vcmask 687744
    %76 = vst.msk [vmem:[#allocation0] sm:$0x1] %vm75, %v74
    %s77 = scalar_lea.vmem %s0, 19
    %v78 = vld [vmem:[%s77] sm:$0x1]
    %79 = vrot.lane.b32.xlu0 %v78, 76
    %v80 = vpop.permute.xlu0 %79
    %vm81 = vcmask 654944
    %82 = vst.msk [vmem:[#allocation0] sm:$0x1] %vm81, %v80
    %s83 = scalar_lea.vmem %s0, 18
    %v84 = vld [vmem:[%s83] sm:$0x1]
    %85 = vrot.lane.b32.xlu0 %v84, 72
    %v86 = vpop.permute.xlu0 %85
    %vm87 = vcmask 622144
    %88 = vst.msk [vmem:[#allocation0] sm:$0x1] %vm87, %v86
    %s89 = scalar_lea.vmem %s0, 17
    %v90 = vld [vmem:[%s89] sm:$0x1]
    %91 = vrot.lane.b32.xlu0 %v90, 68
    %v92 = vpop.permute.xlu0 %91
    %vm93 = vcmask 589344
    %94 = vst.msk [vmem:[#allocation0] sm:$0x1] %vm93, %v92
    %s95 = scalar_lea.vmem %s0, 16
    %v96 = vld [vmem:[%s95] sm:$0x1]
    %97 = vrot.lane.b32.xlu0 %v96, 64
    %v98 = vpop.permute.xlu0 %97
    %vm99 = vcmask 556544
    %100 = vst.msk [vmem:[#allocation0] sm:$0x1] %vm99, %v98
    %s101 = scalar_lea.vmem %s0, 15
    %v102 = vld [vmem:[%s101] sm:$0x1]
    %103 = vrot.lane.b32.xlu0 %v102, 60
    %v104 = vpop.permute.xlu0 %103
    %vm105 = vcmask 523744
    %106 = vst.msk [vmem:[#allocation0] sm:$0x1] %vm105, %v104
    %s107 = scalar_lea.vmem %s0, 14
    %v108 = vld [vmem:[%s107] sm:$0x1]
    %109 = vrot.lane.b32.xlu0 %v108, 56
    %v110 = vpop.permute.xlu0 %109
    %vm111 = vcmask 490944
    %112 = vst.msk [vmem:[#allocation0] sm:$0x1] %vm111, %v110
    %s113 = scalar_lea.vmem %s0, 13
    %v114 = vld [vmem:[%s113] sm:$0x1]
    %115 = vrot.lane.b32.xlu0 %v114, 52
    %v116 = vpop.permute.xlu0 %115
    %vm117 = vcmask 458144
    %118 = vst.msk [vmem:[#allocation0] sm:$0x1] %vm117, %v116
    %s119 = scalar_lea.vmem %s0, 12
    %v120 = vld [vmem:[%s119] sm:$0x1]
    %121 = vrot.lane.b32.xlu0 %v120, 48
    %v122 = vpop.permute.xlu0 %121
    %vm123 = vcmask 425344
    %124 = vst.msk [vmem:[#allocation0] sm:$0x1] %vm123, %v122
    %s125 = scalar_lea.vmem %s0, 11
    %v126 = vld [vmem:[%s125] sm:$0x1]
    %127 = vrot.lane.b32.xlu0 %v126, 44
    %v128 = vpop.permute.xlu0 %127
    %vm129 = vcmask 392544
    %130 = vst.msk [vmem:[#allocation0] sm:$0x1] %vm129, %v128
    %s131 = scalar_lea.vmem %s0, 10
    %v132 = vld [vmem:[%s131] sm:$0x1]
    %133 = vrot.lane.b32.xlu0 %v132, 40
    %v134 = vpop.permute.xlu0 %133
    %vm135 = vcmask 359744
    %136 = vst.msk [vmem:[#allocation0] sm:$0x1] %vm135, %v134
    %s137 = scalar_lea.vmem %s0, 9
    %v138 = vld [vmem:[%s137] sm:$0x1]
    %139 = vrot.lane.b32.xlu0 %v138, 36
    %v140 = vpop.permute.xlu0 %139
    %vm141 = vcmask 326944
    %142 = vst.msk [vmem:[#allocation0] sm:$0x1] %vm141, %v140
    %s143 = scalar_lea.vmem %s0, 8
    %v144 = vld [vmem:[%s143] sm:$0x1]
    %145 = vrot.lane.b32.xlu0 %v144, 32
    %v146 = vpop.permute.xlu0 %145
    %vm147 = vcmask 294144
    %148 = vst.msk [vmem:[#allocation0] sm:$0x1] %vm147, %v146
    %s149 = scalar_lea.vmem %s0, 7
    %v150 = vld [vmem:[%s149] sm:$0x1]
    %151 = vrot.lane.b32.xlu0 %v150, 28
    %v152 = vpop.permute.xlu0 %151
    %vm153 = vcmask 261344
    %154 = vst.msk [vmem:[#allocation0] sm:$0x1] %vm153, %v152
    %s155 = scalar_lea.vmem %s0, 6
    %v156 = vld [vmem:[%s155] sm:$0x1]
    %157 = vrot.lane.b32.xlu0 %v156, 24
    %v158 = vpop.permute.xlu0 %157
    %vm159 = vcmask 228544
    %160 = vst.msk [vmem:[#allocation0] sm:$0x1] %vm159, %v158
    %s161 = scalar_lea.vmem %s0, 5
    %v162 = vld [vmem:[%s161] sm:$0x1]
    %163 = vrot.lane.b32.xlu0 %v162, 20
    %v164 = vpop.permute.xlu0 %163
    %vm165 = vcmask 195744
    %166 = vst.msk [vmem:[#allocation0] sm:$0x1] %vm165, %v164
    %s167 = scalar_lea.vmem %s0, 4
    %v168 = vld [vmem:[%s167] sm:$0x1]
    %169 = vrot.lane.b32.xlu0 %v168, 16
    %v170 = vpop.permute.xlu0 %169
    %vm171 = vcmask 162944
    %172 = vst.msk [vmem:[#allocation0] sm:$0x1] %vm171, %v170
    %s173 = scalar_lea.vmem %s0, 3
    %v174 = vld [vmem:[%s173] sm:$0x1]
    %175 = vrot.lane.b32.xlu0 %v174, 12
    %v176 = vpop.permute.xlu0 %175
    %vm177 = vcmask 130144
    %178 = vst.msk [vmem:[#allocation0] sm:$0x1] %vm177, %v176
    %s179 = scalar_lea.vmem %s0, 2
    %v180 = vld [vmem:[%s179] sm:$0x1]
    %181 = vrot.lane.b32.xlu0 %v180, 8
    %v182 = vpop.permute.xlu0 %181
    %vm183 = vcmask 97344
    %184 = vst.msk [vmem:[#allocation0] sm:$0x1] %vm183, %v182
    %s185 = scalar_lea.vmem %s0, 1
    %v186 = vld [vmem:[%s185] sm:$0x1]
    %187 = vrot.lane.b32.xlu0 %v186, 4
    %v188 = vpop.permute.xlu0 %187
    %vm189 = vcmask 64544
    %190 = vst.msk [vmem:[#allocation0] sm:$0x1] %vm189, %v188
    %s192 = ssub.s32 2, 1
    %v193 = vld [vmem:[#allocation0] sm:%s192]
    %s195 = ssub.s32 2, 1
    %196 = vst [vmem:[%s1] sm:%s195] %v193

// kernel: attn_block.3
$region0: #{attn_block.3}
  #allocation0 [shape = 'u32[]', space=smem, size = 0x4, offset = 0x4, fixed_abs, tag = 'smem constant byte address 0x4 - core index']
  #allocation1 [shape = 'u32[72,128]{1,0:T(1,128)}', space=vmem, size = 0x9000, scoped, tag = 'internal scratch']
  #allocation2 [shape = 'f32[1,128]{1,0:T(1,128)}', space=vmem, size = 0x200, scoped, tag = 'scratch operand']
  #allocation3 [shape = 'f32[1,128]{1,0:T(1,128)}', space=vmem, size = 0x200, scoped, tag = 'scratch operand']
  %s0 = inlined_call_operand.hbm [shape: f32[2,256,128], index: 0, kind: input, shape index: {}]
  %s1 = inlined_call_operand.vmem [shape: f32[1,128], index: 1, kind: input, shape index: {}]
  %s2 = inlined_call_operand.vmem [shape: f32[1,128], index: 2, kind: input, shape index: {}]
  %s3 = inlined_call_operand.vmem [shape: f32[128,128], index: 3, kind: input, shape index: {}]
  %s4 = inlined_call_operand.vmem [shape: f32[2,2,128], index: 4, kind: output, shape index: {}]
  %s5 = sld [smem:[#allocation0]]
  $region61: #{attn_block.3} parent=0
    _
  %s7 = ssub.s32 1, %s5
  %s8 = scalar_select 0, %s7, %s5
  $region1: #{attn_block.3} parent=0
    #allocation4 [shape = 'u8[262144]{0}', space=vmem, size = 0x40000, scoped, tag = 'input window, operand 0']
    #allocation5 [shape = 's32[2]{0}', space=sflag, size = 0x8, scoped, tag = 'scoped memory for attn_block.3']
    %9 = vsyncpa [#allocation5], 0
    %s10 = scalar_lea.sflag [#allocation5], 1
    %11 = vsyncpa %s10, 0
    loop: start=0, step=1, limit=4
    $region2: #{attn_block.3} parent=1 // loop_pre_header
      _
    $region3: #{attn_block.3} parent=1 // loop_header
      %s13 = sphi 0, %s17
      %p14 = scmp.ge.s32.totalorder %s13, 4
      %s20 = sphi 0, %s32
      %s21 = sphi 0, %s28
      %s22 = sphi 0, %s20
      %s23 = sphi 0, %s21
      %s24 = sphi 0, %s22
      %s25 = sphi 0, %s23
      %s37 = sphi 0, %s39
      %s40 = sphi 0, %s37
      %s41 = sphi 0, %s40
      %s57 = sphi 0, %s41
      %s61 = sphi 0, %s61
      %s63 = sphi 0, %s61
      %s64 = sphi 0, %s63
      %s78 = sphi 0, %s64
      %s82 = sphi 0, %s82
      %s84 = sphi 0, %s82
      %s85 = sphi 0, %s84
      %s99 = sphi 0, %s85
      %s103 = sphi 0, %s103
      %s105 = sphi 0, %s103
      %s106 = sphi 0, %s105
      %s120 = sphi 0, %s106
      %s126 = sphi 0, %s128
      %s129 = sphi 0, %s126
      %s130 = sphi 0, %s129
      %s146 = sphi 0, %s130
    $region4: #{attn_block.3} parent=1 // loop_header_branch
      %16 = sbr.rel (%p14) target = $region8
    $region5: #{attn_block.3} parent=1 // loop_body
      %s18 = ssub.s32 %s13, 1
      %s19 = ssub.s32 %s13, 2
      %s26 = sadd.s32 1, %s21
      %p27 = scmp.ge.s32.totalorder %s26, 1
      %s28 = scalar_select %p27, 0, %s26
      %s29 = sadd.s32 1, %s20
      %s30 = scalar_select %p27, %s29, %s20
      %p31 = scmp.ge.s32.totalorder %s30, 2
      %s32 = scalar_select %p31, 0, %s30
      %s33 = ssub.s32 %s20, %s32
      %s34 = ssub.s32 %s21, %s28
      %s35 = sor.u32 %s33, %s34
      %p36 = scmp.eq.s32.totalorder %s35, 0
      %s38 = sadd.s32 %s37, 1
      %s39 = scalar_select %p36, %s37, %s38
      %p42 = pneg %p36
      %p43 = scmp.eq.s32.totalorder %s13, 1
      %p44 = por %p42, %p43
      %p45 = scmp.ne.s32.totalorder %s37, %s40
      %p46 = scmp.eq.s32.totalorder %s13, 0
      %p47 = por %p45, %p46
      %p48 = scmp.ne.s32.totalorder %s37, %s40
      %p49 = scmp.eq.s32.totalorder %s18, 1
      %p50 = por %p48, %p49
      %p51 = scmp.ne.s32.totalorder %s40, %s41
      %p52 = scmp.eq.s32.totalorder %s18, 0
      %p53 = por %p51, %p52
      %p54 = scmp.ne.s32.totalorder %s40, %s41
      %p55 = scmp.eq.s32.totalorder %s19, 1
      %p56 = por %p54, %p55
      %p58 = scmp.ne.s32.totalorder %s41, %s57
      %p59 = scmp.eq.s32.totalorder %s19, 0
      %p60 = por %p58, %p59
      %s62 = sadd.s32 %s61, 1
      %p65 = scmp.eq.s32.totalorder %s13, 1
      %p66 = scmp.ne.s32.totalorder %s61, %s63
      %p67 = scmp.eq.s32.totalorder %s13, 0
      %p68 = por %p66, %p67
      %p69 = scmp.ne.s32.totalorder %s61, %s63
      %p70 = scmp.eq.s32.totalorder %s18, 1
      %p71 = por %p69, %p70
      %p72 = scmp.ne.s32.totalorder %s63, %s64
      %p73 = scmp.eq.s32.totalorder %s18, 0
      %p74 = por %p72, %p73
      %p75 = scmp.ne.s32.totalorder %s63, %s64
      %p76 = scmp.eq.s32.totalorder %s19, 1
      %p77 = por %p75, %p76
      %p79 = scmp.ne.s32.totalorder %s64, %s78
      %p80 = scmp.eq.s32.totalorder %s19, 0
      %p81 = por %p79, %p80
      %s83 = sadd.s32 %s82, 1
      %p86 = scmp.eq.s32.totalorder %s13, 1
      %p87 = scmp.ne.s32.totalorder %s82, %s84
      %p88 = scmp.eq.s32.totalorder %s13, 0
      %p89 = por %p87, %p88
      %p90 = scmp.ne.s32.totalorder %s82, %s84
      %p91 = scmp.eq.s32.totalorder %s18, 1
      %p92 = por %p90, %p91
      %p93 = scmp.ne.s32.totalorder %s84, %s85
      %p94 = scmp.eq.s32.totalorder %s18, 0
      %p95 = por %p93, %p94
      %p96 = scmp.ne.s32.totalorder %s84, %s85
      %p97 = scmp.eq.s32.totalorder %s19, 1
      %p98 = por %p96, %p97
      %p100 = scmp.ne.s32.totalorder %s85, %s99
      %p101 = scmp.eq.s32.totalorder %s19, 0
      %p102 = por %p100, %p101
      %s104 = sadd.s32 %s103, 1
      %p107 = scmp.eq.s32.totalorder %s13, 1
      %p108 = scmp.ne.s32.totalorder %s103, %s105
      %p109 = scmp.eq.s32.totalorder %s13, 0
      %p110 = por %p108, %p109
      %p111 = scmp.ne.s32.totalorder %s103, %s105
      %p112 = scmp.eq.s32.totalorder %s18, 1
      %p113 = por %p111, %p112
      %p114 = scmp.ne.s32.totalorder %s105, %s106
      %p115 = scmp.eq.s32.totalorder %s18, 0
      %p116 = por %p114, %p115
      %p117 = scmp.ne.s32.totalorder %s105, %s106
      %p118 = scmp.eq.s32.totalorder %s19, 1
      %p119 = por %p117, %p118
      %p121 = scmp.ne.s32.totalorder %s106, %s120
      %p122 = scmp.eq.s32.totalorder %s19, 0
      %p123 = por %p121, %p122
      %s124 = ssub.s32 %s20, %s32
      %p125 = scmp.eq.s32.totalorder %s124, 0
      %s127 = sadd.s32 %s126, 1
      %s128 = scalar_select %p125, %s126, %s127
      %p131 = pneg %p125
      %p132 = scmp.eq.s32.totalorder %s13, 1
      %p133 = por %p131, %p132
      %p134 = scmp.ne.s32.totalorder %s126, %s129
      %p135 = scmp.eq.s32.totalorder %s13, 0
      %p136 = por %p134, %p135
      %p137 = scmp.ne.s32.totalorder %s126, %s129
      %p138 = scmp.eq.s32.totalorder %s18, 1
      %p139 = por %p137, %p138
      %p140 = scmp.ne.s32.totalorder %s129, %s130
      %p141 = scmp.eq.s32.totalorder %s18, 0
      %p142 = por %p140, %p141
      %p143 = scmp.ne.s32.totalorder %s129, %s130
      %p144 = scmp.eq.s32.totalorder %s19, 1
      %p145 = por %p143, %p144
      %p147 = scmp.ne.s32.totalorder %s130, %s146
      %p148 = scmp.eq.s32.totalorder %s19, 0
      %p149 = por %p147, %p148
      %p150 = scmp.le.s32.totalorder 1, %s13
      %p151 = scmp.lt.s32.totalorder %s13, 3
      %p152 = pnand %p150, %p151
      %p153 = pneg %p152
      // Predicated region
      $region9: #{attn_block.3} parent=5 // pred_check
        _
      $region10: #{attn_block.3} parent=5 // pred_check_branch
        %155 = sbr.rel (%p152) target = $region12
      $region11: #{attn_block.3} parent=5 // pred_region
        %s156 = ssub.s32 %s13, 1
        // Predicated region
        $region13: #{attn_block.3} parent=11 // pred_check
          %p157 = pneg %p74
        $region14: #{attn_block.3} parent=11 // pred_check_branch
          %159 = sbr.rel (%p157) target = $region16
        $region15: #{attn_block.3} parent=11 // pred_region
          _
        $region16: #{attn_block.3} parent=11 // pred_fallthru
          _
        // Predicated region
        $region17: #{attn_block.3} parent=11 // pred_check
          %p160 = pneg %p95
        $region18: #{attn_block.3} parent=11 // pred_check_branch
          %162 = sbr.rel (%p160) target = $region20
        $region19: #{attn_block.3} parent=11 // pred_region
          _
        $region20: #{attn_block.3} parent=11 // pred_fallthru
          _
        // Predicated region
        $region21: #{attn_block.3} parent=11 // pred_check
          %p163 = pneg %p116
        $region22: #{attn_block.3} parent=11 // pred_check_branch
          %165 = sbr.rel (%p163) target = $region24
        $region23: #{attn_block.3} parent=11 // pred_region
          _
        $region24: #{attn_block.3} parent=11 // pred_fallthru
          _
      $region12: #{attn_block.3} parent=5 // pred_fallthru
        _
      %p166 = scmp.lt.s32.totalorder %s13, 2
      // Predicated region
      $region25: #{attn_block.3} parent=5 // pred_check
        %p167 = pneg %p166
      $region26: #{attn_block.3} parent=5 // pred_check_branch
        %169 = sbr.rel (%p167) target = $region28
      $region27: #{attn_block.3} parent=5 // pred_region
        // Predicated region
        $region29: #{attn_block.3} parent=27 // pred_check
          %p170 = pneg %p47
        $region30: #{attn_block.3} parent=27 // pred_check_branch
          %172 = sbr.rel (%p170) target = $region32
        $region31: #{attn_block.3} parent=27 // pred_region
          %s173 = sand.u32 %s37, 1
          %s174 = scalar_lea.sflag [#allocation5], %s173
          %s175 = sand.u32 %s37, 1
          %s176 = smul.addr %s175, 256
          %s177 = scalar_lea.vmem [#allocation4], %s176
          %s178 = smul.u32 32, %s21
          %180 = vsyncadd %s174, 0
          %s181 = smul.addr %s20, 32
          %s182 = sadd.s32 %s178, %s181
          %s183 = smul.addr %s182, 8
          %s184 = scalar_lea.hbm %s0, %s183
          %s185 = sshll.u32 %s184, 4
          %s186 = int_to_ptr.hbm [resolvable:$true] %s185
          %s187 = sshll.u32 %s177, 4
          %s188 = int_to_ptr.vmem [resolvable:$true] %s187
          %193 = dma.hbm_to_vmem [thread:$0]  %s186, 4096, %s188, %s174, 128, 128, 8
        $region32: #{attn_block.3} parent=27 // pred_fallthru
          _
      $region28: #{attn_block.3} parent=5 // pred_fallthru
        _
      %p194 = scmp.le.s32.totalorder 1, %s13
      %p195 = scmp.lt.s32.totalorder %s13, 3
      %p196 = pnand %p194, %p195
      %p197 = pneg %p196
      // Predicated region
      $region33: #{attn_block.3} parent=5 // pred_check
        _
      $region34: #{attn_block.3} parent=5 // pred_check_branch
        %199 = sbr.rel (%p196) target = $region36
      $region35: #{attn_block.3} parent=5 // pred_region
        %s200 = ssub.s32 %s13, 1
        %s201 = sand.u32 %s40, 1
        %s202 = scalar_lea.sflag [#allocation5], %s201
        %s203 = sand.u32 %s40, 1
        %s204 = smul.addr %s203, 256
        %s205 = scalar_lea.vmem [#allocation4], %s204
        // Predicated region
        $region37: #{attn_block.3} parent=35 // pred_check
          %p206 = pneg %p53
        $region38: #{attn_block.3} parent=35 // pred_check_branch
          %208 = sbr.rel (%p206) target = $region40
        $region39: #{attn_block.3} parent=35 // pred_region
          %210 = dma.done %s202, 4096
        $region40: #{attn_block.3} parent=35 // pred_fallthru
          _
        %s211 = sand.u32 %s40, 1
        %s212 = scalar_lea.sflag [#allocation5], %s211
        %s213 = sand.u32 %s40, 1
        %s214 = smul.addr %s213, 256
        %s215 = scalar_lea.vmem [#allocation4], %s214
        %p216 = pneg %p53
        %p217 = pneg %p50
        %p218 = pneg %p74
        %p219 = pneg %p71
        %p220 = pneg %p95
        %p221 = pneg %p92
        %p222 = pneg %p116
        %p223 = pneg %p113
        %p224 = pneg %p142
        %p225 = pneg %p139
        %p226 = scmp.lt.s32.totalorder %s22, 1
        %s227 = scalar_select %p226, %s22, 1
        %s228 = smul.addr %s227, 2
        %s229 = scalar_lea.vmem %s4, %s228
        %s230 = smul.u32 32, %s23
        %p231 = scmp.lt.s32.totalorder %s22, 1
        %s232 = scalar_select %p231, %s22, 1
        %s233 = smul.addr %s232, 2
        %s234 = scalar_lea.vmem %s4, %s233
        %p235 = scmp.eq.s32.totalorder %s23, 0
        // Predicated region
        $region41: #{attn_block.3} parent=35 // pred_check
          %p236 = pneg %p235
        $region42: #{attn_block.3} parent=35 // pred_check_branch
          %238 = sbr.rel (%p236) target = $region44
        $region43: #{attn_block.3} parent=35 // pred_region
          %239 = vst [vmem:[#allocation2] sm:$0x1] 0.0
          %240 = vst [vmem:[#allocation3] sm:$0x1] 0.0
        $region44: #{attn_block.3} parent=35 // pred_fallthru
          _
        %v241 = vld [vmem:[%s205] sm:$0xff]
        %v242 = vld [vmem:[%s205 + $0x8] sm:$0xff]
        %v243 = vld [vmem:[%s205 + $0x10] sm:$0xff]
        %v244 = vld [vmem:[%s205 + $0x18] sm:$0xff]
        %v245 = vld [vmem:[%s205 + $0x20] sm:$0xff]
        %v246 = vld [vmem:[%s205 + $0x28] sm:$0xff]
        %v247 = vld [vmem:[%s205 + $0x30] sm:$0xff]
        %v248 = vld [vmem:[%s205 + $0x38] sm:$0xff]
        %v249 = vld [vmem:[%s205 + $0x40] sm:$0xff]
        %v250 = vld [vmem:[%s205 + $0x48] sm:$0xff]
        %v251 = vld [vmem:[%s205 + $0x50] sm:$0xff]
        %v252 = vld [vmem:[%s205 + $0x58] sm:$0xff]
        %v253 = vld [vmem:[%s205 + $0x60] sm:$0xff]
        %v254 = vld [vmem:[%s205 + $0x68] sm:$0xff]
        %v255 = vld [vmem:[%s205 + $0x70] sm:$0xff]
        %v256 = vld [vmem:[%s205 + $0x78] sm:$0xff]
        %v257 = vld [vmem:[%s205 + $0x80] sm:$0xff]
        %v258 = vld [vmem:[%s205 + $0x88] sm:$0xff]
        %v259 = vld [vmem:[%s205 + $0x90] sm:$0xff]
        %v260 = vld [vmem:[%s205 + $0x98] sm:$0xff]
        %v261 = vld [vmem:[%s205 + $0xa0] sm:$0xff]
        %v262 = vld [vmem:[%s205 + $0xa8] sm:$0xff]
        %v263 = vld [vmem:[%s205 + $0xb0] sm:$0xff]
        %v264 = vld [vmem:[%s205 + $0xb8] sm:$0xff]
        %v265 = vld [vmem:[%s205 + $0xc0] sm:$0xff]
        %v266 = vld [vmem:[%s205 + $0xc8] sm:$0xff]
        %v267 = vld [vmem:[%s205 + $0xd0] sm:$0xff]
        %v268 = vld [vmem:[%s205 + $0xd8] sm:$0xff]
        %v269 = vld [vmem:[%s205 + $0xe0] sm:$0xff]
        %v270 = vld [vmem:[%s205 + $0xe8] sm:$0xff]
        %v271 = vld [vmem:[%s205 + $0xf0] sm:$0xff]
        %v272 = vld [vmem:[%s205 + $0xf8] sm:$0xff]
        %v273 = vld [vmem:[#allocation2] sm:$0x1]
        %v274 = vadd.f32 %v241, %v242
        %v275 = vadd.f32 %v274, %v243
        %v276 = vadd.f32 %v275, %v244
        %v277 = vadd.f32 %v276, %v245
        %v278 = vadd.f32 %v277, %v246
        %v279 = vadd.f32 %v278, %v247
        %v280 = vadd.f32 %v279, %v248
        %v281 = vadd.f32 %v280, %v249
        %v282 = vadd.f32 %v281, %v250
        %v283 = vadd.f32 %v282, %v251
        %v284 = vadd.f32 %v283, %v252
        %v285 = vadd.f32 %v284, %v253
        %v286 = vadd.f32 %v285, %v254
        %v287 = vadd.f32 %v286, %v255
        %v288 = vadd.f32 %v287, %v256
        %v289 = vadd.f32 %v288, %v257
        %v290 = vadd.f32 %v289, %v258
        %v291 = vadd.f32 %v290, %v259
        %v292 = vadd.f32 %v291, %v260
        %v293 = vadd.f32 %v292, %v261
        %v294 = vadd.f32 %v293, %v262
        %v295 = vadd.f32 %v294, %v263
        %v296 = vadd.f32 %v295, %v264
        %v297 = vadd.f32 %v296, %v265
        %v298 = vadd.f32 %v297, %v266
        %v299 = vadd.f32 %v298, %v267
        %v300 = vadd.f32 %v299, %v268
        %v301 = vadd.f32 %v300, %v269
        %v302 = vadd.f32 %v301, %v270
        %v303 = vadd.f32 %v302, %v271
        %v304 = vadd.f32 %v303, %v272
        %v305 = vrot.slane %v304, 4
        %v306 = vadd.f32 %v304, %v305
        %v307 = vrot.slane %v306, 2
        %v308 = vadd.f32 %v306, %v307
        %v309 = vrot.slane %v308, 1
        %v310 = vadd.f32 %v308, %v309
        %v311 = vadd.f32 %v273, %v310
        %312 = vst [vmem:[#allocation2] sm:$0x1] %v311
        %v313 = vld [vmem:[#allocation3] sm:$0x1]
        %v314 = vmul.f32 %v241, %v241
        %v315 = vmul.f32 %v242, %v242
        %v316 = vmul.f32 %v243, %v243
        %v317 = vmul.f32 %v244, %v244
        %v318 = vmul.f32 %v245, %v245
        %v319 = vmul.f32 %v246, %v246
        %v320 = vmul.f32 %v247, %v247
        %v321 = vmul.f32 %v248, %v248
        %v322 = vmul.f32 %v249, %v249
        %v323 = vmul.f32 %v250, %v250
        %v324 = vmul.f32 %v251, %v251
        %v325 = vmul.f32 %v252, %v252
        %v326 = vmul.f32 %v253, %v253
        %v327 = vmul.f32 %v254, %v254
        %v328 = vmul.f32 %v255, %v255
        %v329 = vmul.f32 %v256, %v256
        %v330 = vmul.f32 %v257, %v257
        %v331 = vmul.f32 %v258, %v258
        %v332 = vmul.f32 %v259, %v259
        %v333 = vmul.f32 %v260, %v260
        %v334 = vmul.f32 %v261, %v261
        %v335 = vmul.f32 %v262, %v262
        %v336 = vmul.f32 %v263, %v263
        %v337 = vmul.f32 %v264, %v264
        %v338 = vmul.f32 %v265, %v265
        %v339 = vmul.f32 %v266, %v266
        %v340 = vmul.f32 %v267, %v267
        %v341 = vmul.f32 %v268, %v268
        %v342 = vmul.f32 %v269, %v269
        %v343 = vmul.f32 %v270, %v270
        %v344 = vmul.f32 %v271, %v271
        %v345 = vmul.f32 %v272, %v272
        %v346 = vadd.f32 %v314, %v315
        %v347 = vadd.f32 %v346, %v316
        %v348 = vadd.f32 %v347, %v317
        %v349 = vadd.f32 %v348, %v318
        %v350 = vadd.f32 %v349, %v319
        %v351 = vadd.f32 %v350, %v320
        %v352 = vadd.f32 %v351, %v321
        %v353 = vadd.f32 %v352, %v322
        %v354 = vadd.f32 %v353, %v323
        %v355 = vadd.f32 %v354, %v324
        %v356 = vadd.f32 %v355, %v325
        %v357 = vadd.f32 %v356, %v326
        %v358 = vadd.f32 %v357, %v327
        %v359 = vadd.f32 %v358, %v328
        %v360 = vadd.f32 %v359, %v329
        %v361 = vadd.f32 %v360, %v330
        %v362 = vadd.f32 %v361, %v331
        %v363 = vadd.f32 %v362, %v332
        %v364 = vadd.f32 %v363, %v333
        %v365 = vadd.f32 %v364, %v334
        %v366 = vadd.f32 %v365, %v335
        %v367 = vadd.f32 %v366, %v336
        %v368 = vadd.f32 %v367, %v337
        %v369 = vadd.f32 %v368, %v338
        %v370 = vadd.f32 %v369, %v339
        %v371 = vadd.f32 %v370, %v340
        %v372 = vadd.f32 %v371, %v341
        %v373 = vadd.f32 %v372, %v342
        %v374 = vadd.f32 %v373, %v343
        %v375 = vadd.f32 %v374, %v344
        %v376 = vadd.f32 %v375, %v345
        %v377 = vrot.slane %v376, 4
        %v378 = vadd.f32 %v376, %v377
        %v379 = vrot.slane %v378, 2
        %v380 = vadd.f32 %v378, %v379
        %v381 = vrot.slane %v380, 1
        %v382 = vadd.f32 %v380, %v381
        %v383 = vadd.f32 %v313, %v382
        %384 = vst [vmem:[#allocation3] sm:$0x1] %v383
        // Predicated region
        $region45: #{attn_block.3} parent=35 // pred_check
          %p385 = pneg %p235
        $region46: #{attn_block.3} parent=35 // pred_check_branch
          %387 = sbr.rel (%p385) target = $region48
        $region47: #{attn_block.3} parent=35 // pred_region
          %v388 = vld [vmem:[%s3] sm:$0xff]
          %v389 = vld [vmem:[%s3 + $0x8] sm:$0xff]
          %v390 = vld [vmem:[%s3 + $0x10] sm:$0xff]
          %v391 = vld [vmem:[%s3 + $0x18] sm:$0xff]
          %v392 = vld [vmem:[%s3 + $0x20] sm:$0xff]
          %v393 = vld [vmem:[%s3 + $0x28] sm:$0xff]
          %v394 = vld [vmem:[%s3 + $0x30] sm:$0xff]
          %v395 = vld [vmem:[%s3 + $0x38] sm:$0xff]
          %v396 = vld [vmem:[%s3 + $0x40] sm:$0xff]
          %v397 = vld [vmem:[%s3 + $0x48] sm:$0xff]
          %v398 = vld [vmem:[%s3 + $0x50] sm:$0xff]
          %v399 = vld [vmem:[%s3 + $0x58] sm:$0xff]
          %v400 = vld [vmem:[%s3 + $0x60] sm:$0xff]
          %v401 = vld [vmem:[%s3 + $0x68] sm:$0xff]
          %v402 = vld [vmem:[%s3 + $0x70] sm:$0xff]
          %v403 = vld [vmem:[%s3 + $0x78] sm:$0xff]
          %v404 = vld [vmem:[#allocation2] sm:$0x1]
          %v405 = vld [vmem:[#allocation3] sm:$0x1]
          %v407 = vperm.slane %v405, 0
          %vm409 = vcmask 1040384
          %v410 = vsel %vm409, %v404, %v407
          %411 = vmatpush.msra.mxu0 %v403
          %412 = vmatpush.msra.mxu0 %v402
          %413 = vmatpush.msra.mxu0 %v401
          %414 = vmatpush.msra.mxu0 %v400
          %415 = vmatpush.msra.mxu0 %v399
          %416 = vmatpush.msra.mxu0 %v398
          %417 = vmatpush.msra.mxu0 %v397
          %418 = vmatpush.msra.mxu0 %v396
          %419 = vmatpush.msra.mxu0 %v395
          %420 = vmatpush.msra.mxu0 %v394
          %421 = vmatpush.msra.mxu0 %v393
          %422 = vmatpush.msra.mxu0 %v392
          %423 = vmatpush.msra.mxu0 %v391
          %424 = vmatpush.msra.mxu0 %v390
          %425 = vmatpush.msra.mxu0 %v389
          %426 = vmatpush.msra.mxu0 %v388
          %427 = vmatmul.f32.gmra.mxu0 %v410
          %v428 = vpop.f32.mrf.mxu0
          %v429 = vadd.f32 0.0, %v428
          %430 = vdwg.mxu0
          %v431 = vrcp.pop 1024.0
          %v432 = vmul.f32 1024.0, %v431
          %v433 = vsub.f32 1.0, %v432
          %v434 = vmul.f32 %v431, %v433
          %v435 = vadd.f32 %v431, %v434
          %vm436 = vweird.f32 %v431
          %v437 = vsel %vm436, %v431, %v435
          %v438 = vmul.f32 %v429, %v437
          %v439 = vmul.f32 %v438, %v438
          %v441 = vrot.slane %v439, 7
          %v443 = vsub.f32 %v438, %v441
          %v444 = vmax.f32 %v443, 0.0
          %v445 = vadd.f32 %v444, 1e-06
          %v446 = vrsqrt.pop %v445
          %v447 = vmul.f32 %v446, %v445
          %v448 = vmul.f32 %v447, %v446
          %v449 = vmul.f32 0.5, %v448
          %v450 = vsub.f32 1.5, %v449
          %v451 = vmul.f32 %v446, %v450
          %vm452 = vweird.f32 %v445
          %vm453 = vweird.f32 %v446
          %vm454 = vmor %vm452, %vm453
          %v455 = vsel %vm454, %v446, %v451
          %v456 = vsel %vm409, %v438, %v455
          %457 = vmatpush.xpose.msra.mxu0 %v403
          %458 = vmatpush.xpose.msra.mxu0 %v402
          %459 = vmatpush.xpose.msra.mxu0 %v401
          %460 = vmatpush.xpose.msra.mxu0 %v400
          %461 = vmatpush.xpose.msra.mxu0 %v399
          %462 = vmatpush.xpose.msra.mxu0 %v398
          %463 = vmatpush.xpose.msra.mxu0 %v397
          %464 = vmatpush.xpose.msra.mxu0 %v396
          %465 = vmatpush.xpose.msra.mxu0 %v395
          %466 = vmatpush.xpose.msra.mxu0 %v394
          %467 = vmatpush.xpose.msra.mxu0 %v393
          %468 = vmatpush.xpose.msra.mxu0 %v392
          %469 = vmatpush.xpose.msra.mxu0 %v391
          %470 = vmatpush.xpose.msra.mxu0 %v390
          %471 = vmatpush.xpose.msra.mxu0 %v389
          %472 = vmatpush.xpose.msra.mxu0 %v388
          %473 = vmatmul.f32.gmra.mxu0 %v456
          %v474 = vpop.f32.mrf.mxu0
          %v475 = vadd.f32 0.0, %v474
          %476 = vdwg.mxu0
          %v477 = vld [vmem:[%s1] sm:$0x1]
          %479 = vst [vmem:[#allocation1] sm:$0xff] %v475
          %s480 = scalar_lea.vmem [#allocation1], 1
          %v481 = vld [vmem:[%s480] ss:$9 sm:$0xff]
          %v483 = vmul.f32 %v477, %v481
          %v484 = vld [vmem:[%s2] sm:$0x1]
          %v485 = vmul.f32 %v475, %v483
          %v486 = vsub.f32 %v484, %v485
          %v488 = vperm.slane %v486, 0
          %v490 = vsel %vm409, %v483, %v488
          %491 = vst [vmem:[%s234] sm:$0x3] %v490
        $region48: #{attn_block.3} parent=35 // pred_fallthru
          _
        %p492 = scmp.lt.s32.totalorder %s22, 1
        %s493 = scalar_select %p492, %s22, 1
        %s494 = smul.addr %s493, 2
        %s495 = scalar_lea.vmem %s4, %s494
        // Predicated region
        $region49: #{attn_block.3} parent=35 // pred_check
          %p496 = pneg %p139
        $region50: #{attn_block.3} parent=35 // pred_check_branch
          %498 = sbr.rel (%p496) target = $region52
        $region51: #{attn_block.3} parent=35 // pred_region
          _
        $region52: #{attn_block.3} parent=35 // pred_fallthru
          _
      $region36: #{attn_block.3} parent=5 // pred_fallthru
        _
      %p499 = scmp.le.s32.totalorder 2, %s13
      // Predicated region
      $region53: #{attn_block.3} parent=5 // pred_check
        %p500 = pneg %p499
      $region54: #{attn_block.3} parent=5 // pred_check_branch
        %502 = sbr.rel (%p500) target = $region56
      $region55: #{attn_block.3} parent=5 // pred_region
        %s503 = ssub.s32 %s13, 2
        // Predicated region
        $region57: #{attn_block.3} parent=55 // pred_check
          %p504 = pneg %p145
        $region58: #{attn_block.3} parent=55 // pred_check_branch
          %506 = sbr.rel (%p504) target = $region60
        $region59: #{attn_block.3} parent=55 // pred_region
          %p507 = scmp.lt.s32.totalorder %s24, 1
          %s508 = scalar_select %p507, %s24, 1
          %s509 = smul.addr %s508, 2
          %s510 = scalar_lea.vmem %s4, %s509
        $region60: #{attn_block.3} parent=55 // pred_fallthru
          _
      $region56: #{attn_block.3} parent=5 // pred_fallthru
        _
    $region6: #{attn_block.3} parent=1 // loop_footer
      %s17 = sadd.s32 1, %s13
    $region7: #{attn_block.3} parent=1 // loop_footer_branch
      %12 = sbr.rel target = $region3
    $region8: #{attn_block.3} parent=1 // loop_exit
      _
    %511 = vsyncpa [#allocation5], 1
    %s512 = scalar_lea.sflag [#allocation5], 1
    %513 = vsyncpa %s512, 1

// kernel: attn_block.4
$region0: #{attn_block.4}
  #allocation0 [shape = 'u32[]', space=smem, size = 0x4, offset = 0x4, fixed_abs, tag = 'smem constant byte address 0x4 - core index']
  #allocation1 [shape = 'u32[72,128]{1,0:T(1,128)}', space=vmem, size = 0x9000, scoped, tag = 'internal scratch']
  %s0 = inlined_call_operand.hbm [shape: f32[2,256,128], index: 0, kind: input, shape index: {}]
  %s1 = inlined_call_operand.vmem [shape: f32[2,2,128], index: 1, kind: input, shape index: {}]
  %s2 = inlined_call_operand.vmem [shape: bf16[128,128], index: 2, kind: input, shape index: {}]
  %s3 = inlined_call_operand.vmem [shape: f32[1,128], index: 3, kind: input, shape index: {}]
  %s4 = inlined_call_operand.vmem [shape: bf16[128,128], index: 4, kind: input, shape index: {}]
  %s5 = inlined_call_operand.vmem [shape: f32[1,128], index: 5, kind: input, shape index: {}]
  %s6 = inlined_call_operand.vmem [shape: bf16[128,128], index: 6, kind: input, shape index: {}]
  %s7 = inlined_call_operand.vmem [shape: f32[1,128], index: 7, kind: input, shape index: {}]
  %s8 = inlined_call_operand.vmem [shape: bf16[2,256,128], index: 8, kind: output, shape index: {0}]
  %s9 = inlined_call_operand.vmem [shape: bf16[2,256,128], index: 9, kind: output, shape index: {1}]
  %s10 = inlined_call_operand.vmem [shape: bf16[2,256,128], index: 10, kind: output, shape index: {2}]
  %11 = xla_tuple %s8, %s9, %s10
  %s12 = sld [smem:[#allocation0]]
  $region85: #{attn_block.4} parent=0
    _
  %s14 = ssub.s32 1, %s12
  %s15 = scalar_select 0, %s14, %s12
  $region1: #{attn_block.4} parent=0
    #allocation2 [shape = 'u8[262144]{0}', space=vmem, size = 0x40000, scoped, tag = 'input window, operand 0']
    #allocation3 [shape = 's32[2]{0}', space=sflag, size = 0x8, scoped, tag = 'scoped memory for attn_block.4']
    %16 = vsyncpa [#allocation3], 0
    %s17 = scalar_lea.sflag [#allocation3], 1
    %18 = vsyncpa %s17, 0
    loop: start=0, step=1, limit=4
    $region2: #{attn_block.4} parent=1 // loop_pre_header
      _
    $region3: #{attn_block.4} parent=1 // loop_header
      %s20 = sphi 0, %s24
      %p21 = scmp.ge.s32.totalorder %s20, 4
      %s27 = sphi 0, %s39
      %s28 = sphi 0, %s35
      %s29 = sphi 0, %s27
      %s30 = sphi 0, %s28
      %s31 = sphi 0, %s29
      %s32 = sphi 0, %s30
      %s44 = sphi 0, %s46
      %s47 = sphi 0, %s44
      %s48 = sphi 0, %s47
      %s64 = sphi 0, %s48
      %s70 = sphi 0, %s72
      %s73 = sphi 0, %s70
      %s74 = sphi 0, %s73
      %s90 = sphi 0, %s74
      %s94 = sphi 0, %s94
      %s96 = sphi 0, %s94
      %s97 = sphi 0, %s96
      %s111 = sphi 0, %s97
      %s115 = sphi 0, %s115
      %s117 = sphi 0, %s115
      %s118 = sphi 0, %s117
      %s132 = sphi 0, %s118
      %s136 = sphi 0, %s136
      %s138 = sphi 0, %s136
      %s139 = sphi 0, %s138
      %s153 = sphi 0, %s139
      %s157 = sphi 0, %s157
      %s159 = sphi 0, %s157
      %s160 = sphi 0, %s159
      %s174 = sphi 0, %s160
      %s178 = sphi 0, %s178
      %s180 = sphi 0, %s178
      %s181 = sphi 0, %s180
      %s195 = sphi 0, %s181
      %s199 = sphi 0, %s199
      %s201 = sphi 0, %s199
      %s202 = sphi 0, %s201
      %s216 = sphi 0, %s202
      %s224 = sphi 0, %s226
      %s227 = sphi 0, %s224
      %s228 = sphi 0, %s227
      %s244 = sphi 0, %s228
      %s252 = sphi 0, %s254
      %s255 = sphi 0, %s252
      %s256 = sphi 0, %s255
      %s272 = sphi 0, %s256
      %s280 = sphi 0, %s282
      %s283 = sphi 0, %s280
      %s284 = sphi 0, %s283
      %s300 = sphi 0, %s284
    $region4: #{attn_block.4} parent=1 // loop_header_branch
      %23 = sbr.rel (%p21) target = $region8
    $region5: #{attn_block.4} parent=1 // loop_body
      %s25 = ssub.s32 %s20, 1
      %s26 = ssub.s32 %s20, 2
      %s33 = sadd.s32 1, %s28
      %p34 = scmp.ge.s32.totalorder %s33, 1
      %s35 = scalar_select %p34, 0, %s33
      %s36 = sadd.s32 1, %s27
      %s37 = scalar_select %p34, %s36, %s27
      %p38 = scmp.ge.s32.totalorder %s37, 2
      %s39 = scalar_select %p38, 0, %s37
      %s40 = ssub.s32 %s27, %s39
      %s41 = ssub.s32 %s28, %s35
      %s42 = sor.u32 %s40, %s41
      %p43 = scmp.eq.s32.totalorder %s42, 0
      %s45 = sadd.s32 %s44, 1
      %s46 = scalar_select %p43, %s44, %s45
      %p49 = pneg %p43
      %p50 = scmp.eq.s32.totalorder %s20, 1
      %p51 = por %p49, %p50
      %p52 = scmp.ne.s32.totalorder %s44, %s47
      %p53 = scmp.eq.s32.totalorder %s20, 0
      %p54 = por %p52, %p53
      %p55 = scmp.ne.s32.totalorder %s44, %s47
      %p56 = scmp.eq.s32.totalorder %s25, 1
      %p57 = por %p55, %p56
      %p58 = scmp.ne.s32.totalorder %s47, %s48
      %p59 = scmp.eq.s32.totalorder %s25, 0
      %p60 = por %p58, %p59
      %p61 = scmp.ne.s32.totalorder %s47, %s48
      %p62 = scmp.eq.s32.totalorder %s26, 1
      %p63 = por %p61, %p62
      %p65 = scmp.ne.s32.totalorder %s48, %s64
      %p66 = scmp.eq.s32.totalorder %s26, 0
      %p67 = por %p65, %p66
      %s68 = ssub.s32 %s27, %s39
      %p69 = scmp.eq.s32.totalorder %s68, 0
      %s71 = sadd.s32 %s70, 1
      %s72 = scalar_select %p69, %s70, %s71
      %p75 = pneg %p69
      %p76 = scmp.eq.s32.totalorder %s20, 1
      %p77 = por %p75, %p76
      %p78 = scmp.ne.s32.totalorder %s70, %s73
      %p79 = scmp.eq.s32.totalorder %s20, 0
      %p80 = por %p78, %p79
      %p81 = scmp.ne.s32.totalorder %s70, %s73
      %p82 = scmp.eq.s32.totalorder %s25, 1
      %p83 = por %p81, %p82
      %p84 = scmp.ne.s32.totalorder %s73, %s74
      %p85 = scmp.eq.s32.totalorder %s25, 0
      %p86 = por %p84, %p85
      %p87 = scmp.ne.s32.totalorder %s73, %s74
      %p88 = scmp.eq.s32.totalorder %s26, 1
      %p89 = por %p87, %p88
      %p91 = scmp.ne.s32.totalorder %s74, %s90
      %p92 = scmp.eq.s32.totalorder %s26, 0
      %p93 = por %p91, %p92
      %s95 = sadd.s32 %s94, 1
      %p98 = scmp.eq.s32.totalorder %s20, 1
      %p99 = scmp.ne.s32.totalorder %s94, %s96
      %p100 = scmp.eq.s32.totalorder %s20, 0
      %p101 = por %p99, %p100
      %p102 = scmp.ne.s32.totalorder %s94, %s96
      %p103 = scmp.eq.s32.totalorder %s25, 1
      %p104 = por %p102, %p103
      %p105 = scmp.ne.s32.totalorder %s96, %s97
      %p106 = scmp.eq.s32.totalorder %s25, 0
      %p107 = por %p105, %p106
      %p108 = scmp.ne.s32.totalorder %s96, %s97
      %p109 = scmp.eq.s32.totalorder %s26, 1
      %p110 = por %p108, %p109
      %p112 = scmp.ne.s32.totalorder %s97, %s111
      %p113 = scmp.eq.s32.totalorder %s26, 0
      %p114 = por %p112, %p113
      %s116 = sadd.s32 %s115, 1
      %p119 = scmp.eq.s32.totalorder %s20, 1
      %p120 = scmp.ne.s32.totalorder %s115, %s117
      %p121 = scmp.eq.s32.totalorder %s20, 0
      %p122 = por %p120, %p121
      %p123 = scmp.ne.s32.totalorder %s115, %s117
      %p124 = scmp.eq.s32.totalorder %s25, 1
      %p125 = por %p123, %p124
      %p126 = scmp.ne.s32.totalorder %s117, %s118
      %p127 = scmp.eq.s32.totalorder %s25, 0
      %p128 = por %p126, %p127
      %p129 = scmp.ne.s32.totalorder %s117, %s118
      %p130 = scmp.eq.s32.totalorder %s26, 1
      %p131 = por %p129, %p130
      %p133 = scmp.ne.s32.totalorder %s118, %s132
      %p134 = scmp.eq.s32.totalorder %s26, 0
      %p135 = por %p133, %p134
      %s137 = sadd.s32 %s136, 1
      %p140 = scmp.eq.s32.totalorder %s20, 1
      %p141 = scmp.ne.s32.totalorder %s136, %s138
      %p142 = scmp.eq.s32.totalorder %s20, 0
      %p143 = por %p141, %p142
      %p144 = scmp.ne.s32.totalorder %s136, %s138
      %p145 = scmp.eq.s32.totalorder %s25, 1
      %p146 = por %p144, %p145
      %p147 = scmp.ne.s32.totalorder %s138, %s139
      %p148 = scmp.eq.s32.totalorder %s25, 0
      %p149 = por %p147, %p148
      %p150 = scmp.ne.s32.totalorder %s138, %s139
      %p151 = scmp.eq.s32.totalorder %s26, 1
      %p152 = por %p150, %p151
      %p154 = scmp.ne.s32.totalorder %s139, %s153
      %p155 = scmp.eq.s32.totalorder %s26, 0
      %p156 = por %p154, %p155
      %s158 = sadd.s32 %s157, 1
      %p161 = scmp.eq.s32.totalorder %s20, 1
      %p162 = scmp.ne.s32.totalorder %s157, %s159
      %p163 = scmp.eq.s32.totalorder %s20, 0
      %p164 = por %p162, %p163
      %p165 = scmp.ne.s32.totalorder %s157, %s159
      %p166 = scmp.eq.s32.totalorder %s25, 1
      %p167 = por %p165, %p166
      %p168 = scmp.ne.s32.totalorder %s159, %s160
      %p169 = scmp.eq.s32.totalorder %s25, 0
      %p170 = por %p168, %p169
      %p171 = scmp.ne.s32.totalorder %s159, %s160
      %p172 = scmp.eq.s32.totalorder %s26, 1
      %p173 = por %p171, %p172
      %p175 = scmp.ne.s32.totalorder %s160, %s174
      %p176 = scmp.eq.s32.totalorder %s26, 0
      %p177 = por %p175, %p176
      %s179 = sadd.s32 %s178, 1
      %p182 = scmp.eq.s32.totalorder %s20, 1
      %p183 = scmp.ne.s32.totalorder %s178, %s180
      %p184 = scmp.eq.s32.totalorder %s20, 0
      %p185 = por %p183, %p184
      %p186 = scmp.ne.s32.totalorder %s178, %s180
      %p187 = scmp.eq.s32.totalorder %s25, 1
      %p188 = por %p186, %p187
      %p189 = scmp.ne.s32.totalorder %s180, %s181
      %p190 = scmp.eq.s32.totalorder %s25, 0
      %p191 = por %p189, %p190
      %p192 = scmp.ne.s32.totalorder %s180, %s181
      %p193 = scmp.eq.s32.totalorder %s26, 1
      %p194 = por %p192, %p193
      %p196 = scmp.ne.s32.totalorder %s181, %s195
      %p197 = scmp.eq.s32.totalorder %s26, 0
      %p198 = por %p196, %p197
      %s200 = sadd.s32 %s199, 1
      %p203 = scmp.eq.s32.totalorder %s20, 1
      %p204 = scmp.ne.s32.totalorder %s199, %s201
      %p205 = scmp.eq.s32.totalorder %s20, 0
      %p206 = por %p204, %p205
      %p207 = scmp.ne.s32.totalorder %s199, %s201
      %p208 = scmp.eq.s32.totalorder %s25, 1
      %p209 = por %p207, %p208
      %p210 = scmp.ne.s32.totalorder %s201, %s202
      %p211 = scmp.eq.s32.totalorder %s25, 0
      %p212 = por %p210, %p211
      %p213 = scmp.ne.s32.totalorder %s201, %s202
      %p214 = scmp.eq.s32.totalorder %s26, 1
      %p215 = por %p213, %p214
      %p217 = scmp.ne.s32.totalorder %s202, %s216
      %p218 = scmp.eq.s32.totalorder %s26, 0
      %p219 = por %p217, %p218
      %s220 = ssub.s32 %s27, %s39
      %s221 = ssub.s32 %s28, %s35
      %s222 = sor.u32 %s220, %s221
      %p223 = scmp.eq.s32.totalorder %s222, 0
      %s225 = sadd.s32 %s224, 1
      %s226 = scalar_select %p223, %s224, %s225
      %p229 = pneg %p223
      %p230 = scmp.eq.s32.totalorder %s20, 1
      %p231 = por %p229, %p230
      %p232 = scmp.ne.s32.totalorder %s224, %s227
      %p233 = scmp.eq.s32.totalorder %s20, 0
      %p234 = por %p232, %p233
      %p235 = scmp.ne.s32.totalorder %s224, %s227
      %p236 = scmp.eq.s32.totalorder %s25, 1
      %p237 = por %p235, %p236
      %p238 = scmp.ne.s32.totalorder %s227, %s228
      %p239 = scmp.eq.s32.totalorder %s25, 0
      %p240 = por %p238, %p239
      %p241 = scmp.ne.s32.totalorder %s227, %s228
      %p242 = scmp.eq.s32.totalorder %s26, 1
      %p243 = por %p241, %p242
      %p245 = scmp.ne.s32.totalorder %s228, %s244
      %p246 = scmp.eq.s32.totalorder %s26, 0
      %p247 = por %p245, %p246
      %s248 = ssub.s32 %s27, %s39
      %s249 = ssub.s32 %s28, %s35
      %s250 = sor.u32 %s248, %s249
      %p251 = scmp.eq.s32.totalorder %s250, 0
      %s253 = sadd.s32 %s252, 1
      %s254 = scalar_select %p251, %s252, %s253
      %p257 = pneg %p251
      %p258 = scmp.eq.s32.totalorder %s20, 1
      %p259 = por %p257, %p258
      %p260 = scmp.ne.s32.totalorder %s252, %s255
      %p261 = scmp.eq.s32.totalorder %s20, 0
      %p262 = por %p260, %p261
      %p263 = scmp.ne.s32.totalorder %s252, %s255
      %p264 = scmp.eq.s32.totalorder %s25, 1
      %p265 = por %p263, %p264
      %p266 = scmp.ne.s32.totalorder %s255, %s256
      %p267 = scmp.eq.s32.totalorder %s25, 0
      %p268 = por %p266, %p267
      %p269 = scmp.ne.s32.totalorder %s255, %s256
      %p270 = scmp.eq.s32.totalorder %s26, 1
      %p271 = por %p269, %p270
      %p273 = scmp.ne.s32.totalorder %s256, %s272
      %p274 = scmp.eq.s32.totalorder %s26, 0
      %p275 = por %p273, %p274
      %s276 = ssub.s32 %s27, %s39
      %s277 = ssub.s32 %s28, %s35
      %s278 = sor.u32 %s276, %s277
      %p279 = scmp.eq.s32.totalorder %s278, 0
      %s281 = sadd.s32 %s280, 1
      %s282 = scalar_select %p279, %s280, %s281
      %p285 = pneg %p279
      %p286 = scmp.eq.s32.totalorder %s20, 1
      %p287 = por %p285, %p286
      %p288 = scmp.ne.s32.totalorder %s280, %s283
      %p289 = scmp.eq.s32.totalorder %s20, 0
      %p290 = por %p288, %p289
      %p291 = scmp.ne.s32.totalorder %s280, %s283
      %p292 = scmp.eq.s32.totalorder %s25, 1
      %p293 = por %p291, %p292
      %p294 = scmp.ne.s32.totalorder %s283, %s284
      %p295 = scmp.eq.s32.totalorder %s25, 0
      %p296 = por %p294, %p295
      %p297 = scmp.ne.s32.totalorder %s283, %s284
      %p298 = scmp.eq.s32.totalorder %s26, 1
      %p299 = por %p297, %p298
      %p301 = scmp.ne.s32.totalorder %s284, %s300
      %p302 = scmp.eq.s32.totalorder %s26, 0
      %p303 = por %p301, %p302
      %p304 = scmp.le.s32.totalorder 1, %s20
      %p305 = scmp.lt.s32.totalorder %s20, 3
      %p306 = pnand %p304, %p305
      %p307 = pneg %p306
      // Predicated region
      $region9: #{attn_block.4} parent=5 // pred_check
        _
      $region10: #{attn_block.4} parent=5 // pred_check_branch
        %309 = sbr.rel (%p306) target = $region12
      $region11: #{attn_block.4} parent=5 // pred_region
        %s310 = ssub.s32 %s20, 1
        // Predicated region
        $region13: #{attn_block.4} parent=11 // pred_check
          %p311 = pneg %p107
        $region14: #{attn_block.4} parent=11 // pred_check_branch
          %313 = sbr.rel (%p311) target = $region16
        $region15: #{attn_block.4} parent=11 // pred_region
          _
        $region16: #{attn_block.4} parent=11 // pred_fallthru
          _
        // Predicated region
        $region17: #{attn_block.4} parent=11 // pred_check
          %p314 = pneg %p128
        $region18: #{attn_block.4} parent=11 // pred_check_branch
          %316 = sbr.rel (%p314) target = $region20
        $region19: #{attn_block.4} parent=11 // pred_region
          _
        $region20: #{attn_block.4} parent=11 // pred_fallthru
          _
        // Predicated region
        $region21: #{attn_block.4} parent=11 // pred_check
          %p317 = pneg %p149
        $region22: #{attn_block.4} parent=11 // pred_check_branch
          %319 = sbr.rel (%p317) target = $region24
        $region23: #{attn_block.4} parent=11 // pred_region
          _
        $region24: #{attn_block.4} parent=11 // pred_fallthru
          _
        // Predicated region
        $region25: #{attn_block.4} parent=11 // pred_check
          %p320 = pneg %p170
        $region26: #{attn_block.4} parent=11 // pred_check_branch
          %322 = sbr.rel (%p320) target = $region28
        $region27: #{attn_block.4} parent=11 // pred_region
          _
        $region28: #{attn_block.4} parent=11 // pred_fallthru
          _
        // Predicated region
        $region29: #{attn_block.4} parent=11 // pred_check
          %p323 = pneg %p191
        $region30: #{attn_block.4} parent=11 // pred_check_branch
          %325 = sbr.rel (%p323) target = $region32
        $region31: #{attn_block.4} parent=11 // pred_region
          _
        $region32: #{attn_block.4} parent=11 // pred_fallthru
          _
        // Predicated region
        $region33: #{attn_block.4} parent=11 // pred_check
          %p326 = pneg %p212
        $region34: #{attn_block.4} parent=11 // pred_check_branch
          %328 = sbr.rel (%p326) target = $region36
        $region35: #{attn_block.4} parent=11 // pred_region
          _
        $region36: #{attn_block.4} parent=11 // pred_fallthru
          _
      $region12: #{attn_block.4} parent=5 // pred_fallthru
        _
      %p329 = scmp.lt.s32.totalorder %s20, 2
      // Predicated region
      $region37: #{attn_block.4} parent=5 // pred_check
        %p330 = pneg %p329
      $region38: #{attn_block.4} parent=5 // pred_check_branch
        %332 = sbr.rel (%p330) target = $region40
      $region39: #{attn_block.4} parent=5 // pred_region
        // Predicated region
        $region41: #{attn_block.4} parent=39 // pred_check
          %p333 = pneg %p54
        $region42: #{attn_block.4} parent=39 // pred_check_branch
          %335 = sbr.rel (%p333) target = $region44
        $region43: #{attn_block.4} parent=39 // pred_region
          %s336 = sand.u32 %s44, 1
          %s337 = scalar_lea.sflag [#allocation3], %s336
          %s338 = sand.u32 %s44, 1
          %s339 = smul.addr %s338, 256
          %s340 = scalar_lea.vmem [#allocation2], %s339
          %s341 = smul.u32 32, %s28
          %343 = vsyncadd %s337, 0
          %s344 = smul.addr %s27, 32
          %s345 = sadd.s32 %s341, %s344
          %s346 = smul.addr %s345, 8
          %s347 = scalar_lea.hbm %s0, %s346
          %s348 = sshll.u32 %s347, 4
          %s349 = int_to_ptr.hbm [resolvable:$true] %s348
          %s350 = sshll.u32 %s340, 4
          %s351 = int_to_ptr.vmem [resolvable:$true] %s350
          %356 = dma.hbm_to_vmem [thread:$0]  %s349, 4096, %s351, %s337, 128, 128, 8
        $region44: #{attn_block.4} parent=39 // pred_fallthru
          _
        // Predicated region
        $region45: #{attn_block.4} parent=39 // pred_check
          %p357 = pneg %p80
        $region46: #{attn_block.4} parent=39 // pred_check_branch
          %359 = sbr.rel (%p357) target = $region48
        $region47: #{attn_block.4} parent=39 // pred_region
          %p360 = scmp.lt.s32.totalorder %s27, 1
          %s361 = scalar_select %p360, %s27, 1
          %s362 = smul.addr %s361, 2
          %s363 = scalar_lea.vmem %s1, %s362
        $region48: #{attn_block.4} parent=39 // pred_fallthru
          _
      $region40: #{attn_block.4} parent=5 // pred_fallthru
        _
      %p364 = scmp.le.s32.totalorder 1, %s20
      %p365 = scmp.lt.s32.totalorder %s20, 3
      %p366 = pnand %p364, %p365
      %p367 = pneg %p366
      // Predicated region
      $region49: #{attn_block.4} parent=5 // pred_check
        _
      $region50: #{attn_block.4} parent=5 // pred_check_branch
        %369 = sbr.rel (%p366) target = $region52
      $region51: #{attn_block.4} parent=5 // pred_region
        %s370 = ssub.s32 %s20, 1
        %s371 = sand.u32 %s47, 1
        %s372 = scalar_lea.sflag [#allocation3], %s371
        %s373 = sand.u32 %s47, 1
        %s374 = smul.addr %s373, 256
        %s375 = scalar_lea.vmem [#allocation2], %s374
        // Predicated region
        $region53: #{attn_block.4} parent=51 // pred_check
          %p376 = pneg %p60
        $region54: #{attn_block.4} parent=51 // pred_check_branch
          %378 = sbr.rel (%p376) target = $region56
        $region55: #{attn_block.4} parent=51 // pred_region
          %380 = dma.done %s372, 4096
        $region56: #{attn_block.4} parent=51 // pred_fallthru
          _
        %s381 = sand.u32 %s47, 1
        %s382 = scalar_lea.sflag [#allocation3], %s381
        %s383 = sand.u32 %s47, 1
        %s384 = smul.addr %s383, 256
        %s385 = scalar_lea.vmem [#allocation2], %s384
        %p386 = pneg %p60
        %p387 = pneg %p57
        %p388 = scmp.lt.s32.totalorder %s29, 1
        %s389 = scalar_select %p388, %s29, 1
        %s390 = smul.addr %s389, 2
        %s391 = scalar_lea.vmem %s1, %s390
        %p392 = pneg %p86
        %p393 = pneg %p83
        %p394 = pneg %p107
        %p395 = pneg %p104
        %p396 = pneg %p128
        %p397 = pneg %p125
        %p398 = pneg %p149
        %p399 = pneg %p146
        %p400 = pneg %p170
        %p401 = pneg %p167
        %p402 = pneg %p191
        %p403 = pneg %p188
        %p404 = pneg %p212
        %p405 = pneg %p209
        %p406 = pneg %p240
        %p407 = pneg %p237
        %s408 = smul.u32 32, %s30
        %p409 = scmp.lt.s32.totalorder %s29, 1
        %s410 = scalar_select %p409, %s29, 1
        %p411 = scmp.lt.s32.totalorder %s408, 31
        %s412 = scalar_select %p411, %s408, 31
        %s413 = smul.addr %s410, 32
        %s414 = sadd.s32 %s412, %s413
        %s415 = smul.addr %s414, 4
        %s416 = scalar_lea.vmem %s8, %s415
        %p417 = pneg %p268
        %p418 = pneg %p265
        %s419 = smul.u32 32, %s30
        %p420 = scmp.lt.s32.totalorder %s29, 1
        %s421 = scalar_select %p420, %s29, 1
        %p422 = scmp.lt.s32.totalorder %s419, 31
        %s423 = scalar_select %p422, %s419, 31
        %s424 = smul.addr %s421, 32
        %s425 = sadd.s32 %s423, %s424
        %s426 = smul.addr %s425, 4
        %s427 = scalar_lea.vmem %s9, %s426
        %p428 = pneg %p296
        %p429 = pneg %p293
        %s430 = smul.u32 32, %s30
        %p431 = scmp.lt.s32.totalorder %s29, 1
        %s432 = scalar_select %p431, %s29, 1
        %p433 = scmp.lt.s32.totalorder %s430, 31
        %s434 = scalar_select %p433, %s430, 31
        %s435 = smul.addr %s432, 32
        %s436 = sadd.s32 %s434, %s435
        %s437 = smul.addr %s436, 4
        %s438 = scalar_lea.vmem %s10, %s437
        %s439 = smul.u32 32, %s30
        %p440 = scmp.lt.s32.totalorder %s29, 1
        %s441 = scalar_select %p440, %s29, 1
        %s442 = smul.addr %s441, 2
        %s443 = scalar_lea.vmem %s1, %s442
        %s444 = smul.u32 32, %s30
        %p445 = scmp.lt.s32.totalorder %s29, 1
        %s446 = scalar_select %p445, %s29, 1
        %p447 = scmp.lt.s32.totalorder %s444, 31
        %s448 = scalar_select %p447, %s444, 31
        %s449 = smul.addr %s446, 32
        %s450 = sadd.s32 %s448, %s449
        %s451 = smul.addr %s450, 4
        %s452 = scalar_lea.vmem %s8, %s451
        %s453 = smul.u32 32, %s30
        %s454 = smul.u32 32, %s30
        %p455 = scmp.lt.s32.totalorder %s29, 1
        %s456 = scalar_select %p455, %s29, 1
        %p457 = scmp.lt.s32.totalorder %s454, 31
        %s458 = scalar_select %p457, %s454, 31
        %s459 = smul.addr %s456, 32
        %s460 = sadd.s32 %s458, %s459
        %s461 = smul.addr %s460, 4
        %s462 = scalar_lea.vmem %s9, %s461
        %s463 = smul.u32 32, %s30
        %s464 = smul.u32 32, %s30
        %p465 = scmp.lt.s32.totalorder %s29, 1
        %s466 = scalar_select %p465, %s29, 1
        %p467 = scmp.lt.s32.totalorder %s464, 31
        %s468 = scalar_select %p467, %s464, 31
        %s469 = smul.addr %s466, 32
        %s470 = sadd.s32 %s468, %s469
        %s471 = smul.addr %s470, 4
        %s472 = scalar_lea.vmem %s10, %s471
        %s473 = smul.u32 32, %s30
        %v474 = vld [vmem:[%s375] sm:$0xff]
        %v475 = vld [vmem:[%s375 + $0x8] sm:$0xff]
        %v476 = vld [vmem:[%s375 + $0x10] sm:$0xff]
        %v477 = vld [vmem:[%s375 + $0x18] sm:$0xff]
        %v478 = vld [vmem:[%s375 + $0x20] sm:$0xff]
        %v479 = vld [vmem:[%s375 + $0x28] sm:$0xff]
        %v480 = vld [vmem:[%s375 + $0x30] sm:$0xff]
        %v481 = vld [vmem:[%s375 + $0x38] sm:$0xff]
        %v482 = vld [vmem:[%s375 + $0x40] sm:$0xff]
        %v483 = vld [vmem:[%s375 + $0x48] sm:$0xff]
        %v484 = vld [vmem:[%s375 + $0x50] sm:$0xff]
        %v485 = vld [vmem:[%s375 + $0x58] sm:$0xff]
        %v486 = vld [vmem:[%s375 + $0x60] sm:$0xff]
        %v487 = vld [vmem:[%s375 + $0x68] sm:$0xff]
        %v488 = vld [vmem:[%s375 + $0x70] sm:$0xff]
        %v489 = vld [vmem:[%s375 + $0x78] sm:$0xff]
        %v490 = vld [vmem:[%s375 + $0x80] sm:$0xff]
        %v491 = vld [vmem:[%s375 + $0x88] sm:$0xff]
        %v492 = vld [vmem:[%s375 + $0x90] sm:$0xff]
        %v493 = vld [vmem:[%s375 + $0x98] sm:$0xff]
        %v494 = vld [vmem:[%s375 + $0xa0] sm:$0xff]
        %v495 = vld [vmem:[%s375 + $0xa8] sm:$0xff]
        %v496 = vld [vmem:[%s375 + $0xb0] sm:$0xff]
        %v497 = vld [vmem:[%s375 + $0xb8] sm:$0xff]
        %v498 = vld [vmem:[%s375 + $0xc0] sm:$0xff]
        %v499 = vld [vmem:[%s375 + $0xc8] sm:$0xff]
        %v500 = vld [vmem:[%s375 + $0xd0] sm:$0xff]
        %v501 = vld [vmem:[%s375 + $0xd8] sm:$0xff]
        %v502 = vld [vmem:[%s375 + $0xe0] sm:$0xff]
        %v503 = vld [vmem:[%s375 + $0xe8] sm:$0xff]
        %v504 = vld [vmem:[%s375 + $0xf0] sm:$0xff]
        %v505 = vld [vmem:[%s375 + $0xf8] sm:$0xff]
        %v506 = vld [vmem:[%s443] sm:$0x1]
        %v507 = vld [vmem:[%s443 + $0x1] sm:$0x1]
        %v508 = vperm.slane %v506, 0
        %v509 = vmul.f32 %v474, %v508
        %v510 = vmul.f32 %v475, %v508
        %v511 = vmul.f32 %v476, %v508
        %v512 = vmul.f32 %v477, %v508
        %v513 = vmul.f32 %v478, %v508
        %v514 = vmul.f32 %v479, %v508
        %v515 = vmul.f32 %v480, %v508
        %v516 = vmul.f32 %v481, %v508
        %v517 = vmul.f32 %v482, %v508
        %v518 = vmul.f32 %v483, %v508
        %v519 = vmul.f32 %v484, %v508
        %v520 = vmul.f32 %v485, %v508
        %v521 = vmul.f32 %v486, %v508
        %v522 = vmul.f32 %v487, %v508
        %v523 = vmul.f32 %v488, %v508
        %v524 = vmul.f32 %v489, %v508
        %v525 = vmul.f32 %v490, %v508
        %v526 = vmul.f32 %v491, %v508
        %v527 = vmul.f32 %v492, %v508
        %v528 = vmul.f32 %v493, %v508
        %v529 = vmul.f32 %v494, %v508
        %v530 = vmul.f32 %v495, %v508
        %v531 = vmul.f32 %v496, %v508
        %v532 = vmul.f32 %v497, %v508
        %v533 = vmul.f32 %v498, %v508
        %v534 = vmul.f32 %v499, %v508
        %v535 = vmul.f32 %v500, %v508
        %v536 = vmul.f32 %v501, %v508
        %v537 = vmul.f32 %v502, %v508
        %v538 = vmul.f32 %v503, %v508
        %v539 = vmul.f32 %v504, %v508
        %v540 = vmul.f32 %v505, %v508
        %v541 = vperm.slane %v507, 0
        %v542 = vadd.f32 %v509, %v541
        %v543 = vadd.f32 %v510, %v541
        %v544 = vadd.f32 %v511, %v541
        %v545 = vadd.f32 %v512, %v541
        %v546 = vadd.f32 %v513, %v541
        %v547 = vadd.f32 %v514, %v541
        %v548 = vadd.f32 %v515, %v541
        %v549 = vadd.f32 %v516, %v541
        %v550 = vadd.f32 %v517, %v541
        %v551 = vadd.f32 %v518, %v541
        %v552 = vadd.f32 %v519, %v541
        %v553 = vadd.f32 %v520, %v541
        %v554 = vadd.f32 %v521, %v541
        %v555 = vadd.f32 %v522, %v541
        %v556 = vadd.f32 %v523, %v541
        %v557 = vadd.f32 %v524, %v541
        %v558 = vadd.f32 %v525, %v541
        %v559 = vadd.f32 %v526, %v541
        %v560 = vadd.f32 %v527, %v541
        %v561 = vadd.f32 %v528, %v541
        %v562 = vadd.f32 %v529, %v541
        %v563 = vadd.f32 %v530, %v541
        %v564 = vadd.f32 %v531, %v541
        %v565 = vadd.f32 %v532, %v541
        %v566 = vadd.f32 %v533, %v541
        %v567 = vadd.f32 %v534, %v541
        %v568 = vadd.f32 %v535, %v541
        %v569 = vadd.f32 %v536, %v541
        %v570 = vadd.f32 %v537, %v541
        %v571 = vadd.f32 %v538, %v541
        %v572 = vadd.f32 %v539, %v541
        %v573 = vadd.f32 %v540, %v541
        %v574 = vpack.c.bf16 %v543, %v542
        %v575 = vpack.c.bf16 %v545, %v544
        %v576 = vpack.c.bf16 %v547, %v546
        %v577 = vpack.c.bf16 %v549, %v548
        %v578 = vpack.c.bf16 %v551, %v550
        %v579 = vpack.c.bf16 %v553, %v552
        %v580 = vpack.c.bf16 %v555, %v554
        %v581 = vpack.c.bf16 %v557, %v556
        %v582 = vpack.c.bf16 %v559, %v558
        %v583 = vpack.c.bf16 %v561, %v560
        %v584 = vpack.c.bf16 %v563, %v562
        %v585 = vpack.c.bf16 %v565, %v564
        %v586 = vpack.c.bf16 %v567, %v566
        %v587 = vpack.c.bf16 %v569, %v568
        %v588 = vpack.c.bf16 %v571, %v570
        %v589 = vpack.c.bf16 %v573, %v572
        %v590 = vld [vmem:[%s2] sm:$0xf]
        %v591 = vld [vmem:[%s2 + $0x4] sm:$0xf]
        %v592 = vld [vmem:[%s2 + $0x8] sm:$0xf]
        %v593 = vld [vmem:[%s2 + $0xc] sm:$0xf]
        %v594 = vld [vmem:[%s2 + $0x10] sm:$0xf]
        %v595 = vld [vmem:[%s2 + $0x14] sm:$0xf]
        %v596 = vld [vmem:[%s2 + $0x18] sm:$0xf]
        %v597 = vld [vmem:[%s2 + $0x1c] sm:$0xf]
        %v598 = vld [vmem:[%s2 + $0x20] sm:$0xf]
        %v599 = vld [vmem:[%s2 + $0x24] sm:$0xf]
        %v600 = vld [vmem:[%s2 + $0x28] sm:$0xf]
        %v601 = vld [vmem:[%s2 + $0x2c] sm:$0xf]
        %v602 = vld [vmem:[%s2 + $0x30] sm:$0xf]
        %v603 = vld [vmem:[%s2 + $0x34] sm:$0xf]
        %v604 = vld [vmem:[%s2 + $0x38] sm:$0xf]
        %v605 = vld [vmem:[%s2 + $0x3c] sm:$0xf]
        %v606 = vld [vmem:[%s3] sm:$0x1]
        %v608 = vperm.slane %v606, 0
        %v626 = vunpack.c.l.b16 %v590
        %v627 = vunpack.c.l.b16 %v591
        %v628 = vunpack.c.l.b16 %v592
        %v629 = vunpack.c.l.b16 %v593
        %v630 = vunpack.c.l.b16 %v594
        %v631 = vunpack.c.l.b16 %v595
        %v632 = vunpack.c.l.b16 %v596
        %v633 = vunpack.c.l.b16 %v597
        %v634 = vunpack.c.l.b16 %v598
        %v635 = vunpack.c.l.b16 %v599
        %v636 = vunpack.c.l.b16 %v600
        %v637 = vunpack.c.l.b16 %v601
        %v638 = vunpack.c.l.b16 %v602
        %v639 = vunpack.c.l.b16 %v603
        %v640 = vunpack.c.l.b16 %v604
        %v641 = vunpack.c.l.b16 %v605
        %v642 = vpack.c.b16 %v627, %v626
        %v643 = vpack.c.b16 %v629, %v628
        %v644 = vpack.c.b16 %v631, %v630
        %v645 = vpack.c.b16 %v633, %v632
        %v646 = vpack.c.b16 %v635, %v634
        %v647 = vpack.c.b16 %v637, %v636
        %v648 = vpack.c.b16 %v639, %v638
        %v649 = vpack.c.b16 %v641, %v640
        %658 = vmatpush.bf16.msra.mxu0 %v649
        %659 = vmatpush.bf16.msra.mxu0 %v648
        %660 = vmatpush.bf16.msra.mxu0 %v647
        %661 = vmatpush.bf16.msra.mxu0 %v646
        %662 = vmatpush.bf16.msra.mxu0 %v645
        %663 = vmatpush.bf16.msra.mxu0 %v644
        %664 = vmatpush.bf16.msra.mxu0 %v643
        %665 = vmatpush.bf16.msra.mxu0 %v642
        %666 = vmatmul.bf16.gmra.mxu0 %v574
        %v667 = vpop.f32.mrf.mxu0
        %v668 = vadd.f32 %v608, %v667
        %v669 = vpop.f32.mrf.mxu0
        %v670 = vadd.f32 %v608, %v669
        %671 = vmatmul.bf16.gmra.mxu0 %v575
        %v672 = vpop.f32.mrf.mxu0
        %v673 = vadd.f32 %v608, %v672
        %v674 = vpop.f32.mrf.mxu0
        %v675 = vadd.f32 %v608, %v674
        %676 = vmatmul.bf16.gmra.mxu0 %v576
        %v677 = vpop.f32.mrf.mxu0
        %v678 = vadd.f32 %v608, %v677
        %v679 = vpop.f32.mrf.mxu0
        %v680 = vadd.f32 %v608, %v679
        %681 = vmatmul.bf16.gmra.mxu0 %v577
        %v682 = vpop.f32.mrf.mxu0
        %v683 = vadd.f32 %v608, %v682
        %v684 = vpop.f32.mrf.mxu0
        %v685 = vadd.f32 %v608, %v684
        %686 = vmatmul.bf16.gmra.mxu0 %v578
        %v687 = vpop.f32.mrf.mxu0
        %v688 = vadd.f32 %v608, %v687
        %v689 = vpop.f32.mrf.mxu0
        %v690 = vadd.f32 %v608, %v689
        %691 = vmatmul.bf16.gmra.mxu0 %v579
        %v692 = vpop.f32.mrf.mxu0
        %v693 = vadd.f32 %v608, %v692
        %v694 = vpop.f32.mrf.mxu0
        %v695 = vadd.f32 %v608, %v694
        %696 = vmatmul.bf16.gmra.mxu0 %v580
        %v697 = vpop.f32.mrf.mxu0
        %v698 = vadd.f32 %v608, %v697
        %v699 = vpop.f32.mrf.mxu0
        %v700 = vadd.f32 %v608, %v699
        %701 = vmatmul.bf16.gmra.mxu0 %v581
        %v702 = vpop.f32.mrf.mxu0
        %v703 = vadd.f32 %v608, %v702
        %v704 = vpop.f32.mrf.mxu0
        %v705 = vadd.f32 %v608, %v704
        %706 = vmatmul.bf16.gmra.mxu0 %v582
        %v707 = vpop.f32.mrf.mxu0
        %v708 = vadd.f32 %v608, %v707
        %v709 = vpop.f32.mrf.mxu0
        %v710 = vadd.f32 %v608, %v709
        %711 = vmatmul.bf16.gmra.mxu0 %v583
        %v712 = vpop.f32.mrf.mxu0
        %v713 = vadd.f32 %v608, %v712
        %v714 = vpop.f32.mrf.mxu0
        %v715 = vadd.f32 %v608, %v714
        %716 = vmatmul.bf16.gmra.mxu0 %v584
        %v717 = vpop.f32.mrf.mxu0
        %v718 = vadd.f32 %v608, %v717
        %v719 = vpop.f32.mrf.mxu0
        %v720 = vadd.f32 %v608, %v719
        %721 = vmatmul.bf16.gmra.mxu0 %v585
        %v722 = vpop.f32.mrf.mxu0
        %v723 = vadd.f32 %v608, %v722
        %v724 = vpop.f32.mrf.mxu0
        %v725 = vadd.f32 %v608, %v724
        %726 = vmatmul.bf16.gmra.mxu0 %v586
        %v727 = vpop.f32.mrf.mxu0
        %v728 = vadd.f32 %v608, %v727
        %v729 = vpop.f32.mrf.mxu0
        %v730 = vadd.f32 %v608, %v729
        %731 = vmatmul.bf16.gmra.mxu0 %v587
        %v732 = vpop.f32.mrf.mxu0
        %v733 = vadd.f32 %v608, %v732
        %v734 = vpop.f32.mrf.mxu0
        %v735 = vadd.f32 %v608, %v734
        %736 = vmatmul.bf16.gmra.mxu0 %v588
        %v737 = vpop.f32.mrf.mxu0
        %v738 = vadd.f32 %v608, %v737
        %v739 = vpop.f32.mrf.mxu0
        %v740 = vadd.f32 %v608, %v739
        %741 = vmatmul.bf16.gmra.mxu0 %v589
        %v742 = vpop.f32.mrf.mxu0
        %v743 = vadd.f32 %v608, %v742
        %v744 = vpop.f32.mrf.mxu0
        %v745 = vadd.f32 %v608, %v744
        %746 = vdwg.mxu0
        %v747 = vld [vmem:[%s4] sm:$0xf]
        %v748 = vld [vmem:[%s4 + $0x4] sm:$0xf]
        %v749 = vld [vmem:[%s4 + $0x8] sm:$0xf]
        %v750 = vld [vmem:[%s4 + $0xc] sm:$0xf]
        %v751 = vld [vmem:[%s4 + $0x10] sm:$0xf]
        %v752 = vld [vmem:[%s4 + $0x14] sm:$0xf]
        %v753 = vld [vmem:[%s4 + $0x18] sm:$0xf]
        %v754 = vld [vmem:[%s4 + $0x1c] sm:$0xf]
        %v755 = vld [vmem:[%s4 + $0x20] sm:$0xf]
        %v756 = vld [vmem:[%s4 + $0x24] sm:$0xf]
        %v757 = vld [vmem:[%s4 + $0x28] sm:$0xf]
        %v758 = vld [vmem:[%s4 + $0x2c] sm:$0xf]
        %v759 = vld [vmem:[%s4 + $0x30] sm:$0xf]
        %v760 = vld [vmem:[%s4 + $0x34] sm:$0xf]
        %v761 = vld [vmem:[%s4 + $0x38] sm:$0xf]
        %v762 = vld [vmem:[%s4 + $0x3c] sm:$0xf]
        %v763 = vld [vmem:[%s5] sm:$0x1]
        %v765 = vperm.slane %v763, 0
        %v783 = vunpack.c.l.b16 %v747
        %v784 = vunpack.c.l.b16 %v748
        %v785 = vunpack.c.l.b16 %v749
        %v786 = vunpack.c.l.b16 %v750
        %v787 = vunpack.c.l.b16 %v751
        %v788 = vunpack.c.l.b16 %v752
        %v789 = vunpack.c.l.b16 %v753
        %v790 = vunpack.c.l.b16 %v754
        %v791 = vunpack.c.l.b16 %v755
        %v792 = vunpack.c.l.b16 %v756
        %v793 = vunpack.c.l.b16 %v757
        %v794 = vunpack.c.l.b16 %v758
        %v795 = vunpack.c.l.b16 %v759
        %v796 = vunpack.c.l.b16 %v760
        %v797 = vunpack.c.l.b16 %v761
        %v798 = vunpack.c.l.b16 %v762
        %v799 = vpack.c.b16 %v784, %v783
        %v800 = vpack.c.b16 %v786, %v785
        %v801 = vpack.c.b16 %v788, %v787
        %v802 = vpack.c.b16 %v790, %v789
        %v803 = vpack.c.b16 %v792, %v791
        %v804 = vpack.c.b16 %v794, %v793
        %v805 = vpack.c.b16 %v796, %v795
        %v806 = vpack.c.b16 %v798, %v797
        %815 = vmatpush.bf16.msra.mxu0 %v806
        %816 = vmatpush.bf16.msra.mxu0 %v805
        %817 = vmatpush.bf16.msra.mxu0 %v804
        %818 = vmatpush.bf16.msra.mxu0 %v803
        %819 = vmatpush.bf16.msra.mxu0 %v802
        %820 = vmatpush.bf16.msra.mxu0 %v801
        %821 = vmatpush.bf16.msra.mxu0 %v800
        %822 = vmatpush.bf16.msra.mxu0 %v799
        %823 = vmatmul.bf16.gmra.mxu0 %v574
        %v824 = vpop.f32.mrf.mxu0
        %v825 = vadd.f32 %v765, %v824
        %v826 = vpop.f32.mrf.mxu0
        %v827 = vadd.f32 %v765, %v826
        %828 = vmatmul.bf16.gmra.mxu0 %v575
        %v829 = vpop.f32.mrf.mxu0
        %v830 = vadd.f32 %v765, %v829
        %v831 = vpop.f32.mrf.mxu0
        %v832 = vadd.f32 %v765, %v831
        %833 = vmatmul.bf16.gmra.mxu0 %v576
        %v834 = vpop.f32.mrf.mxu0
        %v835 = vadd.f32 %v765, %v834
        %v836 = vpop.f32.mrf.mxu0
        %v837 = vadd.f32 %v765, %v836
        %838 = vmatmul.bf16.gmra.mxu0 %v577
        %v839 = vpop.f32.mrf.mxu0
        %v840 = vadd.f32 %v765, %v839
        %v841 = vpop.f32.mrf.mxu0
        %v842 = vadd.f32 %v765, %v841
        %843 = vmatmul.bf16.gmra.mxu0 %v578
        %v844 = vpop.f32.mrf.mxu0
        %v845 = vadd.f32 %v765, %v844
        %v846 = vpop.f32.mrf.mxu0
        %v847 = vadd.f32 %v765, %v846
        %848 = vmatmul.bf16.gmra.mxu0 %v579
        %v849 = vpop.f32.mrf.mxu0
        %v850 = vadd.f32 %v765, %v849
        %v851 = vpop.f32.mrf.mxu0
        %v852 = vadd.f32 %v765, %v851
        %853 = vmatmul.bf16.gmra.mxu0 %v580
        %v854 = vpop.f32.mrf.mxu0
        %v855 = vadd.f32 %v765, %v854
        %v856 = vpop.f32.mrf.mxu0
        %v857 = vadd.f32 %v765, %v856
        %858 = vmatmul.bf16.gmra.mxu0 %v581
        %v859 = vpop.f32.mrf.mxu0
        %v860 = vadd.f32 %v765, %v859
        %v861 = vpop.f32.mrf.mxu0
        %v862 = vadd.f32 %v765, %v861
        %863 = vmatmul.bf16.gmra.mxu0 %v582
        %v864 = vpop.f32.mrf.mxu0
        %v865 = vadd.f32 %v765, %v864
        %v866 = vpop.f32.mrf.mxu0
        %v867 = vadd.f32 %v765, %v866
        %868 = vmatmul.bf16.gmra.mxu0 %v583
        %v869 = vpop.f32.mrf.mxu0
        %v870 = vadd.f32 %v765, %v869
        %v871 = vpop.f32.mrf.mxu0
        %v872 = vadd.f32 %v765, %v871
        %873 = vmatmul.bf16.gmra.mxu0 %v584
        %v874 = vpop.f32.mrf.mxu0
        %v875 = vadd.f32 %v765, %v874
        %v876 = vpop.f32.mrf.mxu0
        %v877 = vadd.f32 %v765, %v876
        %878 = vmatmul.bf16.gmra.mxu0 %v585
        %v879 = vpop.f32.mrf.mxu0
        %v880 = vadd.f32 %v765, %v879
        %v881 = vpop.f32.mrf.mxu0
        %v882 = vadd.f32 %v765, %v881
        %883 = vmatmul.bf16.gmra.mxu0 %v586
        %v884 = vpop.f32.mrf.mxu0
        %v885 = vadd.f32 %v765, %v884
        %v886 = vpop.f32.mrf.mxu0
        %v887 = vadd.f32 %v765, %v886
        %888 = vmatmul.bf16.gmra.mxu0 %v587
        %v889 = vpop.f32.mrf.mxu0
        %v890 = vadd.f32 %v765, %v889
        %v891 = vpop.f32.mrf.mxu0
        %v892 = vadd.f32 %v765, %v891
        %893 = vmatmul.bf16.gmra.mxu0 %v588
        %v894 = vpop.f32.mrf.mxu0
        %v895 = vadd.f32 %v765, %v894
        %v896 = vpop.f32.mrf.mxu0
        %v897 = vadd.f32 %v765, %v896
        %898 = vmatmul.bf16.gmra.mxu0 %v589
        %v899 = vpop.f32.mrf.mxu0
        %v900 = vadd.f32 %v765, %v899
        %v901 = vpop.f32.mrf.mxu0
        %v902 = vadd.f32 %v765, %v901
        %903 = vdwg.mxu0
        %v904 = vld [vmem:[%s6] sm:$0xf]
        %v905 = vld [vmem:[%s6 + $0x4] sm:$0xf]
        %v906 = vld [vmem:[%s6 + $0x8] sm:$0xf]
        %v907 = vld [vmem:[%s6 + $0xc] sm:$0xf]
        %v908 = vld [vmem:[%s6 + $0x10] sm:$0xf]
        %v909 = vld [vmem:[%s6 + $0x14] sm:$0xf]
        %v910 = vld [vmem:[%s6 + $0x18] sm:$0xf]
        %v911 = vld [vmem:[%s6 + $0x1c] sm:$0xf]
        %v912 = vld [vmem:[%s6 + $0x20] sm:$0xf]
        %v913 = vld [vmem:[%s6 + $0x24] sm:$0xf]
        %v914 = vld [vmem:[%s6 + $0x28] sm:$0xf]
        %v915 = vld [vmem:[%s6 + $0x2c] sm:$0xf]
        %v916 = vld [vmem:[%s6 + $0x30] sm:$0xf]
        %v917 = vld [vmem:[%s6 + $0x34] sm:$0xf]
        %v918 = vld [vmem:[%s6 + $0x38] sm:$0xf]
        %v919 = vld [vmem:[%s6 + $0x3c] sm:$0xf]
        %v920 = vld [vmem:[%s7] sm:$0x1]
        %v922 = vperm.slane %v920, 0
        %v940 = vunpack.c.l.b16 %v904
        %v941 = vunpack.c.l.b16 %v905
        %v942 = vunpack.c.l.b16 %v906
        %v943 = vunpack.c.l.b16 %v907
        %v944 = vunpack.c.l.b16 %v908
        %v945 = vunpack.c.l.b16 %v909
        %v946 = vunpack.c.l.b16 %v910
        %v947 = vunpack.c.l.b16 %v911
        %v948 = vunpack.c.l.b16 %v912
        %v949 = vunpack.c.l.b16 %v913
        %v950 = vunpack.c.l.b16 %v914
        %v951 = vunpack.c.l.b16 %v915
        %v952 = vunpack.c.l.b16 %v916
        %v953 = vunpack.c.l.b16 %v917
        %v954 = vunpack.c.l.b16 %v918
        %v955 = vunpack.c.l.b16 %v919
        %v956 = vpack.c.b16 %v941, %v940
        %v957 = vpack.c.b16 %v943, %v942
        %v958 = vpack.c.b16 %v945, %v944
        %v959 = vpack.c.b16 %v947, %v946
        %v960 = vpack.c.b16 %v949, %v948
        %v961 = vpack.c.b16 %v951, %v950
        %v962 = vpack.c.b16 %v953, %v952
        %v963 = vpack.c.b16 %v955, %v954
        %972 = vmatpush.bf16.msra.mxu0 %v963
        %973 = vmatpush.bf16.msra.mxu0 %v962
        %974 = vmatpush.bf16.msra.mxu0 %v961
        %975 = vmatpush.bf16.msra.mxu0 %v960
        %976 = vmatpush.bf16.msra.mxu0 %v959
        %977 = vmatpush.bf16.msra.mxu0 %v958
        %978 = vmatpush.bf16.msra.mxu0 %v957
        %979 = vmatpush.bf16.msra.mxu0 %v956
        %980 = vmatmul.bf16.gmra.mxu0 %v574
        %v981 = vpop.f32.mrf.mxu0
        %v982 = vadd.f32 %v922, %v981
        %v983 = vpop.f32.mrf.mxu0
        %v984 = vadd.f32 %v922, %v983
        %985 = vmatmul.bf16.gmra.mxu0 %v575
        %v986 = vpop.f32.mrf.mxu0
        %v987 = vadd.f32 %v922, %v986
        %v988 = vpop.f32.mrf.mxu0
        %v989 = vadd.f32 %v922, %v988
        %990 = vmatmul.bf16.gmra.mxu0 %v576
        %v991 = vpop.f32.mrf.mxu0
        %v992 = vadd.f32 %v922, %v991
        %v993 = vpop.f32.mrf.mxu0
        %v994 = vadd.f32 %v922, %v993
        %995 = vmatmul.bf16.gmra.mxu0 %v577
        %v996 = vpop.f32.mrf.mxu0
        %v997 = vadd.f32 %v922, %v996
        %v998 = vpop.f32.mrf.mxu0
        %v999 = vadd.f32 %v922, %v998
        %1000 = vmatmul.bf16.gmra.mxu0 %v578
        %v1001 = vpop.f32.mrf.mxu0
        %v1002 = vadd.f32 %v922, %v1001
        %v1003 = vpop.f32.mrf.mxu0
        %v1004 = vadd.f32 %v922, %v1003
        %1005 = vmatmul.bf16.gmra.mxu0 %v579
        %v1006 = vpop.f32.mrf.mxu0
        %v1007 = vadd.f32 %v922, %v1006
        %v1008 = vpop.f32.mrf.mxu0
        %v1009 = vadd.f32 %v922, %v1008
        %1010 = vmatmul.bf16.gmra.mxu0 %v580
        %v1011 = vpop.f32.mrf.mxu0
        %v1012 = vadd.f32 %v922, %v1011
        %v1013 = vpop.f32.mrf.mxu0
        %v1014 = vadd.f32 %v922, %v1013
        %1015 = vmatmul.bf16.gmra.mxu0 %v581
        %v1016 = vpop.f32.mrf.mxu0
        %v1017 = vadd.f32 %v922, %v1016
        %v1018 = vpop.f32.mrf.mxu0
        %v1019 = vadd.f32 %v922, %v1018
        %1020 = vmatmul.bf16.gmra.mxu0 %v582
        %v1021 = vpop.f32.mrf.mxu0
        %v1022 = vadd.f32 %v922, %v1021
        %v1023 = vpop.f32.mrf.mxu0
        %v1024 = vadd.f32 %v922, %v1023
        %1025 = vmatmul.bf16.gmra.mxu0 %v583
        %v1026 = vpop.f32.mrf.mxu0
        %v1027 = vadd.f32 %v922, %v1026
        %v1028 = vpop.f32.mrf.mxu0
        %v1029 = vadd.f32 %v922, %v1028
        %1030 = vmatmul.bf16.gmra.mxu0 %v584
        %v1031 = vpop.f32.mrf.mxu0
        %v1032 = vadd.f32 %v922, %v1031
        %v1033 = vpop.f32.mrf.mxu0
        %v1034 = vadd.f32 %v922, %v1033
        %1035 = vmatmul.bf16.gmra.mxu0 %v585
        %v1036 = vpop.f32.mrf.mxu0
        %v1037 = vadd.f32 %v922, %v1036
        %v1038 = vpop.f32.mrf.mxu0
        %v1039 = vadd.f32 %v922, %v1038
        %1040 = vmatmul.bf16.gmra.mxu0 %v586
        %v1041 = vpop.f32.mrf.mxu0
        %v1042 = vadd.f32 %v922, %v1041
        %v1043 = vpop.f32.mrf.mxu0
        %v1044 = vadd.f32 %v922, %v1043
        %1045 = vmatmul.bf16.gmra.mxu0 %v587
        %v1046 = vpop.f32.mrf.mxu0
        %v1047 = vadd.f32 %v922, %v1046
        %v1048 = vpop.f32.mrf.mxu0
        %v1049 = vadd.f32 %v922, %v1048
        %1050 = vmatmul.bf16.gmra.mxu0 %v588
        %v1051 = vpop.f32.mrf.mxu0
        %v1052 = vadd.f32 %v922, %v1051
        %v1053 = vpop.f32.mrf.mxu0
        %v1054 = vadd.f32 %v922, %v1053
        %1055 = vmatmul.bf16.gmra.mxu0 %v589
        %v1056 = vpop.f32.mrf.mxu0
        %v1057 = vadd.f32 %v922, %v1056
        %v1058 = vpop.f32.mrf.mxu0
        %v1059 = vadd.f32 %v922, %v1058
        %1060 = vdwg.mxu0
        %v1061 = vmul.f32 %v668, 0.088388346
        %v1062 = vmul.f32 %v670, 0.088388346
        %v1063 = vmul.f32 %v673, 0.088388346
        %v1064 = vmul.f32 %v675, 0.088388346
        %v1065 = vmul.f32 %v678, 0.088388346
        %v1066 = vmul.f32 %v680, 0.088388346
        %v1067 = vmul.f32 %v683, 0.088388346
        %v1068 = vmul.f32 %v685, 0.088388346
        %v1069 = vmul.f32 %v688, 0.088388346
        %v1070 = vmul.f32 %v690, 0.088388346
        %v1071 = vmul.f32 %v693, 0.088388346
        %v1072 = vmul.f32 %v695, 0.088388346
        %v1073 = vmul.f32 %v698, 0.088388346
        %v1074 = vmul.f32 %v700, 0.088388346
        %v1075 = vmul.f32 %v703, 0.088388346
        %v1076 = vmul.f32 %v705, 0.088388346
        %v1077 = vmul.f32 %v708, 0.088388346
        %v1078 = vmul.f32 %v710, 0.088388346
        %v1079 = vmul.f32 %v713, 0.088388346
        %v1080 = vmul.f32 %v715, 0.088388346
        %v1081 = vmul.f32 %v718, 0.088388346
        %v1082 = vmul.f32 %v720, 0.088388346
        %v1083 = vmul.f32 %v723, 0.088388346
        %v1084 = vmul.f32 %v725, 0.088388346
        %v1085 = vmul.f32 %v728, 0.088388346
        %v1086 = vmul.f32 %v730, 0.088388346
        %v1087 = vmul.f32 %v733, 0.088388346
        %v1088 = vmul.f32 %v735, 0.088388346
        %v1089 = vmul.f32 %v738, 0.088388346
        %v1090 = vmul.f32 %v740, 0.088388346
        %v1091 = vmul.f32 %v743, 0.088388346
        %v1092 = vmul.f32 %v745, 0.088388346
        %v1093 = vpack.c.bf16 %v1061, %v1061
        %v1094 = vpack.c.bf16 %v1062, %v1062
        %v1095 = vpack.c.bf16 %v1063, %v1063
        %v1096 = vpack.c.bf16 %v1064, %v1064
        %v1097 = vpack.c.bf16 %v1065, %v1065
        %v1098 = vpack.c.bf16 %v1066, %v1066
        %v1099 = vpack.c.bf16 %v1067, %v1067
        %v1100 = vpack.c.bf16 %v1068, %v1068
        %v1101 = vpack.c.bf16 %v1069, %v1069
        %v1102 = vpack.c.bf16 %v1070, %v1070
        %v1103 = vpack.c.bf16 %v1071, %v1071
        %v1104 = vpack.c.bf16 %v1072, %v1072
        %v1105 = vpack.c.bf16 %v1073, %v1073
        %v1106 = vpack.c.bf16 %v1074, %v1074
        %v1107 = vpack.c.bf16 %v1075, %v1075
        %v1108 = vpack.c.bf16 %v1076, %v1076
        %v1109 = vpack.c.bf16 %v1077, %v1077
        %v1110 = vpack.c.bf16 %v1078, %v1078
        %v1111 = vpack.c.bf16 %v1079, %v1079
        %v1112 = vpack.c.bf16 %v1080, %v1080
        %v1113 = vpack.c.bf16 %v1081, %v1081
        %v1114 = vpack.c.bf16 %v1082, %v1082
        %v1115 = vpack.c.bf16 %v1083, %v1083
        %v1116 = vpack.c.bf16 %v1084, %v1084
        %v1117 = vpack.c.bf16 %v1085, %v1085
        %v1118 = vpack.c.bf16 %v1086, %v1086
        %v1119 = vpack.c.bf16 %v1087, %v1087
        %v1120 = vpack.c.bf16 %v1088, %v1088
        %v1121 = vpack.c.bf16 %v1089, %v1089
        %v1122 = vpack.c.bf16 %v1090, %v1090
        %v1123 = vpack.c.bf16 %v1091, %v1091
        %v1124 = vpack.c.bf16 %v1092, %v1092
        %1125 = vst [vmem:[%s452] sm:$0xf] %v1093
        %1126 = vst [vmem:[%s452 + $0x4] sm:$0xf] %v1094
        %1127 = vst [vmem:[%s452 + $0x8] sm:$0xf] %v1095
        %1128 = vst [vmem:[%s452 + $0xc] sm:$0xf] %v1096
        %1129 = vst [vmem:[%s452 + $0x10] sm:$0xf] %v1097
        %1130 = vst [vmem:[%s452 + $0x14] sm:$0xf] %v1098
        %1131 = vst [vmem:[%s452 + $0x18] sm:$0xf] %v1099
        %1132 = vst [vmem:[%s452 + $0x1c] sm:$0xf] %v1100
        %1133 = vst [vmem:[%s452 + $0x20] sm:$0xf] %v1101
        %1134 = vst [vmem:[%s452 + $0x24] sm:$0xf] %v1102
        %1135 = vst [vmem:[%s452 + $0x28] sm:$0xf] %v1103
        %1136 = vst [vmem:[%s452 + $0x2c] sm:$0xf] %v1104
        %1137 = vst [vmem:[%s452 + $0x30] sm:$0xf] %v1105
        %1138 = vst [vmem:[%s452 + $0x34] sm:$0xf] %v1106
        %1139 = vst [vmem:[%s452 + $0x38] sm:$0xf] %v1107
        %1140 = vst [vmem:[%s452 + $0x3c] sm:$0xf] %v1108
        %1141 = vst [vmem:[%s452 + $0x40] sm:$0xf] %v1109
        %1142 = vst [vmem:[%s452 + $0x44] sm:$0xf] %v1110
        %1143 = vst [vmem:[%s452 + $0x48] sm:$0xf] %v1111
        %1144 = vst [vmem:[%s452 + $0x4c] sm:$0xf] %v1112
        %1145 = vst [vmem:[%s452 + $0x50] sm:$0xf] %v1113
        %1146 = vst [vmem:[%s452 + $0x54] sm:$0xf] %v1114
        %1147 = vst [vmem:[%s452 + $0x58] sm:$0xf] %v1115
        %1148 = vst [vmem:[%s452 + $0x5c] sm:$0xf] %v1116
        %1149 = vst [vmem:[%s452 + $0x60] sm:$0xf] %v1117
        %1150 = vst [vmem:[%s452 + $0x64] sm:$0xf] %v1118
        %1151 = vst [vmem:[%s452 + $0x68] sm:$0xf] %v1119
        %1152 = vst [vmem:[%s452 + $0x6c] sm:$0xf] %v1120
        %1153 = vst [vmem:[%s452 + $0x70] sm:$0xf] %v1121
        %1154 = vst [vmem:[%s452 + $0x74] sm:$0xf] %v1122
        %1155 = vst [vmem:[%s452 + $0x78] sm:$0xf] %v1123
        %1156 = vst [vmem:[%s452 + $0x7c] sm:$0xf] %v1124
        %v1157 = vpack.c.bf16 %v825, %v825
        %v1158 = vpack.c.bf16 %v827, %v827
        %v1159 = vpack.c.bf16 %v830, %v830
        %v1160 = vpack.c.bf16 %v832, %v832
        %v1161 = vpack.c.bf16 %v835, %v835
        %v1162 = vpack.c.bf16 %v837, %v837
        %v1163 = vpack.c.bf16 %v840, %v840
        %v1164 = vpack.c.bf16 %v842, %v842
        %v1165 = vpack.c.bf16 %v845, %v845
        %v1166 = vpack.c.bf16 %v847, %v847
        %v1167 = vpack.c.bf16 %v850, %v850
        %v1168 = vpack.c.bf16 %v852, %v852
        %v1169 = vpack.c.bf16 %v855, %v855
        %v1170 = vpack.c.bf16 %v857, %v857
        %v1171 = vpack.c.bf16 %v860, %v860
        %v1172 = vpack.c.bf16 %v862, %v862
        %v1173 = vpack.c.bf16 %v865, %v865
        %v1174 = vpack.c.bf16 %v867, %v867
        %v1175 = vpack.c.bf16 %v870, %v870
        %v1176 = vpack.c.bf16 %v872, %v872
        %v1177 = vpack.c.bf16 %v875, %v875
        %v1178 = vpack.c.bf16 %v877, %v877
        %v1179 = vpack.c.bf16 %v880, %v880
        %v1180 = vpack.c.bf16 %v882, %v882
        %v1181 = vpack.c.bf16 %v885, %v885
        %v1182 = vpack.c.bf16 %v887, %v887
        %v1183 = vpack.c.bf16 %v890, %v890
        %v1184 = vpack.c.bf16 %v892, %v892
        %v1185 = vpack.c.bf16 %v895, %v895
        %v1186 = vpack.c.bf16 %v897, %v897
        %v1187 = vpack.c.bf16 %v900, %v900
        %v1188 = vpack.c.bf16 %v902, %v902
        %1189 = vst [vmem:[%s462] sm:$0xf] %v1157
        %1190 = vst [vmem:[%s462 + $0x4] sm:$0xf] %v1158
        %1191 = vst [vmem:[%s462 + $0x8] sm:$0xf] %v1159
        %1192 = vst [vmem:[%s462 + $0xc] sm:$0xf] %v1160
        %1193 = vst [vmem:[%s462 + $0x10] sm:$0xf] %v1161
        %1194 = vst [vmem:[%s462 + $0x14] sm:$0xf] %v1162
        %1195 = vst [vmem:[%s462 + $0x18] sm:$0xf] %v1163
        %1196 = vst [vmem:[%s462 + $0x1c] sm:$0xf] %v1164
        %1197 = vst [vmem:[%s462 + $0x20] sm:$0xf] %v1165
        %1198 = vst [vmem:[%s462 + $0x24] sm:$0xf] %v1166
        %1199 = vst [vmem:[%s462 + $0x28] sm:$0xf] %v1167
        %1200 = vst [vmem:[%s462 + $0x2c] sm:$0xf] %v1168
        %1201 = vst [vmem:[%s462 + $0x30] sm:$0xf] %v1169
        %1202 = vst [vmem:[%s462 + $0x34] sm:$0xf] %v1170
        %1203 = vst [vmem:[%s462 + $0x38] sm:$0xf] %v1171
        %1204 = vst [vmem:[%s462 + $0x3c] sm:$0xf] %v1172
        %1205 = vst [vmem:[%s462 + $0x40] sm:$0xf] %v1173
        %1206 = vst [vmem:[%s462 + $0x44] sm:$0xf] %v1174
        %1207 = vst [vmem:[%s462 + $0x48] sm:$0xf] %v1175
        %1208 = vst [vmem:[%s462 + $0x4c] sm:$0xf] %v1176
        %1209 = vst [vmem:[%s462 + $0x50] sm:$0xf] %v1177
        %1210 = vst [vmem:[%s462 + $0x54] sm:$0xf] %v1178
        %1211 = vst [vmem:[%s462 + $0x58] sm:$0xf] %v1179
        %1212 = vst [vmem:[%s462 + $0x5c] sm:$0xf] %v1180
        %1213 = vst [vmem:[%s462 + $0x60] sm:$0xf] %v1181
        %1214 = vst [vmem:[%s462 + $0x64] sm:$0xf] %v1182
        %1215 = vst [vmem:[%s462 + $0x68] sm:$0xf] %v1183
        %1216 = vst [vmem:[%s462 + $0x6c] sm:$0xf] %v1184
        %1217 = vst [vmem:[%s462 + $0x70] sm:$0xf] %v1185
        %1218 = vst [vmem:[%s462 + $0x74] sm:$0xf] %v1186
        %1219 = vst [vmem:[%s462 + $0x78] sm:$0xf] %v1187
        %1220 = vst [vmem:[%s462 + $0x7c] sm:$0xf] %v1188
        %v1221 = vpack.c.bf16 %v982, %v982
        %v1222 = vpack.c.bf16 %v984, %v984
        %v1223 = vpack.c.bf16 %v987, %v987
        %v1224 = vpack.c.bf16 %v989, %v989
        %v1225 = vpack.c.bf16 %v992, %v992
        %v1226 = vpack.c.bf16 %v994, %v994
        %v1227 = vpack.c.bf16 %v997, %v997
        %v1228 = vpack.c.bf16 %v999, %v999
        %v1229 = vpack.c.bf16 %v1002, %v1002
        %v1230 = vpack.c.bf16 %v1004, %v1004
        %v1231 = vpack.c.bf16 %v1007, %v1007
        %v1232 = vpack.c.bf16 %v1009, %v1009
        %v1233 = vpack.c.bf16 %v1012, %v1012
        %v1234 = vpack.c.bf16 %v1014, %v1014
        %v1235 = vpack.c.bf16 %v1017, %v1017
        %v1236 = vpack.c.bf16 %v1019, %v1019
        %v1237 = vpack.c.bf16 %v1022, %v1022
        %v1238 = vpack.c.bf16 %v1024, %v1024
        %v1239 = vpack.c.bf16 %v1027, %v1027
        %v1240 = vpack.c.bf16 %v1029, %v1029
        %v1241 = vpack.c.bf16 %v1032, %v1032
        %v1242 = vpack.c.bf16 %v1034, %v1034
        %v1243 = vpack.c.bf16 %v1037, %v1037
        %v1244 = vpack.c.bf16 %v1039, %v1039
        %v1245 = vpack.c.bf16 %v1042, %v1042
        %v1246 = vpack.c.bf16 %v1044, %v1044
        %v1247 = vpack.c.bf16 %v1047, %v1047
        %v1248 = vpack.c.bf16 %v1049, %v1049
        %v1249 = vpack.c.bf16 %v1052, %v1052
        %v1250 = vpack.c.bf16 %v1054, %v1054
        %v1251 = vpack.c.bf16 %v1057, %v1057
        %v1252 = vpack.c.bf16 %v1059, %v1059
        %1253 = vst [vmem:[%s472] sm:$0xf] %v1221
        %1254 = vst [vmem:[%s472 + $0x4] sm:$0xf] %v1222
        %1255 = vst [vmem:[%s472 + $0x8] sm:$0xf] %v1223
        %1256 = vst [vmem:[%s472 + $0xc] sm:$0xf] %v1224
        %1257 = vst [vmem:[%s472 + $0x10] sm:$0xf] %v1225
        %1258 = vst [vmem:[%s472 + $0x14] sm:$0xf] %v1226
        %1259 = vst [vmem:[%s472 + $0x18] sm:$0xf] %v1227
        %1260 = vst [vmem:[%s472 + $0x1c] sm:$0xf] %v1228
        %1261 = vst [vmem:[%s472 + $0x20] sm:$0xf] %v1229
        %1262 = vst [vmem:[%s472 + $0x24] sm:$0xf] %v1230
        %1263 = vst [vmem:[%s472 + $0x28] sm:$0xf] %v1231
        %1264 = vst [vmem:[%s472 + $0x2c] sm:$0xf] %v1232
        %1265 = vst [vmem:[%s472 + $0x30] sm:$0xf] %v1233
        %1266 = vst [vmem:[%s472 + $0x34] sm:$0xf] %v1234
        %1267 = vst [vmem:[%s472 + $0x38] sm:$0xf] %v1235
        %1268 = vst [vmem:[%s472 + $0x3c] sm:$0xf] %v1236
        %1269 = vst [vmem:[%s472 + $0x40] sm:$0xf] %v1237
        %1270 = vst [vmem:[%s472 + $0x44] sm:$0xf] %v1238
        %1271 = vst [vmem:[%s472 + $0x48] sm:$0xf] %v1239
        %1272 = vst [vmem:[%s472 + $0x4c] sm:$0xf] %v1240
        %1273 = vst [vmem:[%s472 + $0x50] sm:$0xf] %v1241
        %1274 = vst [vmem:[%s472 + $0x54] sm:$0xf] %v1242
        %1275 = vst [vmem:[%s472 + $0x58] sm:$0xf] %v1243
        %1276 = vst [vmem:[%s472 + $0x5c] sm:$0xf] %v1244
        %1277 = vst [vmem:[%s472 + $0x60] sm:$0xf] %v1245
        %1278 = vst [vmem:[%s472 + $0x64] sm:$0xf] %v1246
        %1279 = vst [vmem:[%s472 + $0x68] sm:$0xf] %v1247
        %1280 = vst [vmem:[%s472 + $0x6c] sm:$0xf] %v1248
        %1281 = vst [vmem:[%s472 + $0x70] sm:$0xf] %v1249
        %1282 = vst [vmem:[%s472 + $0x74] sm:$0xf] %v1250
        %1283 = vst [vmem:[%s472 + $0x78] sm:$0xf] %v1251
        %1284 = vst [vmem:[%s472 + $0x7c] sm:$0xf] %v1252
        %s1285 = smul.u32 32, %s30
        %p1286 = scmp.lt.s32.totalorder %s29, 1
        %s1287 = scalar_select %p1286, %s29, 1
        %p1288 = scmp.lt.s32.totalorder %s1285, 31
        %s1289 = scalar_select %p1288, %s1285, 31
        %s1290 = smul.addr %s1287, 32
        %s1291 = sadd.s32 %s1289, %s1290
        %s1292 = smul.addr %s1291, 4
        %s1293 = scalar_lea.vmem %s8, %s1292
        %s1294 = smul.u32 32, %s30
        %p1295 = scmp.lt.s32.totalorder %s29, 1
        %s1296 = scalar_select %p1295, %s29, 1
        %p1297 = scmp.lt.s32.totalorder %s1294, 31
        %s1298 = scalar_select %p1297, %s1294, 31
        %s1299 = smul.addr %s1296, 32
        %s1300 = sadd.s32 %s1298, %s1299
        %s1301 = smul.addr %s1300, 4
        %s1302 = scalar_lea.vmem %s9, %s1301
        %s1303 = smul.u32 32, %s30
        %p1304 = scmp.lt.s32.totalorder %s29, 1
        %s1305 = scalar_select %p1304, %s29, 1
        %p1306 = scmp.lt.s32.totalorder %s1303, 31
        %s1307 = scalar_select %p1306, %s1303, 31
        %s1308 = smul.addr %s1305, 32
        %s1309 = sadd.s32 %s1307, %s1308
        %s1310 = smul.addr %s1309, 4
        %s1311 = scalar_lea.vmem %s10, %s1310
        // Predicated region
        $region57: #{attn_block.4} parent=51 // pred_check
          %p1312 = pneg %p237
        $region58: #{attn_block.4} parent=51 // pred_check_branch
          %1314 = sbr.rel (%p1312) target = $region60
        $region59: #{attn_block.4} parent=51 // pred_region
          %s1315 = smul.u32 32, %s30
        $region60: #{attn_block.4} parent=51 // pred_fallthru
          _
        // Predicated region
        $region61: #{attn_block.4} parent=51 // pred_check
          %p1316 = pneg %p265
        $region62: #{attn_block.4} parent=51 // pred_check_branch
          %1318 = sbr.rel (%p1316) target = $region64
        $region63: #{attn_block.4} parent=51 // pred_region
          %s1319 = smul.u32 32, %s30
        $region64: #{attn_block.4} parent=51 // pred_fallthru
          _
        // Predicated region
        $region65: #{attn_block.4} parent=51 // pred_check
          %p1320 = pneg %p293
        $region66: #{attn_block.4} parent=51 // pred_check_branch
          %1322 = sbr.rel (%p1320) target = $region68
        $region67: #{attn_block.4} parent=51 // pred_region
          %s1323 = smul.u32 32, %s30
        $region68: #{attn_block.4} parent=51 // pred_fallthru
          _
      $region52: #{attn_block.4} parent=5 // pred_fallthru
        _
      %p1324 = scmp.le.s32.totalorder 2, %s20
      // Predicated region
      $region69: #{attn_block.4} parent=5 // pred_check
        %p1325 = pneg %p1324
      $region70: #{attn_block.4} parent=5 // pred_check_branch
        %1327 = sbr.rel (%p1325) target = $region72
      $region71: #{attn_block.4} parent=5 // pred_region
        %s1328 = ssub.s32 %s20, 2
        // Predicated region
        $region73: #{attn_block.4} parent=71 // pred_check
          %p1329 = pneg %p243
        $region74: #{attn_block.4} parent=71 // pred_check_branch
          %1331 = sbr.rel (%p1329) target = $region76
        $region75: #{attn_block.4} parent=71 // pred_region
          %s1332 = smul.u32 32, %s32
          %p1333 = scmp.lt.s32.totalorder %s31, 1
          %s1334 = scalar_select %p1333, %s31, 1
          %p1335 = scmp.lt.s32.totalorder %s1332, 31
          %s1336 = scalar_select %p1335, %s1332, 31
          %s1337 = smul.addr %s1334, 32
          %s1338 = sadd.s32 %s1336, %s1337
          %s1339 = smul.addr %s1338, 4
          %s1340 = scalar_lea.vmem %s8, %s1339
        $region76: #{attn_block.4} parent=71 // pred_fallthru
          _
        // Predicated region
        $region77: #{attn_block.4} parent=71 // pred_check
          %p1341 = pneg %p271
        $region78: #{attn_block.4} parent=71 // pred_check_branch
          %1343 = sbr.rel (%p1341) target = $region80
        $region79: #{attn_block.4} parent=71 // pred_region
          %s1344 = smul.u32 32, %s32
          %p1345 = scmp.lt.s32.totalorder %s31, 1
          %s1346 = scalar_select %p1345, %s31, 1
          %p1347 = scmp.lt.s32.totalorder %s1344, 31
          %s1348 = scalar_select %p1347, %s1344, 31
          %s1349 = smul.addr %s1346, 32
          %s1350 = sadd.s32 %s1348, %s1349
          %s1351 = smul.addr %s1350, 4
          %s1352 = scalar_lea.vmem %s9, %s1351
        $region80: #{attn_block.4} parent=71 // pred_fallthru
          _
        // Predicated region
        $region81: #{attn_block.4} parent=71 // pred_check
          %p1353 = pneg %p299
        $region82: #{attn_block.4} parent=71 // pred_check_branch
          %1355 = sbr.rel (%p1353) target = $region84
        $region83: #{attn_block.4} parent=71 // pred_region
          %s1356 = smul.u32 32, %s32
          %p1357 = scmp.lt.s32.totalorder %s31, 1
          %s1358 = scalar_select %p1357, %s31, 1
          %p1359 = scmp.lt.s32.totalorder %s1356, 31
          %s1360 = scalar_select %p1359, %s1356, 31
          %s1361 = smul.addr %s1358, 32
          %s1362 = sadd.s32 %s1360, %s1361
          %s1363 = smul.addr %s1362, 4
          %s1364 = scalar_lea.vmem %s10, %s1363
        $region84: #{attn_block.4} parent=71 // pred_fallthru
          _
      $region72: #{attn_block.4} parent=5 // pred_fallthru
        _
    $region6: #{attn_block.4} parent=1 // loop_footer
      %s24 = sadd.s32 1, %s20
    $region7: #{attn_block.4} parent=1 // loop_footer_branch
      %19 = sbr.rel target = $region3
    $region8: #{attn_block.4} parent=1 // loop_exit
      _
    %1365 = vsyncpa [#allocation3], 1
    %s1366 = scalar_lea.sflag [#allocation3], 1
    %1367 = vsyncpa %s1366, 1

// kernel: attn_block.5
$region0: #{attn_block.5}
  #allocation0 [shape = 'u32[]', space=smem, size = 0x4, offset = 0x4, fixed_abs, tag = 'smem constant byte address 0x4 - core index']
  #allocation1 [shape = 'u32[72,128]{1,0:T(1,128)}', space=vmem, size = 0x9000, scoped, tag = 'internal scratch']
  #allocation2 [shape = 'f32[256,1]{1,0:T(8,128)}', space=vmem, size = 0x20000, scoped, tag = 'scratch operand']
  #allocation3 [shape = 'f32[256,1]{1,0:T(8,128)}', space=vmem, size = 0x20000, scoped, tag = 'scratch operand']
  #allocation4 [shape = 'f32[256,128]{1,0:T(8,128)}', space=vmem, size = 0x20000, scoped, tag = 'scratch operand']
  %s0 = inlined_call_operand.vmem [shape: bf16[2,256,128], index: 0, kind: input, shape index: {}]
  %s1 = inlined_call_operand.vmem [shape: bf16[2,256,128], index: 1, kind: input, shape index: {}]
  %s2 = inlined_call_operand.vmem [shape: bf16[2,256,128], index: 2, kind: input, shape index: {}]
  %s3 = inlined_call_operand.hbm [shape: f32[2,256,128], index: 3, kind: input, shape index: {}]
  %s4 = inlined_call_operand.vmem [shape: bf16[128,128], index: 4, kind: input, shape index: {}]
  %s5 = inlined_call_operand.vmem [shape: f32[1,128], index: 5, kind: input, shape index: {}]
  %s6 = inlined_call_operand.hbm [shape: f32[2,256,128], index: 6, kind: output, shape index: {}]
  %s7 = sld [smem:[#allocation0]]
  $region69: #{attn_block.5} parent=0
    _
  %s9 = ssub.s32 1, %s7
  %s10 = scalar_select 0, %s9, %s7
  $region1: #{attn_block.5} parent=0
    #allocation5 [shape = 'u8[262144]{0}', space=vmem, size = 0x40000, scoped, tag = 'input window, operand 3']
    #allocation6 [shape = 's32[2]{0}', space=sflag, size = 0x8, scoped, tag = 'scoped memory for attn_block.5']
    #allocation7 [shape = 's32[2]{0}', space=sflag, size = 0x8, scoped, tag = 'scoped memory for attn_block.5']
    #allocation8 [shape = 'u8[262144]{0}', space=vmem, size = 0x40000, scoped, tag = 'output window, operand 0']
    %11 = vsyncpa [#allocation6], 0
    %s12 = scalar_lea.sflag [#allocation6], 1
    %13 = vsyncpa %s12, 0
    %14 = vsyncpa [#allocation7], 0
    %s15 = scalar_lea.sflag [#allocation7], 1
    %16 = vsyncpa %s15, 0
    loop: start=0, step=1, limit=4
    $region2: #{attn_block.5} parent=1 // loop_pre_header
      _
    $region3: #{attn_block.5} parent=1 // loop_header
      %s18 = sphi 0, %s22
      %p19 = scmp.ge.s32.totalorder %s18, 4
      %s25 = sphi 0, %s44
      %s26 = sphi 0, %s40
      %s27 = sphi 0, %s36
      %s28 = sphi 0, %s25
      %s29 = sphi 0, %s26
      %s30 = sphi 0, %s27
      %s31 = sphi 0, %s28
      %s32 = sphi 0, %s29
      %s33 = sphi 0, %s30
      %s49 = sphi 0, %s51
      %s52 = sphi 0, %s49
      %s53 = sphi 0, %s52
      %s69 = sphi 0, %s53
      %s77 = sphi 0, %s79
      %s80 = sphi 0, %s77
      %s81 = sphi 0, %s80
      %s97 = sphi 0, %s81
      %s105 = sphi 0, %s107
      %s108 = sphi 0, %s105
      %s109 = sphi 0, %s108
      %s125 = sphi 0, %s109
      %s133 = sphi 0, %s135
      %s136 = sphi 0, %s133
      %s137 = sphi 0, %s136
      %s153 = sphi 0, %s137
      %s157 = sphi 0, %s157
      %s159 = sphi 0, %s157
      %s160 = sphi 0, %s159
      %s174 = sphi 0, %s160
      %s178 = sphi 0, %s178
      %s180 = sphi 0, %s178
      %s181 = sphi 0, %s180
      %s195 = sphi 0, %s181
      %s203 = sphi 0, %s205
      %s206 = sphi 0, %s203
      %s207 = sphi 0, %s206
      %s223 = sphi 0, %s207
    $region4: #{attn_block.5} parent=1 // loop_header_branch
      %21 = sbr.rel (%p19) target = $region8
    $region5: #{attn_block.5} parent=1 // loop_body
      %s23 = ssub.s32 %s18, 1
      %s24 = ssub.s32 %s18, 2
      %s34 = sadd.s32 1, %s27
      %p35 = scmp.ge.s32.totalorder %s34, 1
      %s36 = scalar_select %p35, 0, %s34
      %s37 = sadd.s32 1, %s26
      %s38 = scalar_select %p35, %s37, %s26
      %p39 = scmp.ge.s32.totalorder %s38, 1
      %s40 = scalar_select %p39, 0, %s38
      %s41 = sadd.s32 1, %s25
      %s42 = scalar_select %p39, %s41, %s25
      %p43 = scmp.ge.s32.totalorder %s42, 2
      %s44 = scalar_select %p43, 0, %s42
      %s45 = ssub.s32 %s25, %s44
      %s46 = ssub.s32 %s26, %s40
      %s47 = sor.u32 %s45, %s46
      %p48 = scmp.eq.s32.totalorder %s47, 0
      %s50 = sadd.s32 %s49, 1
      %s51 = scalar_select %p48, %s49, %s50
      %p54 = pneg %p48
      %p55 = scmp.eq.s32.totalorder %s18, 1
      %p56 = por %p54, %p55
      %p57 = scmp.ne.s32.totalorder %s49, %s52
      %p58 = scmp.eq.s32.totalorder %s18, 0
      %p59 = por %p57, %p58
      %p60 = scmp.ne.s32.totalorder %s49, %s52
      %p61 = scmp.eq.s32.totalorder %s23, 1
      %p62 = por %p60, %p61
      %p63 = scmp.ne.s32.totalorder %s52, %s53
      %p64 = scmp.eq.s32.totalorder %s23, 0
      %p65 = por %p63, %p64
      %p66 = scmp.ne.s32.totalorder %s52, %s53
      %p67 = scmp.eq.s32.totalorder %s24, 1
      %p68 = por %p66, %p67
      %p70 = scmp.ne.s32.totalorder %s53, %s69
      %p71 = scmp.eq.s32.totalorder %s24, 0
      %p72 = por %p70, %p71
      %s73 = ssub.s32 %s25, %s44
      %s74 = ssub.s32 %s27, %s36
      %s75 = sor.u32 %s73, %s74
      %p76 = scmp.eq.s32.totalorder %s75, 0
      %s78 = sadd.s32 %s77, 1
      %s79 = scalar_select %p76, %s77, %s78
      %p82 = pneg %p76
      %p83 = scmp.eq.s32.totalorder %s18, 1
      %p84 = por %p82, %p83
      %p85 = scmp.ne.s32.totalorder %s77, %s80
      %p86 = scmp.eq.s32.totalorder %s18, 0
      %p87 = por %p85, %p86
      %p88 = scmp.ne.s32.totalorder %s77, %s80
      %p89 = scmp.eq.s32.totalorder %s23, 1
      %p90 = por %p88, %p89
      %p91 = scmp.ne.s32.totalorder %s80, %s81
      %p92 = scmp.eq.s32.totalorder %s23, 0
      %p93 = por %p91, %p92
      %p94 = scmp.ne.s32.totalorder %s80, %s81
      %p95 = scmp.eq.s32.totalorder %s24, 1
      %p96 = por %p94, %p95
      %p98 = scmp.ne.s32.totalorder %s81, %s97
      %p99 = scmp.eq.s32.totalorder %s24, 0
      %p100 = por %p98, %p99
      %s101 = ssub.s32 %s25, %s44
      %s102 = ssub.s32 %s27, %s36
      %s103 = sor.u32 %s101, %s102
      %p104 = scmp.eq.s32.totalorder %s103, 0
      %s106 = sadd.s32 %s105, 1
      %s107 = scalar_select %p104, %s105, %s106
      %p110 = pneg %p104
      %p111 = scmp.eq.s32.totalorder %s18, 1
      %p112 = por %p110, %p111
      %p113 = scmp.ne.s32.totalorder %s105, %s108
      %p114 = scmp.eq.s32.totalorder %s18, 0
      %p115 = por %p113, %p114
      %p116 = scmp.ne.s32.totalorder %s105, %s108
      %p117 = scmp.eq.s32.totalorder %s23, 1
      %p118 = por %p116, %p117
      %p119 = scmp.ne.s32.totalorder %s108, %s109
      %p120 = scmp.eq.s32.totalorder %s23, 0
      %p121 = por %p119, %p120
      %p122 = scmp.ne.s32.totalorder %s108, %s109
      %p123 = scmp.eq.s32.totalorder %s24, 1
      %p124 = por %p122, %p123
      %p126 = scmp.ne.s32.totalorder %s109, %s125
      %p127 = scmp.eq.s32.totalorder %s24, 0
      %p128 = por %p126, %p127
      %s129 = ssub.s32 %s25, %s44
      %s130 = ssub.s32 %s26, %s40
      %s131 = sor.u32 %s129, %s130
      %p132 = scmp.eq.s32.totalorder %s131, 0
      %s134 = sadd.s32 %s133, 1
      %s135 = scalar_select %p132, %s133, %s134
      %p138 = pneg %p132
      %p139 = scmp.eq.s32.totalorder %s18, 1
      %p140 = por %p138, %p139
      %p141 = scmp.ne.s32.totalorder %s133, %s136
      %p142 = scmp.eq.s32.totalorder %s18, 0
      %p143 = por %p141, %p142
      %p144 = scmp.ne.s32.totalorder %s133, %s136
      %p145 = scmp.eq.s32.totalorder %s23, 1
      %p146 = por %p144, %p145
      %p147 = scmp.ne.s32.totalorder %s136, %s137
      %p148 = scmp.eq.s32.totalorder %s23, 0
      %p149 = por %p147, %p148
      %p150 = scmp.ne.s32.totalorder %s136, %s137
      %p151 = scmp.eq.s32.totalorder %s24, 1
      %p152 = por %p150, %p151
      %p154 = scmp.ne.s32.totalorder %s137, %s153
      %p155 = scmp.eq.s32.totalorder %s24, 0
      %p156 = por %p154, %p155
      %s158 = sadd.s32 %s157, 1
      %p161 = scmp.eq.s32.totalorder %s18, 1
      %p162 = scmp.ne.s32.totalorder %s157, %s159
      %p163 = scmp.eq.s32.totalorder %s18, 0
      %p164 = por %p162, %p163
      %p165 = scmp.ne.s32.totalorder %s157, %s159
      %p166 = scmp.eq.s32.totalorder %s23, 1
      %p167 = por %p165, %p166
      %p168 = scmp.ne.s32.totalorder %s159, %s160
      %p169 = scmp.eq.s32.totalorder %s23, 0
      %p170 = por %p168, %p169
      %p171 = scmp.ne.s32.totalorder %s159, %s160
      %p172 = scmp.eq.s32.totalorder %s24, 1
      %p173 = por %p171, %p172
      %p175 = scmp.ne.s32.totalorder %s160, %s174
      %p176 = scmp.eq.s32.totalorder %s24, 0
      %p177 = por %p175, %p176
      %s179 = sadd.s32 %s178, 1
      %p182 = scmp.eq.s32.totalorder %s18, 1
      %p183 = scmp.ne.s32.totalorder %s178, %s180
      %p184 = scmp.eq.s32.totalorder %s18, 0
      %p185 = por %p183, %p184
      %p186 = scmp.ne.s32.totalorder %s178, %s180
      %p187 = scmp.eq.s32.totalorder %s23, 1
      %p188 = por %p186, %p187
      %p189 = scmp.ne.s32.totalorder %s180, %s181
      %p190 = scmp.eq.s32.totalorder %s23, 0
      %p191 = por %p189, %p190
      %p192 = scmp.ne.s32.totalorder %s180, %s181
      %p193 = scmp.eq.s32.totalorder %s24, 1
      %p194 = por %p192, %p193
      %p196 = scmp.ne.s32.totalorder %s181, %s195
      %p197 = scmp.eq.s32.totalorder %s24, 0
      %p198 = por %p196, %p197
      %s199 = ssub.s32 %s25, %s44
      %s200 = ssub.s32 %s26, %s40
      %s201 = sor.u32 %s199, %s200
      %p202 = scmp.eq.s32.totalorder %s201, 0
      %s204 = sadd.s32 %s203, 1
      %s205 = scalar_select %p202, %s203, %s204
      %p208 = pneg %p202
      %p209 = scmp.eq.s32.totalorder %s18, 1
      %p210 = por %p208, %p209
      %p211 = scmp.ne.s32.totalorder %s203, %s206
      %p212 = scmp.eq.s32.totalorder %s18, 0
      %p213 = por %p211, %p212
      %p214 = scmp.ne.s32.totalorder %s203, %s206
      %p215 = scmp.eq.s32.totalorder %s23, 1
      %p216 = por %p214, %p215
      %p217 = scmp.ne.s32.totalorder %s206, %s207
      %p218 = scmp.eq.s32.totalorder %s23, 0
      %p219 = por %p217, %p218
      %p220 = scmp.ne.s32.totalorder %s206, %s207
      %p221 = scmp.eq.s32.totalorder %s24, 1
      %p222 = por %p220, %p221
      %p224 = scmp.ne.s32.totalorder %s207, %s223
      %p225 = scmp.eq.s32.totalorder %s24, 0
      %p226 = por %p224, %p225
      %p227 = scmp.le.s32.totalorder 1, %s18
      %p228 = scmp.lt.s32.totalorder %s18, 3
      %p229 = pnand %p227, %p228
      %p230 = pneg %p229
      // Predicated region
      $region9: #{attn_block.5} parent=5 // pred_check
        _
      $region10: #{attn_block.5} parent=5 // pred_check_branch
        %232 = sbr.rel (%p229) target = $region12
      $region11: #{attn_block.5} parent=5 // pred_region
        %s233 = ssub.s32 %s18, 1
        // Predicated region
        $region13: #{attn_block.5} parent=11 // pred_check
          %p234 = pneg %p170
        $region14: #{attn_block.5} parent=11 // pred_check_branch
          %236 = sbr.rel (%p234) target = $region16
        $region15: #{attn_block.5} parent=11 // pred_region
          _
        $region16: #{attn_block.5} parent=11 // pred_fallthru
          _
        // Predicated region
        $region17: #{attn_block.5} parent=11 // pred_check
          %p237 = pneg %p191
        $region18: #{attn_block.5} parent=11 // pred_check_branch
          %239 = sbr.rel (%p237) target = $region20
        $region19: #{attn_block.5} parent=11 // pred_region
          _
        $region20: #{attn_block.5} parent=11 // pred_fallthru
          _
      $region12: #{attn_block.5} parent=5 // pred_fallthru
        _
      %p240 = scmp.lt.s32.totalorder %s18, 2
      // Predicated region
      $region21: #{attn_block.5} parent=5 // pred_check
        %p241 = pneg %p240
      $region22: #{attn_block.5} parent=5 // pred_check_branch
        %243 = sbr.rel (%p241) target = $region24
      $region23: #{attn_block.5} parent=5 // pred_region
        // Predicated region
        $region25: #{attn_block.5} parent=23 // pred_check
          %p244 = pneg %p59
        $region26: #{attn_block.5} parent=23 // pred_check_branch
          %246 = sbr.rel (%p244) target = $region28
        $region27: #{attn_block.5} parent=23 // pred_region
          %s247 = smul.u32 32, %s26
          %p248 = scmp.lt.s32.totalorder %s25, 1
          %s249 = scalar_select %p248, %s25, 1
          %p250 = scmp.lt.s32.totalorder %s247, 31
          %s251 = scalar_select %p250, %s247, 31
          %s252 = smul.addr %s249, 32
          %s253 = sadd.s32 %s251, %s252
          %s254 = smul.addr %s253, 4
          %s255 = scalar_lea.vmem %s0, %s254
          %s256 = smul.u32 32, %s26
        $region28: #{attn_block.5} parent=23 // pred_fallthru
          _
        // Predicated region
        $region29: #{attn_block.5} parent=23 // pred_check
          %p257 = pneg %p87
        $region30: #{attn_block.5} parent=23 // pred_check_branch
          %259 = sbr.rel (%p257) target = $region32
        $region31: #{attn_block.5} parent=23 // pred_region
          %s260 = smul.u32 32, %s27
          %p261 = scmp.lt.s32.totalorder %s25, 1
          %s262 = scalar_select %p261, %s25, 1
          %p263 = scmp.lt.s32.totalorder %s260, 31
          %s264 = scalar_select %p263, %s260, 31
          %s265 = smul.addr %s262, 32
          %s266 = sadd.s32 %s264, %s265
          %s267 = smul.addr %s266, 4
          %s268 = scalar_lea.vmem %s1, %s267
          %s269 = smul.u32 32, %s27
        $region32: #{attn_block.5} parent=23 // pred_fallthru
          _
        // Predicated region
        $region33: #{attn_block.5} parent=23 // pred_check
          %p270 = pneg %p115
        $region34: #{attn_block.5} parent=23 // pred_check_branch
          %272 = sbr.rel (%p270) target = $region36
        $region35: #{attn_block.5} parent=23 // pred_region
          %s273 = smul.u32 32, %s27
          %p274 = scmp.lt.s32.totalorder %s25, 1
          %s275 = scalar_select %p274, %s25, 1
          %p276 = scmp.lt.s32.totalorder %s273, 31
          %s277 = scalar_select %p276, %s273, 31
          %s278 = smul.addr %s275, 32
          %s279 = sadd.s32 %s277, %s278
          %s280 = smul.addr %s279, 4
          %s281 = scalar_lea.vmem %s2, %s280
          %s282 = smul.u32 32, %s27
        $region36: #{attn_block.5} parent=23 // pred_fallthru
          _
        // Predicated region
        $region37: #{attn_block.5} parent=23 // pred_check
          %p283 = pneg %p143
        $region38: #{attn_block.5} parent=23 // pred_check_branch
          %285 = sbr.rel (%p283) target = $region40
        $region39: #{attn_block.5} parent=23 // pred_region
          %s286 = sand.u32 %s133, 1
          %s287 = scalar_lea.sflag [#allocation6], %s286
          %s288 = sand.u32 %s133, 1
          %s289 = smul.addr %s288, 256
          %s290 = scalar_lea.vmem [#allocation5], %s289
          %s291 = smul.u32 32, %s26
          %293 = vsyncadd %s287, 0
          %s294 = smul.addr %s25, 32
          %s295 = sadd.s32 %s291, %s294
          %s296 = smul.addr %s295, 8
          %s297 = scalar_lea.hbm %s3, %s296
          %s298 = sshll.u32 %s297, 4
          %s299 = int_to_ptr.hbm [resolvable:$true] %s298
          %s300 = sshll.u32 %s290, 4
          %s301 = int_to_ptr.vmem [resolvable:$true] %s300
          %306 = dma.hbm_to_vmem [thread:$0]  %s299, 4096, %s301, %s287, 128, 128, 8
        $region40: #{attn_block.5} parent=23 // pred_fallthru
          _
      $region24: #{attn_block.5} parent=5 // pred_fallthru
        _
      %p307 = scmp.le.s32.totalorder 1, %s18
      %p308 = scmp.lt.s32.totalorder %s18, 3
      %p309 = pnand %p307, %p308
      %p310 = pneg %p309
      // Predicated region
      $region41: #{attn_block.5} parent=5 // pred_check
        _
      $region42: #{attn_block.5} parent=5 // pred_check_branch
        %312 = sbr.rel (%p309) target = $region44
      $region43: #{attn_block.5} parent=5 // pred_region
        %s313 = ssub.s32 %s18, 1
        %s314 = sand.u32 %s136, 1
        %s315 = scalar_lea.sflag [#allocation6], %s314
        %s316 = sand.u32 %s136, 1
        %s317 = smul.addr %s316, 256
        %s318 = scalar_lea.vmem [#allocation5], %s317
        // Predicated region
        $region45: #{attn_block.5} parent=43 // pred_check
          %p319 = pneg %p149
        $region46: #{attn_block.5} parent=43 // pred_check_branch
          %321 = sbr.rel (%p319) target = $region48
        $region47: #{attn_block.5} parent=43 // pred_region
          %323 = dma.done %s315, 4096
        $region48: #{attn_block.5} parent=43 // pred_fallthru
          _
        %s324 = smul.u32 32, %s29
        %p325 = scmp.lt.s32.totalorder %s28, 1
        %s326 = scalar_select %p325, %s28, 1
        %p327 = scmp.lt.s32.totalorder %s324, 31
        %s328 = scalar_select %p327, %s324, 31
        %s329 = smul.addr %s326, 32
        %s330 = sadd.s32 %s328, %s329
        %s331 = smul.addr %s330, 4
        %s332 = scalar_lea.vmem %s0, %s331
        %p333 = pneg %p65
        %p334 = pneg %p62
        %s335 = smul.u32 32, %s30
        %p336 = scmp.lt.s32.totalorder %s28, 1
        %s337 = scalar_select %p336, %s28, 1
        %p338 = scmp.lt.s32.totalorder %s335, 31
        %s339 = scalar_select %p338, %s335, 31
        %s340 = smul.addr %s337, 32
        %s341 = sadd.s32 %s339, %s340
        %s342 = smul.addr %s341, 4
        %s343 = scalar_lea.vmem %s1, %s342
        %p344 = pneg %p93
        %p345 = pneg %p90
        %s346 = smul.u32 32, %s30
        %p347 = scmp.lt.s32.totalorder %s28, 1
        %s348 = scalar_select %p347, %s28, 1
        %p349 = scmp.lt.s32.totalorder %s346, 31
        %s350 = scalar_select %p349, %s346, 31
        %s351 = smul.addr %s348, 32
        %s352 = sadd.s32 %s350, %s351
        %s353 = smul.addr %s352, 4
        %s354 = scalar_lea.vmem %s2, %s353
        %p355 = pneg %p121
        %p356 = pneg %p118
        %s357 = sand.u32 %s136, 1
        %s358 = scalar_lea.sflag [#allocation6], %s357
        %s359 = sand.u32 %s136, 1
        %s360 = smul.addr %s359, 256
        %s361 = scalar_lea.vmem [#allocation5], %s360
        %p362 = pneg %p149
        %p363 = pneg %p146
        %p364 = pneg %p170
        %p365 = pneg %p167
        %p366 = pneg %p191
        %p367 = pneg %p188
        %p368 = pneg %p219
        %p369 = pneg %p216
        %s370 = sand.u32 %s206, 1
        %s371 = scalar_lea.sflag [#allocation7], %s370
        %s372 = sand.u32 %s206, 1
        %s373 = smul.addr %s372, 256
        %s374 = scalar_lea.vmem [#allocation8], %s373
        %s375 = smul.u32 32, %s29
        %p376 = scmp.lt.s32.totalorder %s28, 1
        %s377 = scalar_select %p376, %s28, 1
        %p378 = scmp.lt.s32.totalorder %s375, 31
        %s379 = scalar_select %p378, %s375, 31
        %s380 = smul.addr %s377, 32
        %s381 = sadd.s32 %s379, %s380
        %s382 = smul.addr %s381, 4
        %s383 = scalar_lea.vmem %s0, %s382
        %s384 = smul.u32 32, %s29
        %s385 = smul.u32 32, %s30
        %p386 = scmp.lt.s32.totalorder %s28, 1
        %s387 = scalar_select %p386, %s28, 1
        %p388 = scmp.lt.s32.totalorder %s385, 31
        %s389 = scalar_select %p388, %s385, 31
        %s390 = smul.addr %s387, 32
        %s391 = sadd.s32 %s389, %s390
        %s392 = smul.addr %s391, 4
        %s393 = scalar_lea.vmem %s1, %s392
        %s394 = smul.u32 32, %s30
        %s395 = smul.u32 32, %s30
        %p396 = scmp.lt.s32.totalorder %s28, 1
        %s397 = scalar_select %p396, %s28, 1
        %p398 = scmp.lt.s32.totalorder %s395, 31
        %s399 = scalar_select %p398, %s395, 31
        %s400 = smul.addr %s397, 32
        %s401 = sadd.s32 %s399, %s400
        %s402 = smul.addr %s401, 4
        %s403 = scalar_lea.vmem %s2, %s402
        %s404 = smul.u32 32, %s30
        %s405 = smul.u32 32, %s29
        %s406 = smul.u32 32, %s29
        %p407 = scmp.eq.s32.totalorder %s30, 0
        // Predicated region
        $region49: #{attn_block.5} parent=43 // pred_check
          %p408 = pneg %p407
        $region50: #{attn_block.5} parent=43 // pred_check_branch
          %410 = sbr.rel (%p408) target = $region52
        $region51: #{attn_block.5} parent=43 // pred_region
          %vm411 = vcmask 7168
          %412 = vst.msk [vmem:[#allocation2] sm:$0xff] %vm411, -inf
          %413 = vst.msk [vmem:[#allocation2 + $0x8] sm:$0xff] %vm411, -inf
          %414 = vst.msk [vmem:[#allocation2 + $0x10] sm:$0xff] %vm411, -inf
          %415 = vst.msk [vmem:[#allocation2 + $0x18] sm:$0xff] %vm411, -inf
          %416 = vst.msk [vmem:[#allocation2 + $0x20] sm:$0xff] %vm411, -inf
          %417 = vst.msk [vmem:[#allocation2 + $0x28] sm:$0xff] %vm411, -inf
          %418 = vst.msk [vmem:[#allocation2 + $0x30] sm:$0xff] %vm411, -inf
          %419 = vst.msk [vmem:[#allocation2 + $0x38] sm:$0xff] %vm411, -inf
          %420 = vst.msk [vmem:[#allocation2 + $0x40] sm:$0xff] %vm411, -inf
          %421 = vst.msk [vmem:[#allocation2 + $0x48] sm:$0xff] %vm411, -inf
          %422 = vst.msk [vmem:[#allocation2 + $0x50] sm:$0xff] %vm411, -inf
          %423 = vst.msk [vmem:[#allocation2 + $0x58] sm:$0xff] %vm411, -inf
          %424 = vst.msk [vmem:[#allocation2 + $0x60] sm:$0xff] %vm411, -inf
          %425 = vst.msk [vmem:[#allocation2 + $0x68] sm:$0xff] %vm411, -inf
          %426 = vst.msk [vmem:[#allocation2 + $0x70] sm:$0xff] %vm411, -inf
          %427 = vst.msk [vmem:[#allocation2 + $0x78] sm:$0xff] %vm411, -inf
          %428 = vst.msk [vmem:[#allocation2 + $0x80] sm:$0xff] %vm411, -inf
          %429 = vst.msk [vmem:[#allocation2 + $0x88] sm:$0xff] %vm411, -inf
          %430 = vst.msk [vmem:[#allocation2 + $0x90] sm:$0xff] %vm411, -inf
          %431 = vst.msk [vmem:[#allocation2 + $0x98] sm:$0xff] %vm411, -inf
          %432 = vst.msk [vmem:[#allocation2 + $0xa0] sm:$0xff] %vm411, -inf
          %433 = vst.msk [vmem:[#allocation2 + $0xa8] sm:$0xff] %vm411, -inf
          %434 = vst.msk [vmem:[#allocation2 + $0xb0] sm:$0xff] %vm411, -inf
          %435 = vst.msk [vmem:[#allocation2 + $0xb8] sm:$0xff] %vm411, -inf
          %436 = vst.msk [vmem:[#allocation2 + $0xc0] sm:$0xff] %vm411, -inf
          %437 = vst.msk [vmem:[#allocation2 + $0xc8] sm:$0xff] %vm411, -inf
          %438 = vst.msk [vmem:[#allocation2 + $0xd0] sm:$0xff] %vm411, -inf
          %439 = vst.msk [vmem:[#allocation2 + $0xd8] sm:$0xff] %vm411, -inf
          %440 = vst.msk [vmem:[#allocation2 + $0xe0] sm:$0xff] %vm411, -inf
          %441 = vst.msk [vmem:[#allocation2 + $0xe8] sm:$0xff] %vm411, -inf
          %442 = vst.msk [vmem:[#allocation2 + $0xf0] sm:$0xff] %vm411, -inf
          %443 = vst.msk [vmem:[#allocation2 + $0xf8] sm:$0xff] %vm411, -inf
          %444 = vst.msk [vmem:[#allocation3] sm:$0xff] %vm411, 0.0
          %445 = vst.msk [vmem:[#allocation3 + $0x8] sm:$0xff] %vm411, 0.0
          %446 = vst.msk [vmem:[#allocation3 + $0x10] sm:$0xff] %vm411, 0.0
          %447 = vst.msk [vmem:[#allocation3 + $0x18] sm:$0xff] %vm411, 0.0
          %448 = vst.msk [vmem:[#allocation3 + $0x20] sm:$0xff] %vm411, 0.0
          %449 = vst.msk [vmem:[#allocation3 + $0x28] sm:$0xff] %vm411, 0.0
          %450 = vst.msk [vmem:[#allocation3 + $0x30] sm:$0xff] %vm411, 0.0
          %451 = vst.msk [vmem:[#allocation3 + $0x38] sm:$0xff] %vm411, 0.0
          %452 = vst.msk [vmem:[#allocation3 + $0x40] sm:$0xff] %vm411, 0.0
          %453 = vst.msk [vmem:[#allocation3 + $0x48] sm:$0xff] %vm411, 0.0
          %454 = vst.msk [vmem:[#allocation3 + $0x50] sm:$0xff] %vm411, 0.0
          %455 = vst.msk [vmem:[#allocation3 + $0x58] sm:$0xff] %vm411, 0.0
          %456 = vst.msk [vmem:[#allocation3 + $0x60] sm:$0xff] %vm411, 0.0
          %457 = vst.msk [vmem:[#allocation3 + $0x68] sm:$0xff] %vm411, 0.0
          %458 = vst.msk [vmem:[#allocation3 + $0x70] sm:$0xff] %vm411, 0.0
          %459 = vst.msk [vmem:[#allocation3 + $0x78] sm:$0xff] %vm411, 0.0
          %460 = vst.msk [vmem:[#allocation3 + $0x80] sm:$0xff] %vm411, 0.0
          %461 = vst.msk [vmem:[#allocation3 + $0x88] sm:$0xff] %vm411, 0.0
          %462 = vst.msk [vmem:[#allocation3 + $0x90] sm:$0xff] %vm411, 0.0
          %463 = vst.msk [vmem:[#allocation3 + $0x98] sm:$0xff] %vm411, 0.0
          %464 = vst.msk [vmem:[#allocation3 + $0xa0] sm:$0xff] %vm411, 0.0
          %465 = vst.msk [vmem:[#allocation3 + $0xa8] sm:$0xff] %vm411, 0.0
          %466 = vst.msk [vmem:[#allocation3 + $0xb0] sm:$0xff] %vm411, 0.0
          %467 = vst.msk [vmem:[#allocation3 + $0xb8] sm:$0xff] %vm411, 0.0
          %468 = vst.msk [vmem:[#allocation3 + $0xc0] sm:$0xff] %vm411, 0.0
          %469 = vst.msk [vmem:[#allocation3 + $0xc8] sm:$0xff] %vm411, 0.0
          %470 = vst.msk [vmem:[#allocation3 + $0xd0] sm:$0xff] %vm411, 0.0
          %471 = vst.msk [vmem:[#allocation3 + $0xd8] sm:$0xff] %vm411, 0.0
          %472 = vst.msk [vmem:[#allocation3 + $0xe0] sm:$0xff] %vm411, 0.0
          %473 = vst.msk [vmem:[#allocation3 + $0xe8] sm:$0xff] %vm411, 0.0
          %474 = vst.msk [vmem:[#allocation3 + $0xf0] sm:$0xff] %vm411, 0.0
          %475 = vst.msk [vmem:[#allocation3 + $0xf8] sm:$0xff] %vm411, 0.0
          %476 = vst [vmem:[#allocation4] sm:$0xff] 0.0
          %477 = vst [vmem:[#allocation4 + $0x8] sm:$0xff] 0.0
          %478 = vst [vmem:[#allocation4 + $0x10] sm:$0xff] 0.0
          %479 = vst [vmem:[#allocation4 + $0x18] sm:$0xff] 0.0
          %480 = vst [vmem:[#allocation4 + $0x20] sm:$0xff] 0.0
          %481 = vst [vmem:[#allocation4 + $0x28] sm:$0xff] 0.0
          %482 = vst [vmem:[#allocation4 + $0x30] sm:$0xff] 0.0
          %483 = vst [vmem:[#allocation4 + $0x38] sm:$0xff] 0.0
          %484 = vst [vmem:[#allocation4 + $0x40] sm:$0xff] 0.0
          %485 = vst [vmem:[#allocation4 + $0x48] sm:$0xff] 0.0
          %486 = vst [vmem:[#allocation4 + $0x50] sm:$0xff] 0.0
          %487 = vst [vmem:[#allocation4 + $0x58] sm:$0xff] 0.0
          %488 = vst [vmem:[#allocation4 + $0x60] sm:$0xff] 0.0
          %489 = vst [vmem:[#allocation4 + $0x68] sm:$0xff] 0.0
          %490 = vst [vmem:[#allocation4 + $0x70] sm:$0xff] 0.0
          %491 = vst [vmem:[#allocation4 + $0x78] sm:$0xff] 0.0
          %492 = vst [vmem:[#allocation4 + $0x80] sm:$0xff] 0.0
          %493 = vst [vmem:[#allocation4 + $0x88] sm:$0xff] 0.0
          %494 = vst [vmem:[#allocation4 + $0x90] sm:$0xff] 0.0
          %495 = vst [vmem:[#allocation4 + $0x98] sm:$0xff] 0.0
          %496 = vst [vmem:[#allocation4 + $0xa0] sm:$0xff] 0.0
          %497 = vst [vmem:[#allocation4 + $0xa8] sm:$0xff] 0.0
          %498 = vst [vmem:[#allocation4 + $0xb0] sm:$0xff] 0.0
          %499 = vst [vmem:[#allocation4 + $0xb8] sm:$0xff] 0.0
          %500 = vst [vmem:[#allocation4 + $0xc0] sm:$0xff] 0.0
          %501 = vst [vmem:[#allocation4 + $0xc8] sm:$0xff] 0.0
          %502 = vst [vmem:[#allocation4 + $0xd0] sm:$0xff] 0.0
          %503 = vst [vmem:[#allocation4 + $0xd8] sm:$0xff] 0.0
          %504 = vst [vmem:[#allocation4 + $0xe0] sm:$0xff] 0.0
          %505 = vst [vmem:[#allocation4 + $0xe8] sm:$0xff] 0.0
          %506 = vst [vmem:[#allocation4 + $0xf0] sm:$0xff] 0.0
          %507 = vst [vmem:[#allocation4 + $0xf8] sm:$0xff] 0.0
        $region52: #{attn_block.5} parent=43 // pred_fallthru
          _
        %v508 = vld [vmem:[%s383] sm:$0xf]
        %v509 = vld [vmem:[%s383 + $0x4] sm:$0xf]
        %v510 = vld [vmem:[%s383 + $0x8] sm:$0xf]
        %v511 = vld [vmem:[%s383 + $0xc] sm:$0xf]
        %v512 = vld [vmem:[%s383 + $0x10] sm:$0xf]
        %v513 = vld [vmem:[%s383 + $0x14] sm:$0xf]
        %v514 = vld [vmem:[%s383 + $0x18] sm:$0xf]
        %v515 = vld [vmem:[%s383 + $0x1c] sm:$0xf]
        %v516 = vld [vmem:[%s383 + $0x20] sm:$0xf]
        %v517 = vld [vmem:[%s383 + $0x24] sm:$0xf]
        %v518 = vld [vmem:[%s383 + $0x28] sm:$0xf]
        %v519 = vld [vmem:[%s383 + $0x2c] sm:$0xf]
        %v520 = vld [vmem:[%s383 + $0x30] sm:$0xf]
        %v521 = vld [vmem:[%s383 + $0x34] sm:$0xf]
        %v522 = vld [vmem:[%s383 + $0x38] sm:$0xf]
        %v523 = vld [vmem:[%s383 + $0x3c] sm:$0xf]
        %v524 = vld [vmem:[%s383 + $0x40] sm:$0xf]
        %v525 = vld [vmem:[%s383 + $0x44] sm:$0xf]
        %v526 = vld [vmem:[%s383 + $0x48] sm:$0xf]
        %v527 = vld [vmem:[%s383 + $0x4c] sm:$0xf]
        %v528 = vld [vmem:[%s383 + $0x50] sm:$0xf]
        %v529 = vld [vmem:[%s383 + $0x54] sm:$0xf]
        %v530 = vld [vmem:[%s383 + $0x58] sm:$0xf]
        %v531 = vld [vmem:[%s383 + $0x5c] sm:$0xf]
        %v532 = vld [vmem:[%s383 + $0x60] sm:$0xf]
        %v533 = vld [vmem:[%s383 + $0x64] sm:$0xf]
        %v534 = vld [vmem:[%s383 + $0x68] sm:$0xf]
        %v535 = vld [vmem:[%s383 + $0x6c] sm:$0xf]
        %v536 = vld [vmem:[%s383 + $0x70] sm:$0xf]
        %v537 = vld [vmem:[%s383 + $0x74] sm:$0xf]
        %v538 = vld [vmem:[%s383 + $0x78] sm:$0xf]
        %v539 = vld [vmem:[%s383 + $0x7c] sm:$0xf]
        %v540 = vld [vmem:[%s393] sm:$0xf]
        %v541 = vld [vmem:[%s393 + $0x4] sm:$0xf]
        %v542 = vld [vmem:[%s393 + $0x8] sm:$0xf]
        %v543 = vld [vmem:[%s393 + $0xc] sm:$0xf]
        %v544 = vld [vmem:[%s393 + $0x10] sm:$0xf]
        %v545 = vld [vmem:[%s393 + $0x14] sm:$0xf]
        %v546 = vld [vmem:[%s393 + $0x18] sm:$0xf]
        %v547 = vld [vmem:[%s393 + $0x1c] sm:$0xf]
        %v548 = vld [vmem:[%s393 + $0x20] sm:$0xf]
        %v549 = vld [vmem:[%s393 + $0x24] sm:$0xf]
        %v550 = vld [vmem:[%s393 + $0x28] sm:$0xf]
        %v551 = vld [vmem:[%s393 + $0x2c] sm:$0xf]
        %v552 = vld [vmem:[%s393 + $0x30] sm:$0xf]
        %v553 = vld [vmem:[%s393 + $0x34] sm:$0xf]
        %v554 = vld [vmem:[%s393 + $0x38] sm:$0xf]
        %v555 = vld [vmem:[%s393 + $0x3c] sm:$0xf]
        %v556 = vld [vmem:[%s393 + $0x40] sm:$0xf]
        %v557 = vld [vmem:[%s393 + $0x44] sm:$0xf]
        %v558 = vld [vmem:[%s393 + $0x48] sm:$0xf]
        %v559 = vld [vmem:[%s393 + $0x4c] sm:$0xf]
        %v560 = vld [vmem:[%s393 + $0x50] sm:$0xf]
        %v561 = vld [vmem:[%s393 + $0x54] sm:$0xf]
        %v562 = vld [vmem:[%s393 + $0x58] sm:$0xf]
        %v563 = vld [vmem:[%s393 + $0x5c] sm:$0xf]
        %v564 = vld [vmem:[%s393 + $0x60] sm:$0xf]
        %v565 = vld [vmem:[%s393 + $0x64] sm:$0xf]
        %v566 = vld [vmem:[%s393 + $0x68] sm:$0xf]
        %v567 = vld [vmem:[%s393 + $0x6c] sm:$0xf]
        %v568 = vld [vmem:[%s393 + $0x70] sm:$0xf]
        %v569 = vld [vmem:[%s393 + $0x74] sm:$0xf]
        %v570 = vld [vmem:[%s393 + $0x78] sm:$0xf]
        %v571 = vld [vmem:[%s393 + $0x7c] sm:$0xf]
        %v604 = vunpack.c.l.b16 %v508
        %v605 = vunpack.c.l.b16 %v509
        %v606 = vunpack.c.l.b16 %v510
        %v607 = vunpack.c.l.b16 %v511
        %v608 = vunpack.c.l.b16 %v512
        %v609 = vunpack.c.l.b16 %v513
        %v610 = vunpack.c.l.b16 %v514
        %v611 = vunpack.c.l.b16 %v515
        %v612 = vunpack.c.l.b16 %v516
        %v613 = vunpack.c.l.b16 %v517
        %v614 = vunpack.c.l.b16 %v518
        %v615 = vunpack.c.l.b16 %v519
        %v616 = vunpack.c.l.b16 %v520
        %v617 = vunpack.c.l.b16 %v521
        %v618 = vunpack.c.l.b16 %v522
        %v619 = vunpack.c.l.b16 %v523
        %v620 = vunpack.c.l.b16 %v524
        %v621 = vunpack.c.l.b16 %v525
        %v622 = vunpack.c.l.b16 %v526
        %v623 = vunpack.c.l.b16 %v527
        %v624 = vunpack.c.l.b16 %v528
        %v625 = vunpack.c.l.b16 %v529
        %v626 = vunpack.c.l.b16 %v530
        %v627 = vunpack.c.l.b16 %v531
        %v628 = vunpack.c.l.b16 %v532
        %v629 = vunpack.c.l.b16 %v533
        %v630 = vunpack.c.l.b16 %v534
        %v631 = vunpack.c.l.b16 %v535
        %v632 = vunpack.c.l.b16 %v536
        %v633 = vunpack.c.l.b16 %v537
        %v634 = vunpack.c.l.b16 %v538
        %v635 = vunpack.c.l.b16 %v539
        %v636 = vpack.c.b16 %v605, %v604
        %v637 = vpack.c.b16 %v607, %v606
        %v638 = vpack.c.b16 %v609, %v608
        %v639 = vpack.c.b16 %v611, %v610
        %v640 = vpack.c.b16 %v613, %v612
        %v641 = vpack.c.b16 %v615, %v614
        %v642 = vpack.c.b16 %v617, %v616
        %v643 = vpack.c.b16 %v619, %v618
        %v644 = vpack.c.b16 %v621, %v620
        %v645 = vpack.c.b16 %v623, %v622
        %v646 = vpack.c.b16 %v625, %v624
        %v647 = vpack.c.b16 %v627, %v626
        %v648 = vpack.c.b16 %v629, %v628
        %v649 = vpack.c.b16 %v631, %v630
        %v650 = vpack.c.b16 %v633, %v632
        %v651 = vpack.c.b16 %v635, %v634
        %v700 = vunpack.c.l.b16 %v540
        %v701 = vunpack.c.l.b16 %v541
        %v702 = vunpack.c.l.b16 %v542
        %v703 = vunpack.c.l.b16 %v543
        %v704 = vunpack.c.l.b16 %v544
        %v705 = vunpack.c.l.b16 %v545
        %v706 = vunpack.c.l.b16 %v546
        %v707 = vunpack.c.l.b16 %v547
        %v708 = vunpack.c.l.b16 %v548
        %v709 = vunpack.c.l.b16 %v549
        %v710 = vunpack.c.l.b16 %v550
        %v711 = vunpack.c.l.b16 %v551
        %v712 = vunpack.c.l.b16 %v552
        %v713 = vunpack.c.l.b16 %v553
        %v714 = vunpack.c.l.b16 %v554
        %v715 = vunpack.c.l.b16 %v555
        %v716 = vunpack.c.l.b16 %v556
        %v717 = vunpack.c.l.b16 %v557
        %v718 = vunpack.c.l.b16 %v558
        %v719 = vunpack.c.l.b16 %v559
        %v720 = vunpack.c.l.b16 %v560
        %v721 = vunpack.c.l.b16 %v561
        %v722 = vunpack.c.l.b16 %v562
        %v723 = vunpack.c.l.b16 %v563
        %v724 = vunpack.c.l.b16 %v564
        %v725 = vunpack.c.l.b16 %v565
        %v726 = vunpack.c.l.b16 %v566
        %v727 = vunpack.c.l.b16 %v567
        %v728 = vunpack.c.l.b16 %v568
        %v729 = vunpack.c.l.b16 %v569
        %v730 = vunpack.c.l.b16 %v570
        %v731 = vunpack.c.l.b16 %v571
        %v732 = vpack.c.b16 %v701, %v700
        %v733 = vpack.c.b16 %v703, %v702
        %v734 = vpack.c.b16 %v705, %v704
        %v735 = vpack.c.b16 %v707, %v706
        %v736 = vpack.c.b16 %v709, %v708
        %v737 = vpack.c.b16 %v711, %v710
        %v738 = vpack.c.b16 %v713, %v712
        %v739 = vpack.c.b16 %v715, %v714
        %v740 = vpack.c.b16 %v717, %v716
        %v741 = vpack.c.b16 %v719, %v718
        %v742 = vpack.c.b16 %v721, %v720
        %v743 = vpack.c.b16 %v723, %v722
        %v744 = vpack.c.b16 %v725, %v724
        %v745 = vpack.c.b16 %v727, %v726
        %v746 = vpack.c.b16 %v729, %v728
        %v747 = vpack.c.b16 %v731, %v730
        %764 = vmatpush.bf16.xpose.msra.mxu0 %v739
        %765 = vmatpush.bf16.xpose.msra.mxu0 %v738
        %766 = vmatpush.bf16.xpose.msra.mxu0 %v737
        %767 = vmatpush.bf16.xpose.msra.mxu0 %v736
        %768 = vmatpush.bf16.xpose.msra.mxu0 %v735
        %769 = vmatpush.bf16.xpose.msra.mxu0 %v734
        %770 = vmatpush.bf16.xpose.msra.mxu0 %v733
        %771 = vmatpush.bf16.xpose.msra.mxu0 %v732
        %772 = vmatmul.bf16.gmra.mxu0 %v636
        %v773 = vpop.f32.mrf.mxu0
        %v774 = vadd.f32 0.0, %v773
        %v775 = vpop.f32.mrf.mxu0
        %v776 = vadd.f32 0.0, %v775
        %777 = vmatmul.bf16.gmra.mxu0 %v637
        %v778 = vpop.f32.mrf.mxu0
        %v779 = vadd.f32 0.0, %v778
        %v780 = vpop.f32.mrf.mxu0
        %v781 = vadd.f32 0.0, %v780
        %782 = vmatmul.bf16.gmra.mxu0 %v638
        %v783 = vpop.f32.mrf.mxu0
        %v784 = vadd.f32 0.0, %v783
        %v785 = vpop.f32.mrf.mxu0
        %v786 = vadd.f32 0.0, %v785
        %787 = vmatmul.bf16.gmra.mxu0 %v639
        %v788 = vpop.f32.mrf.mxu0
        %v789 = vadd.f32 0.0, %v788
        %v790 = vpop.f32.mrf.mxu0
        %v791 = vadd.f32 0.0, %v790
        %792 = vmatmul.bf16.gmra.mxu0 %v640
        %v793 = vpop.f32.mrf.mxu0
        %v794 = vadd.f32 0.0, %v793
        %v795 = vpop.f32.mrf.mxu0
        %v796 = vadd.f32 0.0, %v795
        %797 = vmatmul.bf16.gmra.mxu0 %v641
        %v798 = vpop.f32.mrf.mxu0
        %v799 = vadd.f32 0.0, %v798
        %v800 = vpop.f32.mrf.mxu0
        %v801 = vadd.f32 0.0, %v800
        %802 = vmatmul.bf16.gmra.mxu0 %v642
        %v803 = vpop.f32.mrf.mxu0
        %v804 = vadd.f32 0.0, %v803
        %v805 = vpop.f32.mrf.mxu0
        %v806 = vadd.f32 0.0, %v805
        %807 = vmatmul.bf16.gmra.mxu0 %v643
        %v808 = vpop.f32.mrf.mxu0
        %v809 = vadd.f32 0.0, %v808
        %v810 = vpop.f32.mrf.mxu0
        %v811 = vadd.f32 0.0, %v810
        %812 = vmatmul.bf16.gmra.mxu0 %v644
        %v813 = vpop.f32.mrf.mxu0
        %v814 = vadd.f32 0.0, %v813
        %v815 = vpop.f32.mrf.mxu0
        %v816 = vadd.f32 0.0, %v815
        %817 = vmatmul.bf16.gmra.mxu0 %v645
        %v818 = vpop.f32.mrf.mxu0
        %v819 = vadd.f32 0.0, %v818
        %v820 = vpop.f32.mrf.mxu0
        %v821 = vadd.f32 0.0, %v820
        %822 = vmatmul.bf16.gmra.mxu0 %v646
        %v823 = vpop.f32.mrf.mxu0
        %v824 = vadd.f32 0.0, %v823
        %v825 = vpop.f32.mrf.mxu0
        %v826 = vadd.f32 0.0, %v825
        %827 = vmatmul.bf16.gmra.mxu0 %v647
        %v828 = vpop.f32.mrf.mxu0
        %v829 = vadd.f32 0.0, %v828
        %v830 = vpop.f32.mrf.mxu0
        %v831 = vadd.f32 0.0, %v830
        %832 = vmatmul.bf16.gmra.mxu0 %v648
        %v833 = vpop.f32.mrf.mxu0
        %v834 = vadd.f32 0.0, %v833
        %v835 = vpop.f32.mrf.mxu0
        %v836 = vadd.f32 0.0, %v835
        %837 = vmatmul.bf16.gmra.mxu0 %v649
        %v838 = vpop.f32.mrf.mxu0
        %v839 = vadd.f32 0.0, %v838
        %v840 = vpop.f32.mrf.mxu0
        %v841 = vadd.f32 0.0, %v840
        %842 = vmatmul.bf16.gmra.mxu0 %v650
        %v843 = vpop.f32.mrf.mxu0
        %v844 = vadd.f32 0.0, %v843
        %v845 = vpop.f32.mrf.mxu0
        %v846 = vadd.f32 0.0, %v845
        %847 = vmatmul.bf16.gmra.mxu0 %v651
        %v848 = vpop.f32.mrf.mxu0
        %v849 = vadd.f32 0.0, %v848
        %v850 = vpop.f32.mrf.mxu0
        %v851 = vadd.f32 0.0, %v850
        %852 = vdwg.mxu0
        %853 = vmatpush.bf16.xpose.msra.mxu0 %v747
        %854 = vmatpush.bf16.xpose.msra.mxu0 %v746
        %855 = vmatpush.bf16.xpose.msra.mxu0 %v745
        %856 = vmatpush.bf16.xpose.msra.mxu0 %v744
        %857 = vmatpush.bf16.xpose.msra.mxu0 %v743
        %858 = vmatpush.bf16.xpose.msra.mxu0 %v742
        %859 = vmatpush.bf16.xpose.msra.mxu0 %v741
        %860 = vmatpush.bf16.xpose.msra.mxu0 %v740
        %861 = vmatmul.bf16.gmra.mxu0 %v636
        %v862 = vpop.f32.mrf.mxu0
        %v863 = vadd.f32 0.0, %v862
        %v864 = vpop.f32.mrf.mxu0
        %v865 = vadd.f32 0.0, %v864
        %866 = vmatmul.bf16.gmra.mxu0 %v637
        %v867 = vpop.f32.mrf.mxu0
        %v868 = vadd.f32 0.0, %v867
        %v869 = vpop.f32.mrf.mxu0
        %v870 = vadd.f32 0.0, %v869
        %871 = vmatmul.bf16.gmra.mxu0 %v638
        %v872 = vpop.f32.mrf.mxu0
        %v873 = vadd.f32 0.0, %v872
        %v874 = vpop.f32.mrf.mxu0
        %v875 = vadd.f32 0.0, %v874
        %876 = vmatmul.bf16.gmra.mxu0 %v639
        %v877 = vpop.f32.mrf.mxu0
        %v878 = vadd.f32 0.0, %v877
        %v879 = vpop.f32.mrf.mxu0
        %v880 = vadd.f32 0.0, %v879
        %881 = vmatmul.bf16.gmra.mxu0 %v640
        %v882 = vpop.f32.mrf.mxu0
        %v883 = vadd.f32 0.0, %v882
        %v884 = vpop.f32.mrf.mxu0
        %v885 = vadd.f32 0.0, %v884
        %886 = vmatmul.bf16.gmra.mxu0 %v641
        %v887 = vpop.f32.mrf.mxu0
        %v888 = vadd.f32 0.0, %v887
        %v889 = vpop.f32.mrf.mxu0
        %v890 = vadd.f32 0.0, %v889
        %891 = vmatmul.bf16.gmra.mxu0 %v642
        %v892 = vpop.f32.mrf.mxu0
        %v893 = vadd.f32 0.0, %v892
        %v894 = vpop.f32.mrf.mxu0
        %v895 = vadd.f32 0.0, %v894
        %896 = vmatmul.bf16.gmra.mxu0 %v643
        %v897 = vpop.f32.mrf.mxu0
        %v898 = vadd.f32 0.0, %v897
        %v899 = vpop.f32.mrf.mxu0
        %v900 = vadd.f32 0.0, %v899
        %901 = vmatmul.bf16.gmra.mxu0 %v644
        %v902 = vpop.f32.mrf.mxu0
        %v903 = vadd.f32 0.0, %v902
        %v904 = vpop.f32.mrf.mxu0
        %v905 = vadd.f32 0.0, %v904
        %906 = vmatmul.bf16.gmra.mxu0 %v645
        %v907 = vpop.f32.mrf.mxu0
        %v908 = vadd.f32 0.0, %v907
        %v909 = vpop.f32.mrf.mxu0
        %v910 = vadd.f32 0.0, %v909
        %911 = vmatmul.bf16.gmra.mxu0 %v646
        %v912 = vpop.f32.mrf.mxu0
        %v913 = vadd.f32 0.0, %v912
        %v914 = vpop.f32.mrf.mxu0
        %v915 = vadd.f32 0.0, %v914
        %916 = vmatmul.bf16.gmra.mxu0 %v647
        %v917 = vpop.f32.mrf.mxu0
        %v918 = vadd.f32 0.0, %v917
        %v919 = vpop.f32.mrf.mxu0
        %v920 = vadd.f32 0.0, %v919
        %921 = vmatmul.bf16.gmra.mxu0 %v648
        %v922 = vpop.f32.mrf.mxu0
        %v923 = vadd.f32 0.0, %v922
        %v924 = vpop.f32.mrf.mxu0
        %v925 = vadd.f32 0.0, %v924
        %926 = vmatmul.bf16.gmra.mxu0 %v649
        %v927 = vpop.f32.mrf.mxu0
        %v928 = vadd.f32 0.0, %v927
        %v929 = vpop.f32.mrf.mxu0
        %v930 = vadd.f32 0.0, %v929
        %931 = vmatmul.bf16.gmra.mxu0 %v650
        %v932 = vpop.f32.mrf.mxu0
        %v933 = vadd.f32 0.0, %v932
        %v934 = vpop.f32.mrf.mxu0
        %v935 = vadd.f32 0.0, %v934
        %936 = vmatmul.bf16.gmra.mxu0 %v651
        %v937 = vpop.f32.mrf.mxu0
        %v938 = vadd.f32 0.0, %v937
        %v939 = vpop.f32.mrf.mxu0
        %v940 = vadd.f32 0.0, %v939
        %941 = vdwg.mxu0
        %v942 = vld [vmem:[#allocation2] sm:$0xff]
        %v943 = vld [vmem:[#allocation2 + $0x8] sm:$0xff]
        %v944 = vld [vmem:[#allocation2 + $0x10] sm:$0xff]
        %v945 = vld [vmem:[#allocation2 + $0x18] sm:$0xff]
        %v946 = vld [vmem:[#allocation2 + $0x20] sm:$0xff]
        %v947 = vld [vmem:[#allocation2 + $0x28] sm:$0xff]
        %v948 = vld [vmem:[#allocation2 + $0x30] sm:$0xff]
        %v949 = vld [vmem:[#allocation2 + $0x38] sm:$0xff]
        %v950 = vld [vmem:[#allocation2 + $0x40] sm:$0xff]
        %v951 = vld [vmem:[#allocation2 + $0x48] sm:$0xff]
        %v952 = vld [vmem:[#allocation2 + $0x50] sm:$0xff]
        %v953 = vld [vmem:[#allocation2 + $0x58] sm:$0xff]
        %v954 = vld [vmem:[#allocation2 + $0x60] sm:$0xff]
        %v955 = vld [vmem:[#allocation2 + $0x68] sm:$0xff]
        %v956 = vld [vmem:[#allocation2 + $0x70] sm:$0xff]
        %v957 = vld [vmem:[#allocation2 + $0x78] sm:$0xff]
        %v958 = vld [vmem:[#allocation2 + $0x80] sm:$0xff]
        %v959 = vld [vmem:[#allocation2 + $0x88] sm:$0xff]
        %v960 = vld [vmem:[#allocation2 + $0x90] sm:$0xff]
        %v961 = vld [vmem:[#allocation2 + $0x98] sm:$0xff]
        %v962 = vld [vmem:[#allocation2 + $0xa0] sm:$0xff]
        %v963 = vld [vmem:[#allocation2 + $0xa8] sm:$0xff]
        %v964 = vld [vmem:[#allocation2 + $0xb0] sm:$0xff]
        %v965 = vld [vmem:[#allocation2 + $0xb8] sm:$0xff]
        %v966 = vld [vmem:[#allocation2 + $0xc0] sm:$0xff]
        %v967 = vld [vmem:[#allocation2 + $0xc8] sm:$0xff]
        %v968 = vld [vmem:[#allocation2 + $0xd0] sm:$0xff]
        %v969 = vld [vmem:[#allocation2 + $0xd8] sm:$0xff]
        %v970 = vld [vmem:[#allocation2 + $0xe0] sm:$0xff]
        %v971 = vld [vmem:[#allocation2 + $0xe8] sm:$0xff]
        %v972 = vld [vmem:[#allocation2 + $0xf0] sm:$0xff]
        %v973 = vld [vmem:[#allocation2 + $0xf8] sm:$0xff]
        %v974 = vmax.f32 %v774, %v863
        %975 = vmax.xlane.f32.xlu0 %v974
        %v976 = vpop.xlane.xlu0 %975
        %v977 = vmax.f32 %v776, %v865
        %978 = vmax.xlane.f32.xlu0 %v977
        %v979 = vpop.xlane.xlu0 %978
        %v980 = vmax.f32 %v779, %v868
        %981 = vmax.xlane.f32.xlu0 %v980
        %v982 = vpop.xlane.xlu0 %981
        %v983 = vmax.f32 %v781, %v870
        %984 = vmax.xlane.f32.xlu0 %v983
        %v985 = vpop.xlane.xlu0 %984
        %v986 = vmax.f32 %v784, %v873
        %987 = vmax.xlane.f32.xlu0 %v986
        %v988 = vpop.xlane.xlu0 %987
        %v989 = vmax.f32 %v786, %v875
        %990 = vmax.xlane.f32.xlu0 %v989
        %v991 = vpop.xlane.xlu0 %990
        %v992 = vmax.f32 %v789, %v878
        %993 = vmax.xlane.f32.xlu0 %v992
        %v994 = vpop.xlane.xlu0 %993
        %v995 = vmax.f32 %v791, %v880
        %996 = vmax.xlane.f32.xlu0 %v995
        %v997 = vpop.xlane.xlu0 %996
        %v998 = vmax.f32 %v794, %v883
        %999 = vmax.xlane.f32.xlu0 %v998
        %v1000 = vpop.xlane.xlu0 %999
        %v1001 = vmax.f32 %v796, %v885
        %1002 = vmax.xlane.f32.xlu0 %v1001
        %v1003 = vpop.xlane.xlu0 %1002
        %v1004 = vmax.f32 %v799, %v888
        %1005 = vmax.xlane.f32.xlu0 %v1004
        %v1006 = vpop.xlane.xlu0 %1005
        %v1007 = vmax.f32 %v801, %v890
        %1008 = vmax.xlane.f32.xlu0 %v1007
        %v1009 = vpop.xlane.xlu0 %1008
        %v1010 = vmax.f32 %v804, %v893
        %1011 = vmax.xlane.f32.xlu0 %v1010
        %v1012 = vpop.xlane.xlu0 %1011
        %v1013 = vmax.f32 %v806, %v895
        %1014 = vmax.xlane.f32.xlu0 %v1013
        %v1015 = vpop.xlane.xlu0 %1014
        %v1016 = vmax.f32 %v809, %v898
        %1017 = vmax.xlane.f32.xlu0 %v1016
        %v1018 = vpop.xlane.xlu0 %1017
        %v1019 = vmax.f32 %v811, %v900
        %1020 = vmax.xlane.f32.xlu0 %v1019
        %v1021 = vpop.xlane.xlu0 %1020
        %v1022 = vmax.f32 %v814, %v903
        %1023 = vmax.xlane.f32.xlu0 %v1022
        %v1024 = vpop.xlane.xlu0 %1023
        %v1025 = vmax.f32 %v816, %v905
        %1026 = vmax.xlane.f32.xlu0 %v1025
        %v1027 = vpop.xlane.xlu0 %1026
        %v1028 = vmax.f32 %v819, %v908
        %1029 = vmax.xlane.f32.xlu0 %v1028
        %v1030 = vpop.xlane.xlu0 %1029
        %v1031 = vmax.f32 %v821, %v910
        %1032 = vmax.xlane.f32.xlu0 %v1031
        %v1033 = vpop.xlane.xlu0 %1032
        %v1034 = vmax.f32 %v824, %v913
        %1035 = vmax.xlane.f32.xlu0 %v1034
        %v1036 = vpop.xlane.xlu0 %1035
        %v1037 = vmax.f32 %v826, %v915
        %1038 = vmax.xlane.f32.xlu0 %v1037
        %v1039 = vpop.xlane.xlu0 %1038
        %v1040 = vmax.f32 %v829, %v918
        %1041 = vmax.xlane.f32.xlu0 %v1040
        %v1042 = vpop.xlane.xlu0 %1041
        %v1043 = vmax.f32 %v831, %v920
        %1044 = vmax.xlane.f32.xlu0 %v1043
        %v1045 = vpop.xlane.xlu0 %1044
        %v1046 = vmax.f32 %v834, %v923
        %1047 = vmax.xlane.f32.xlu0 %v1046
        %v1048 = vpop.xlane.xlu0 %1047
        %v1049 = vmax.f32 %v836, %v925
        %1050 = vmax.xlane.f32.xlu0 %v1049
        %v1051 = vpop.xlane.xlu0 %1050
        %v1052 = vmax.f32 %v839, %v928
        %1053 = vmax.xlane.f32.xlu0 %v1052
        %v1054 = vpop.xlane.xlu0 %1053
        %v1055 = vmax.f32 %v841, %v930
        %1056 = vmax.xlane.f32.xlu0 %v1055
        %v1057 = vpop.xlane.xlu0 %1056
        %v1058 = vmax.f32 %v844, %v933
        %1059 = vmax.xlane.f32.xlu0 %v1058
        %v1060 = vpop.xlane.xlu0 %1059
        %v1061 = vmax.f32 %v846, %v935
        %1062 = vmax.xlane.f32.xlu0 %v1061
        %v1063 = vpop.xlane.xlu0 %1062
        %v1064 = vmax.f32 %v849, %v938
        %1065 = vmax.xlane.f32.xlu0 %v1064
        %v1066 = vpop.xlane.xlu0 %1065
        %v1067 = vmax.f32 %v851, %v940
        %1068 = vmax.xlane.f32.xlu0 %v1067
        %v1069 = vpop.xlane.xlu0 %1068
        %v1070 = vmax.f32 %v942, %v976
        %v1071 = vmax.f32 %v943, %v979
        %v1072 = vmax.f32 %v944, %v982
        %v1073 = vmax.f32 %v945, %v985
        %v1074 = vmax.f32 %v946, %v988
        %v1075 = vmax.f32 %v947, %v991
        %v1076 = vmax.f32 %v948, %v994
        %v1077 = vmax.f32 %v949, %v997
        %v1078 = vmax.f32 %v950, %v1000
        %v1079 = vmax.f32 %v951, %v1003
        %v1080 = vmax.f32 %v952, %v1006
        %v1081 = vmax.f32 %v953, %v1009
        %v1082 = vmax.f32 %v954, %v1012
        %v1083 = vmax.f32 %v955, %v1015
        %v1084 = vmax.f32 %v956, %v1018
        %v1085 = vmax.f32 %v957, %v1021
        %v1086 = vmax.f32 %v958, %v1024
        %v1087 = vmax.f32 %v959, %v1027
        %v1088 = vmax.f32 %v960, %v1030
        %v1089 = vmax.f32 %v961, %v1033
        %v1090 = vmax.f32 %v962, %v1036
        %v1091 = vmax.f32 %v963, %v1039
        %v1092 = vmax.f32 %v964, %v1042
        %v1093 = vmax.f32 %v965, %v1045
        %v1094 = vmax.f32 %v966, %v1048
        %v1095 = vmax.f32 %v967, %v1051
        %v1096 = vmax.f32 %v968, %v1054
        %v1097 = vmax.f32 %v969, %v1057
        %v1098 = vmax.f32 %v970, %v1060
        %v1099 = vmax.f32 %v971, %v1063
        %v1100 = vmax.f32 %v972, %v1066
        %v1101 = vmax.f32 %v973, %v1069
        %v1102 = vsub.f32 %v942, %v1070
        %v1103 = vsub.f32 %v943, %v1071
        %v1104 = vsub.f32 %v944, %v1072
        %v1105 = vsub.f32 %v945, %v1073
        %v1106 = vsub.f32 %v946, %v1074
        %v1107 = vsub.f32 %v947, %v1075
        %v1108 = vsub.f32 %v948, %v1076
        %v1109 = vsub.f32 %v949, %v1077
        %v1110 = vsub.f32 %v950, %v1078
        %v1111 = vsub.f32 %v951, %v1079
        %v1112 = vsub.f32 %v952, %v1080
        %v1113 = vsub.f32 %v953, %v1081
        %v1114 = vsub.f32 %v954, %v1082
        %v1115 = vsub.f32 %v955, %v1083
        %v1116 = vsub.f32 %v956, %v1084
        %v1117 = vsub.f32 %v957, %v1085
        %v1118 = vsub.f32 %v958, %v1086
        %v1119 = vsub.f32 %v959, %v1087
        %v1120 = vsub.f32 %v960, %v1088
        %v1121 = vsub.f32 %v961, %v1089
        %v1122 = vsub.f32 %v962, %v1090
        %v1123 = vsub.f32 %v963, %v1091
        %v1124 = vsub.f32 %v964, %v1092
        %v1125 = vsub.f32 %v965, %v1093
        %v1126 = vsub.f32 %v966, %v1094
        %v1127 = vsub.f32 %v967, %v1095
        %v1128 = vsub.f32 %v968, %v1096
        %v1129 = vsub.f32 %v969, %v1097
        %v1130 = vsub.f32 %v970, %v1098
        %v1131 = vsub.f32 %v971, %v1099
        %v1132 = vsub.f32 %v972, %v1100
        %v1133 = vsub.f32 %v973, %v1101
        %v1134 = vmul.f32 %v1102, 1.442695
        %v1135 = vpow.pop %v1134
        %v1136 = vmul.f32 %v1103, 1.442695
        %v1137 = vpow.pop %v1136
        %v1138 = vmul.f32 %v1104, 1.442695
        %v1139 = vpow.pop %v1138
        %v1140 = vmul.f32 %v1105, 1.442695
        %v1141 = vpow.pop %v1140
        %v1142 = vmul.f32 %v1106, 1.442695
        %v1143 = vpow.pop %v1142
        %v1144 = vmul.f32 %v1107, 1.442695
        %v1145 = vpow.pop %v1144
        %v1146 = vmul.f32 %v1108, 1.442695
        %v1147 = vpow.pop %v1146
        %v1148 = vmul.f32 %v1109, 1.442695
        %v1149 = vpow.pop %v1148
        %v1150 = vmul.f32 %v1110, 1.442695
        %v1151 = vpow.pop %v1150
        %v1152 = vmul.f32 %v1111, 1.442695
        %v1153 = vpow.pop %v1152
        %v1154 = vmul.f32 %v1112, 1.442695
        %v1155 = vpow.pop %v1154
        %v1156 = vmul.f32 %v1113, 1.442695
        %v1157 = vpow.pop %v1156
        %v1158 = vmul.f32 %v1114, 1.442695
        %v1159 = vpow.pop %v1158
        %v1160 = vmul.f32 %v1115, 1.442695
        %v1161 = vpow.pop %v1160
        %v1162 = vmul.f32 %v1116, 1.442695
        %v1163 = vpow.pop %v1162
        %v1164 = vmul.f32 %v1117, 1.442695
        %v1165 = vpow.pop %v1164
        %v1166 = vmul.f32 %v1118, 1.442695
        %v1167 = vpow.pop %v1166
        %v1168 = vmul.f32 %v1119, 1.442695
        %v1169 = vpow.pop %v1168
        %v1170 = vmul.f32 %v1120, 1.442695
        %v1171 = vpow.pop %v1170
        %v1172 = vmul.f32 %v1121, 1.442695
        %v1173 = vpow.pop %v1172
        %v1174 = vmul.f32 %v1122, 1.442695
        %v1175 = vpow.pop %v1174
        %v1176 = vmul.f32 %v1123, 1.442695
        %v1177 = vpow.pop %v1176
        %v1178 = vmul.f32 %v1124, 1.442695
        %v1179 = vpow.pop %v1178
        %v1180 = vmul.f32 %v1125, 1.442695
        %v1181 = vpow.pop %v1180
        %v1182 = vmul.f32 %v1126, 1.442695
        %v1183 = vpow.pop %v1182
        %v1184 = vmul.f32 %v1127, 1.442695
        %v1185 = vpow.pop %v1184
        %v1186 = vmul.f32 %v1128, 1.442695
        %v1187 = vpow.pop %v1186
        %v1188 = vmul.f32 %v1129, 1.442695
        %v1189 = vpow.pop %v1188
        %v1190 = vmul.f32 %v1130, 1.442695
        %v1191 = vpow.pop %v1190
        %v1192 = vmul.f32 %v1131, 1.442695
        %v1193 = vpow.pop %v1192
        %v1194 = vmul.f32 %v1132, 1.442695
        %v1195 = vpow.pop %v1194
        %v1196 = vmul.f32 %v1133, 1.442695
        %v1197 = vpow.pop %v1196
        %1199 = vset.pattern.permute.xlu0 0
        %1200 = vperm.xlu0 %1199, %v1070
        %v1201 = vpop.permute.xlu0 %1200
        %1204 = vset.pattern.permute.xlu0 0
        %1205 = vperm.xlu0 %1204, %v1071
        %v1206 = vpop.permute.xlu0 %1205
        %1209 = vset.pattern.permute.xlu0 0
        %1210 = vperm.xlu0 %1209, %v1072
        %v1211 = vpop.permute.xlu0 %1210
        %1214 = vset.pattern.permute.xlu0 0
        %1215 = vperm.xlu0 %1214, %v1073
        %v1216 = vpop.permute.xlu0 %1215
        %1219 = vset.pattern.permute.xlu0 0
        %1220 = vperm.xlu0 %1219, %v1074
        %v1221 = vpop.permute.xlu0 %1220
        %1224 = vset.pattern.permute.xlu0 0
        %1225 = vperm.xlu0 %1224, %v1075
        %v1226 = vpop.permute.xlu0 %1225
        %1229 = vset.pattern.permute.xlu0 0
        %1230 = vperm.xlu0 %1229, %v1076
        %v1231 = vpop.permute.xlu0 %1230
        %1234 = vset.pattern.permute.xlu0 0
        %1235 = vperm.xlu0 %1234, %v1077
        %v1236 = vpop.permute.xlu0 %1235
        %1239 = vset.pattern.permute.xlu0 0
        %1240 = vperm.xlu0 %1239, %v1078
        %v1241 = vpop.permute.xlu0 %1240
        %1244 = vset.pattern.permute.xlu0 0
        %1245 = vperm.xlu0 %1244, %v1079
        %v1246 = vpop.permute.xlu0 %1245
        %1249 = vset.pattern.permute.xlu0 0
        %1250 = vperm.xlu0 %1249, %v1080
        %v1251 = vpop.permute.xlu0 %1250
        %1254 = vset.pattern.permute.xlu0 0
        %1255 = vperm.xlu0 %1254, %v1081
        %v1256 = vpop.permute.xlu0 %1255
        %1259 = vset.pattern.permute.xlu0 0
        %1260 = vperm.xlu0 %1259, %v1082
        %v1261 = vpop.permute.xlu0 %1260
        %1264 = vset.pattern.permute.xlu0 0
        %1265 = vperm.xlu0 %1264, %v1083
        %v1266 = vpop.permute.xlu0 %1265
        %1269 = vset.pattern.permute.xlu0 0
        %1270 = vperm.xlu0 %1269, %v1084
        %v1271 = vpop.permute.xlu0 %1270
        %1274 = vset.pattern.permute.xlu0 0
        %1275 = vperm.xlu0 %1274, %v1085
        %v1276 = vpop.permute.xlu0 %1275
        %1279 = vset.pattern.permute.xlu0 0
        %1280 = vperm.xlu0 %1279, %v1086
        %v1281 = vpop.permute.xlu0 %1280
        %1284 = vset.pattern.permute.xlu0 0
        %1285 = vperm.xlu0 %1284, %v1087
        %v1286 = vpop.permute.xlu0 %1285
        %1289 = vset.pattern.permute.xlu0 0
        %1290 = vperm.xlu0 %1289, %v1088
        %v1291 = vpop.permute.xlu0 %1290
        %1294 = vset.pattern.permute.xlu0 0
        %1295 = vperm.xlu0 %1294, %v1089
        %v1296 = vpop.permute.xlu0 %1295
        %1299 = vset.pattern.permute.xlu0 0
        %1300 = vperm.xlu0 %1299, %v1090
        %v1301 = vpop.permute.xlu0 %1300
        %1304 = vset.pattern.permute.xlu0 0
        %1305 = vperm.xlu0 %1304, %v1091
        %v1306 = vpop.permute.xlu0 %1305
        %1309 = vset.pattern.permute.xlu0 0
        %1310 = vperm.xlu0 %1309, %v1092
        %v1311 = vpop.permute.xlu0 %1310
        %1314 = vset.pattern.permute.xlu0 0
        %1315 = vperm.xlu0 %1314, %v1093
        %v1316 = vpop.permute.xlu0 %1315
        %1319 = vset.pattern.permute.xlu0 0
        %1320 = vperm.xlu0 %1319, %v1094
        %v1321 = vpop.permute.xlu0 %1320
        %1324 = vset.pattern.permute.xlu0 0
        %1325 = vperm.xlu0 %1324, %v1095
        %v1326 = vpop.permute.xlu0 %1325
        %1329 = vset.pattern.permute.xlu0 0
        %1330 = vperm.xlu0 %1329, %v1096
        %v1331 = vpop.permute.xlu0 %1330
        %1334 = vset.pattern.permute.xlu0 0
        %1335 = vperm.xlu0 %1334, %v1097
        %v1336 = vpop.permute.xlu0 %1335
        %1339 = vset.pattern.permute.xlu0 0
        %1340 = vperm.xlu0 %1339, %v1098
        %v1341 = vpop.permute.xlu0 %1340
        %1344 = vset.pattern.permute.xlu0 0
        %1345 = vperm.xlu0 %1344, %v1099
        %v1346 = vpop.permute.xlu0 %1345
        %1349 = vset.pattern.permute.xlu0 0
        %1350 = vperm.xlu0 %1349, %v1100
        %v1351 = vpop.permute.xlu0 %1350
        %1354 = vset.pattern.permute.xlu0 0
        %1355 = vperm.xlu0 %1354, %v1101
        %v1356 = vpop.permute.xlu0 %1355
        %v1358 = vsub.f32 %v774, %v1201
        %v1359 = vsub.f32 %v863, %v1201
        %v1360 = vsub.f32 %v776, %v1206
        %v1361 = vsub.f32 %v865, %v1206
        %v1362 = vsub.f32 %v779, %v1211
        %v1363 = vsub.f32 %v868, %v1211
        %v1364 = vsub.f32 %v781, %v1216
        %v1365 = vsub.f32 %v870, %v1216
        %v1366 = vsub.f32 %v784, %v1221
        %v1367 = vsub.f32 %v873, %v1221
        %v1368 = vsub.f32 %v786, %v1226
        %v1369 = vsub.f32 %v875, %v1226
        %v1370 = vsub.f32 %v789, %v1231
        %v1371 = vsub.f32 %v878, %v1231
        %v1372 = vsub.f32 %v791, %v1236
        %v1373 = vsub.f32 %v880, %v1236
        %v1374 = vsub.f32 %v794, %v1241
        %v1375 = vsub.f32 %v883, %v1241
        %v1376 = vsub.f32 %v796, %v1246
        %v1377 = vsub.f32 %v885, %v1246
        %v1378 = vsub.f32 %v799, %v1251
        %v1379 = vsub.f32 %v888, %v1251
        %v1380 = vsub.f32 %v801, %v1256
        %v1381 = vsub.f32 %v890, %v1256
        %v1382 = vsub.f32 %v804, %v1261
        %v1383 = vsub.f32 %v893, %v1261
        %v1384 = vsub.f32 %v806, %v1266
        %v1385 = vsub.f32 %v895, %v1266
        %v1386 = vsub.f32 %v809, %v1271
        %v1387 = vsub.f32 %v898, %v1271
        %v1388 = vsub.f32 %v811, %v1276
        %v1389 = vsub.f32 %v900, %v1276
        %v1390 = vsub.f32 %v814, %v1281
        %v1391 = vsub.f32 %v903, %v1281
        %v1392 = vsub.f32 %v816, %v1286
        %v1393 = vsub.f32 %v905, %v1286
        %v1394 = vsub.f32 %v819, %v1291
        %v1395 = vsub.f32 %v908, %v1291
        %v1396 = vsub.f32 %v821, %v1296
        %v1397 = vsub.f32 %v910, %v1296
        %v1398 = vsub.f32 %v824, %v1301
        %v1399 = vsub.f32 %v913, %v1301
        %v1400 = vsub.f32 %v826, %v1306
        %v1401 = vsub.f32 %v915, %v1306
        %v1402 = vsub.f32 %v829, %v1311
        %v1403 = vsub.f32 %v918, %v1311
        %v1404 = vsub.f32 %v831, %v1316
        %v1405 = vsub.f32 %v920, %v1316
        %v1406 = vsub.f32 %v834, %v1321
        %v1407 = vsub.f32 %v923, %v1321
        %v1408 = vsub.f32 %v836, %v1326
        %v1409 = vsub.f32 %v925, %v1326
        %v1410 = vsub.f32 %v839, %v1331
        %v1411 = vsub.f32 %v928, %v1331
        %v1412 = vsub.f32 %v841, %v1336
        %v1413 = vsub.f32 %v930, %v1336
        %v1414 = vsub.f32 %v844, %v1341
        %v1415 = vsub.f32 %v933, %v1341
        %v1416 = vsub.f32 %v846, %v1346
        %v1417 = vsub.f32 %v935, %v1346
        %v1418 = vsub.f32 %v849, %v1351
        %v1419 = vsub.f32 %v938, %v1351
        %v1420 = vsub.f32 %v851, %v1356
        %v1421 = vsub.f32 %v940, %v1356
        %v1422 = vmul.f32 %v1358, 1.442695
        %v1423 = vpow.pop %v1422
        %v1424 = vmul.f32 %v1359, 1.442695
        %v1425 = vpow.pop %v1424
        %v1426 = vmul.f32 %v1360, 1.442695
        %v1427 = vpow.pop %v1426
        %v1428 = vmul.f32 %v1361, 1.442695
        %v1429 = vpow.pop %v1428
        %v1430 = vmul.f32 %v1362, 1.442695
        %v1431 = vpow.pop %v1430
        %v1432 = vmul.f32 %v1363, 1.442695
        %v1433 = vpow.pop %v1432
        %v1434 = vmul.f32 %v1364, 1.442695
        %v1435 = vpow.pop %v1434
        %v1436 = vmul.f32 %v1365, 1.442695
        %v1437 = vpow.pop %v1436
        %v1438 = vmul.f32 %v1366, 1.442695
        %v1439 = vpow.pop %v1438
        %v1440 = vmul.f32 %v1367, 1.442695
        %v1441 = vpow.pop %v1440
        %v1442 = vmul.f32 %v1368, 1.442695
        %v1443 = vpow.pop %v1442
        %v1444 = vmul.f32 %v1369, 1.442695
        %v1445 = vpow.pop %v1444
        %v1446 = vmul.f32 %v1370, 1.442695
        %v1447 = vpow.pop %v1446
        %v1448 = vmul.f32 %v1371, 1.442695
        %v1449 = vpow.pop %v1448
        %v1450 = vmul.f32 %v1372, 1.442695
        %v1451 = vpow.pop %v1450
        %v1452 = vmul.f32 %v1373, 1.442695
        %v1453 = vpow.pop %v1452
        %v1454 = vmul.f32 %v1374, 1.442695
        %v1455 = vpow.pop %v1454
        %v1456 = vmul.f32 %v1375, 1.442695
        %v1457 = vpow.pop %v1456
        %v1458 = vmul.f32 %v1376, 1.442695
        %v1459 = vpow.pop %v1458
        %v1460 = vmul.f32 %v1377, 1.442695
        %v1461 = vpow.pop %v1460
        %v1462 = vmul.f32 %v1378, 1.442695
        %v1463 = vpow.pop %v1462
        %v1464 = vmul.f32 %v1379, 1.442695
        %v1465 = vpow.pop %v1464
        %v1466 = vmul.f32 %v1380, 1.442695
        %v1467 = vpow.pop %v1466
        %v1468 = vmul.f32 %v1381, 1.442695
        %v1469 = vpow.pop %v1468
        %v1470 = vmul.f32 %v1382, 1.442695
        %v1471 = vpow.pop %v1470
        %v1472 = vmul.f32 %v1383, 1.442695
        %v1473 = vpow.pop %v1472
        %v1474 = vmul.f32 %v1384, 1.442695
        %v1475 = vpow.pop %v1474
        %v1476 = vmul.f32 %v1385, 1.442695
        %v1477 = vpow.pop %v1476
        %v1478 = vmul.f32 %v1386, 1.442695
        %v1479 = vpow.pop %v1478
        %v1480 = vmul.f32 %v1387, 1.442695
        %v1481 = vpow.pop %v1480
        %v1482 = vmul.f32 %v1388, 1.442695
        %v1483 = vpow.pop %v1482
        %v1484 = vmul.f32 %v1389, 1.442695
        %v1485 = vpow.pop %v1484
        %v1486 = vmul.f32 %v1390, 1.442695
        %v1487 = vpow.pop %v1486
        %v1488 = vmul.f32 %v1391, 1.442695
        %v1489 = vpow.pop %v1488
        %v1490 = vmul.f32 %v1392, 1.442695
        %v1491 = vpow.pop %v1490
        %v1492 = vmul.f32 %v1393, 1.442695
        %v1493 = vpow.pop %v1492
        %v1494 = vmul.f32 %v1394, 1.442695
        %v1495 = vpow.pop %v1494
        %v1496 = vmul.f32 %v1395, 1.442695
        %v1497 = vpow.pop %v1496
        %v1498 = vmul.f32 %v1396, 1.442695
        %v1499 = vpow.pop %v1498
        %v1500 = vmul.f32 %v1397, 1.442695
        %v1501 = vpow.pop %v1500
        %v1502 = vmul.f32 %v1398, 1.442695
        %v1503 = vpow.pop %v1502
        %v1504 = vmul.f32 %v1399, 1.442695
        %v1505 = vpow.pop %v1504
        %v1506 = vmul.f32 %v1400, 1.442695
        %v1507 = vpow.pop %v1506
        %v1508 = vmul.f32 %v1401, 1.442695
        %v1509 = vpow.pop %v1508
        %v1510 = vmul.f32 %v1402, 1.442695
        %v1511 = vpow.pop %v1510
        %v1512 = vmul.f32 %v1403, 1.442695
        %v1513 = vpow.pop %v1512
        %v1514 = vmul.f32 %v1404, 1.442695
        %v1515 = vpow.pop %v1514
        %v1516 = vmul.f32 %v1405, 1.442695
        %v1517 = vpow.pop %v1516
        %v1518 = vmul.f32 %v1406, 1.442695
        %v1519 = vpow.pop %v1518
        %v1520 = vmul.f32 %v1407, 1.442695
        %v1521 = vpow.pop %v1520
        %v1522 = vmul.f32 %v1408, 1.442695
        %v1523 = vpow.pop %v1522
        %v1524 = vmul.f32 %v1409, 1.442695
        %v1525 = vpow.pop %v1524
        %v1526 = vmul.f32 %v1410, 1.442695
        %v1527 = vpow.pop %v1526
        %v1528 = vmul.f32 %v1411, 1.442695
        %v1529 = vpow.pop %v1528
        %v1530 = vmul.f32 %v1412, 1.442695
        %v1531 = vpow.pop %v1530
        %v1532 = vmul.f32 %v1413, 1.442695
        %v1533 = vpow.pop %v1532
        %v1534 = vmul.f32 %v1414, 1.442695
        %v1535 = vpow.pop %v1534
        %v1536 = vmul.f32 %v1415, 1.442695
        %v1537 = vpow.pop %v1536
        %v1538 = vmul.f32 %v1416, 1.442695
        %v1539 = vpow.pop %v1538
        %v1540 = vmul.f32 %v1417, 1.442695
        %v1541 = vpow.pop %v1540
        %v1542 = vmul.f32 %v1418, 1.442695
        %v1543 = vpow.pop %v1542
        %v1544 = vmul.f32 %v1419, 1.442695
        %v1545 = vpow.pop %v1544
        %v1546 = vmul.f32 %v1420, 1.442695
        %v1547 = vpow.pop %v1546
        %v1548 = vmul.f32 %v1421, 1.442695
        %v1549 = vpow.pop %v1548
        %v1550 = vld [vmem:[#allocation3] sm:$0xff]
        %v1551 = vld [vmem:[#allocation3 + $0x8] sm:$0xff]
        %v1552 = vld [vmem:[#allocation3 + $0x10] sm:$0xff]
        %v1553 = vld [vmem:[#allocation3 + $0x18] sm:$0xff]
        %v1554 = vld [vmem:[#allocation3 + $0x20] sm:$0xff]
        %v1555 = vld [vmem:[#allocation3 + $0x28] sm:$0xff]
        %v1556 = vld [vmem:[#allocation3 + $0x30] sm:$0xff]
        %v1557 = vld [vmem:[#allocation3 + $0x38] sm:$0xff]
        %v1558 = vld [vmem:[#allocation3 + $0x40] sm:$0xff]
        %v1559 = vld [vmem:[#allocation3 + $0x48] sm:$0xff]
        %v1560 = vld [vmem:[#allocation3 + $0x50] sm:$0xff]
        %v1561 = vld [vmem:[#allocation3 + $0x58] sm:$0xff]
        %v1562 = vld [vmem:[#allocation3 + $0x60] sm:$0xff]
        %v1563 = vld [vmem:[#allocation3 + $0x68] sm:$0xff]
        %v1564 = vld [vmem:[#allocation3 + $0x70] sm:$0xff]
        %v1565 = vld [vmem:[#allocation3 + $0x78] sm:$0xff]
        %v1566 = vld [vmem:[#allocation3 + $0x80] sm:$0xff]
        %v1567 = vld [vmem:[#allocation3 + $0x88] sm:$0xff]
        %v1568 = vld [vmem:[#allocation3 + $0x90] sm:$0xff]
        %v1569 = vld [vmem:[#allocation3 + $0x98] sm:$0xff]
        %v1570 = vld [vmem:[#allocation3 + $0xa0] sm:$0xff]
        %v1571 = vld [vmem:[#allocation3 + $0xa8] sm:$0xff]
        %v1572 = vld [vmem:[#allocation3 + $0xb0] sm:$0xff]
        %v1573 = vld [vmem:[#allocation3 + $0xb8] sm:$0xff]
        %v1574 = vld [vmem:[#allocation3 + $0xc0] sm:$0xff]
        %v1575 = vld [vmem:[#allocation3 + $0xc8] sm:$0xff]
        %v1576 = vld [vmem:[#allocation3 + $0xd0] sm:$0xff]
        %v1577 = vld [vmem:[#allocation3 + $0xd8] sm:$0xff]
        %v1578 = vld [vmem:[#allocation3 + $0xe0] sm:$0xff]
        %v1579 = vld [vmem:[#allocation3 + $0xe8] sm:$0xff]
        %v1580 = vld [vmem:[#allocation3 + $0xf0] sm:$0xff]
        %v1581 = vld [vmem:[#allocation3 + $0xf8] sm:$0xff]
        %v1582 = vmul.f32 %v1135, %v1550
        %v1583 = vmul.f32 %v1137, %v1551
        %v1584 = vmul.f32 %v1139, %v1552
        %v1585 = vmul.f32 %v1141, %v1553
        %v1586 = vmul.f32 %v1143, %v1554
        %v1587 = vmul.f32 %v1145, %v1555
        %v1588 = vmul.f32 %v1147, %v1556
        %v1589 = vmul.f32 %v1149, %v1557
        %v1590 = vmul.f32 %v1151, %v1558
        %v1591 = vmul.f32 %v1153, %v1559
        %v1592 = vmul.f32 %v1155, %v1560
        %v1593 = vmul.f32 %v1157, %v1561
        %v1594 = vmul.f32 %v1159, %v1562
        %v1595 = vmul.f32 %v1161, %v1563
        %v1596 = vmul.f32 %v1163, %v1564
        %v1597 = vmul.f32 %v1165, %v1565
        %v1598 = vmul.f32 %v1167, %v1566
        %v1599 = vmul.f32 %v1169, %v1567
        %v1600 = vmul.f32 %v1171, %v1568
        %v1601 = vmul.f32 %v1173, %v1569
        %v1602 = vmul.f32 %v1175, %v1570
        %v1603 = vmul.f32 %v1177, %v1571
        %v1604 = vmul.f32 %v1179, %v1572
        %v1605 = vmul.f32 %v1181, %v1573
        %v1606 = vmul.f32 %v1183, %v1574
        %v1607 = vmul.f32 %v1185, %v1575
        %v1608 = vmul.f32 %v1187, %v1576
        %v1609 = vmul.f32 %v1189, %v1577
        %v1610 = vmul.f32 %v1191, %v1578
        %v1611 = vmul.f32 %v1193, %v1579
        %v1612 = vmul.f32 %v1195, %v1580
        %v1613 = vmul.f32 %v1197, %v1581
        %v1614 = vadd.f32 %v1423, %v1425
        %1615 = vadd.xlane.f32.xlu0 %v1614
        %v1616 = vpop.xlane.xlu0 %1615
        %v1617 = vadd.f32 %v1427, %v1429
        %1618 = vadd.xlane.f32.xlu0 %v1617
        %v1619 = vpop.xlane.xlu0 %1618
        %v1620 = vadd.f32 %v1431, %v1433
        %1621 = vadd.xlane.f32.xlu0 %v1620
        %v1622 = vpop.xlane.xlu0 %1621
        %v1623 = vadd.f32 %v1435, %v1437
        %1624 = vadd.xlane.f32.xlu0 %v1623
        %v1625 = vpop.xlane.xlu0 %1624
        %v1626 = vadd.f32 %v1439, %v1441
        %1627 = vadd.xlane.f32.xlu0 %v1626
        %v1628 = vpop.xlane.xlu0 %1627
        %v1629 = vadd.f32 %v1443, %v1445
        %1630 = vadd.xlane.f32.xlu0 %v1629
        %v1631 = vpop.xlane.xlu0 %1630
        %v1632 = vadd.f32 %v1447, %v1449
        %1633 = vadd.xlane.f32.xlu0 %v1632
        %v1634 = vpop.xlane.xlu0 %1633
        %v1635 = vadd.f32 %v1451, %v1453
        %1636 = vadd.xlane.f32.xlu0 %v1635
        %v1637 = vpop.xlane.xlu0 %1636
        %v1638 = vadd.f32 %v1455, %v1457
        %1639 = vadd.xlane.f32.xlu0 %v1638
        %v1640 = vpop.xlane.xlu0 %1639
        %v1641 = vadd.f32 %v1459, %v1461
        %1642 = vadd.xlane.f32.xlu0 %v1641
        %v1643 = vpop.xlane.xlu0 %1642
        %v1644 = vadd.f32 %v1463, %v1465
        %1645 = vadd.xlane.f32.xlu0 %v1644
        %v1646 = vpop.xlane.xlu0 %1645
        %v1647 = vadd.f32 %v1467, %v1469
        %1648 = vadd.xlane.f32.xlu0 %v1647
        %v1649 = vpop.xlane.xlu0 %1648
        %v1650 = vadd.f32 %v1471, %v1473
        %1651 = vadd.xlane.f32.xlu0 %v1650
        %v1652 = vpop.xlane.xlu0 %1651
        %v1653 = vadd.f32 %v1475, %v1477
        %1654 = vadd.xlane.f32.xlu0 %v1653
        %v1655 = vpop.xlane.xlu0 %1654
        %v1656 = vadd.f32 %v1479, %v1481
        %1657 = vadd.xlane.f32.xlu0 %v1656
        %v1658 = vpop.xlane.xlu0 %1657
        %v1659 = vadd.f32 %v1483, %v1485
        %1660 = vadd.xlane.f32.xlu0 %v1659
        %v1661 = vpop.xlane.xlu0 %1660
        %v1662 = vadd.f32 %v1487, %v1489
        %1663 = vadd.xlane.f32.xlu0 %v1662
        %v1664 = vpop.xlane.xlu0 %1663
        %v1665 = vadd.f32 %v1491, %v1493
        %1666 = vadd.xlane.f32.xlu0 %v1665
        %v1667 = vpop.xlane.xlu0 %1666
        %v1668 = vadd.f32 %v1495, %v1497
        %1669 = vadd.xlane.f32.xlu0 %v1668
        %v1670 = vpop.xlane.xlu0 %1669
        %v1671 = vadd.f32 %v1499, %v1501
        %1672 = vadd.xlane.f32.xlu0 %v1671
        %v1673 = vpop.xlane.xlu0 %1672
        %v1674 = vadd.f32 %v1503, %v1505
        %1675 = vadd.xlane.f32.xlu0 %v1674
        %v1676 = vpop.xlane.xlu0 %1675
        %v1677 = vadd.f32 %v1507, %v1509
        %1678 = vadd.xlane.f32.xlu0 %v1677
        %v1679 = vpop.xlane.xlu0 %1678
        %v1680 = vadd.f32 %v1511, %v1513
        %1681 = vadd.xlane.f32.xlu0 %v1680
        %v1682 = vpop.xlane.xlu0 %1681
        %v1683 = vadd.f32 %v1515, %v1517
        %1684 = vadd.xlane.f32.xlu0 %v1683
        %v1685 = vpop.xlane.xlu0 %1684
        %v1686 = vadd.f32 %v1519, %v1521
        %1687 = vadd.xlane.f32.xlu0 %v1686
        %v1688 = vpop.xlane.xlu0 %1687
        %v1689 = vadd.f32 %v1523, %v1525
        %1690 = vadd.xlane.f32.xlu0 %v1689
        %v1691 = vpop.xlane.xlu0 %1690
        %v1692 = vadd.f32 %v1527, %v1529
        %1693 = vadd.xlane.f32.xlu0 %v1692
        %v1694 = vpop.xlane.xlu0 %1693
        %v1695 = vadd.f32 %v1531, %v1533
        %1696 = vadd.xlane.f32.xlu0 %v1695
        %v1697 = vpop.xlane.xlu0 %1696
        %v1698 = vadd.f32 %v1535, %v1537
        %1699 = vadd.xlane.f32.xlu0 %v1698
        %v1700 = vpop.xlane.xlu0 %1699
        %v1701 = vadd.f32 %v1539, %v1541
        %1702 = vadd.xlane.f32.xlu0 %v1701
        %v1703 = vpop.xlane.xlu0 %1702
        %v1704 = vadd.f32 %v1543, %v1545
        %1705 = vadd.xlane.f32.xlu0 %v1704
        %v1706 = vpop.xlane.xlu0 %1705
        %v1707 = vadd.f32 %v1547, %v1549
        %1708 = vadd.xlane.f32.xlu0 %v1707
        %v1709 = vpop.xlane.xlu0 %1708
        %v1710 = vadd.f32 %v1582, %v1616
        %v1711 = vadd.f32 %v1583, %v1619
        %v1712 = vadd.f32 %v1584, %v1622
        %v1713 = vadd.f32 %v1585, %v1625
        %v1714 = vadd.f32 %v1586, %v1628
        %v1715 = vadd.f32 %v1587, %v1631
        %v1716 = vadd.f32 %v1588, %v1634
        %v1717 = vadd.f32 %v1589, %v1637
        %v1718 = vadd.f32 %v1590, %v1640
        %v1719 = vadd.f32 %v1591, %v1643
        %v1720 = vadd.f32 %v1592, %v1646
        %v1721 = vadd.f32 %v1593, %v1649
        %v1722 = vadd.f32 %v1594, %v1652
        %v1723 = vadd.f32 %v1595, %v1655
        %v1724 = vadd.f32 %v1596, %v1658
        %v1725 = vadd.f32 %v1597, %v1661
        %v1726 = vadd.f32 %v1598, %v1664
        %v1727 = vadd.f32 %v1599, %v1667
        %v1728 = vadd.f32 %v1600, %v1670
        %v1729 = vadd.f32 %v1601, %v1673
        %v1730 = vadd.f32 %v1602, %v1676
        %v1731 = vadd.f32 %v1603, %v1679
        %v1732 = vadd.f32 %v1604, %v1682
        %v1733 = vadd.f32 %v1605, %v1685
        %v1734 = vadd.f32 %v1606, %v1688
        %v1735 = vadd.f32 %v1607, %v1691
        %v1736 = vadd.f32 %v1608, %v1694
        %v1737 = vadd.f32 %v1609, %v1697
        %v1738 = vadd.f32 %v1610, %v1700
        %v1739 = vadd.f32 %v1611, %v1703
        %v1740 = vadd.f32 %v1612, %v1706
        %v1741 = vadd.f32 %v1613, %v1709
        %vm1742 = vcmask 7168
        %1743 = vst.msk [vmem:[#allocation3] sm:$0xff] %vm1742, %v1710
        %1744 = vst.msk [vmem:[#allocation3 + $0x8] sm:$0xff] %vm1742, %v1711
        %1745 = vst.msk [vmem:[#allocation3 + $0x10] sm:$0xff] %vm1742, %v1712
        %1746 = vst.msk [vmem:[#allocation3 + $0x18] sm:$0xff] %vm1742, %v1713
        %1747 = vst.msk [vmem:[#allocation3 + $0x20] sm:$0xff] %vm1742, %v1714
        %1748 = vst.msk [vmem:[#allocation3 + $0x28] sm:$0xff] %vm1742, %v1715
        %1749 = vst.msk [vmem:[#allocation3 + $0x30] sm:$0xff] %vm1742, %v1716
        %1750 = vst.msk [vmem:[#allocation3 + $0x38] sm:$0xff] %vm1742, %v1717
        %1751 = vst.msk [vmem:[#allocation3 + $0x40] sm:$0xff] %vm1742, %v1718
        %1752 = vst.msk [vmem:[#allocation3 + $0x48] sm:$0xff] %vm1742, %v1719
        %1753 = vst.msk [vmem:[#allocation3 + $0x50] sm:$0xff] %vm1742, %v1720
        %1754 = vst.msk [vmem:[#allocation3 + $0x58] sm:$0xff] %vm1742, %v1721
        %1755 = vst.msk [vmem:[#allocation3 + $0x60] sm:$0xff] %vm1742, %v1722
        %1756 = vst.msk [vmem:[#allocation3 + $0x68] sm:$0xff] %vm1742, %v1723
        %1757 = vst.msk [vmem:[#allocation3 + $0x70] sm:$0xff] %vm1742, %v1724
        %1758 = vst.msk [vmem:[#allocation3 + $0x78] sm:$0xff] %vm1742, %v1725
        %1759 = vst.msk [vmem:[#allocation3 + $0x80] sm:$0xff] %vm1742, %v1726
        %1760 = vst.msk [vmem:[#allocation3 + $0x88] sm:$0xff] %vm1742, %v1727
        %1761 = vst.msk [vmem:[#allocation3 + $0x90] sm:$0xff] %vm1742, %v1728
        %1762 = vst.msk [vmem:[#allocation3 + $0x98] sm:$0xff] %vm1742, %v1729
        %1763 = vst.msk [vmem:[#allocation3 + $0xa0] sm:$0xff] %vm1742, %v1730
        %1764 = vst.msk [vmem:[#allocation3 + $0xa8] sm:$0xff] %vm1742, %v1731
        %1765 = vst.msk [vmem:[#allocation3 + $0xb0] sm:$0xff] %vm1742, %v1732
        %1766 = vst.msk [vmem:[#allocation3 + $0xb8] sm:$0xff] %vm1742, %v1733
        %1767 = vst.msk [vmem:[#allocation3 + $0xc0] sm:$0xff] %vm1742, %v1734
        %1768 = vst.msk [vmem:[#allocation3 + $0xc8] sm:$0xff] %vm1742, %v1735
        %1769 = vst.msk [vmem:[#allocation3 + $0xd0] sm:$0xff] %vm1742, %v1736
        %1770 = vst.msk [vmem:[#allocation3 + $0xd8] sm:$0xff] %vm1742, %v1737
        %1771 = vst.msk [vmem:[#allocation3 + $0xe0] sm:$0xff] %vm1742, %v1738
        %1772 = vst.msk [vmem:[#allocation3 + $0xe8] sm:$0xff] %vm1742, %v1739
        %1773 = vst.msk [vmem:[#allocation3 + $0xf0] sm:$0xff] %vm1742, %v1740
        %1774 = vst.msk [vmem:[#allocation3 + $0xf8] sm:$0xff] %vm1742, %v1741
        %v1775 = vld [vmem:[#allocation4] sm:$0xff]
        %v1776 = vld [vmem:[#allocation4 + $0x8] sm:$0xff]
        %v1777 = vld [vmem:[#allocation4 + $0x10] sm:$0xff]
        %v1778 = vld [vmem:[#allocation4 + $0x18] sm:$0xff]
        %v1779 = vld [vmem:[#allocation4 + $0x20] sm:$0xff]
        %v1780 = vld [vmem:[#allocation4 + $0x28] sm:$0xff]
        %v1781 = vld [vmem:[#allocation4 + $0x30] sm:$0xff]
        %v1782 = vld [vmem:[#allocation4 + $0x38] sm:$0xff]
        %v1783 = vld [vmem:[#allocation4 + $0x40] sm:$0xff]
        %v1784 = vld [vmem:[#allocation4 + $0x48] sm:$0xff]
        %v1785 = vld [vmem:[#allocation4 + $0x50] sm:$0xff]
        %v1786 = vld [vmem:[#allocation4 + $0x58] sm:$0xff]
        %v1787 = vld [vmem:[#allocation4 + $0x60] sm:$0xff]
        %v1788 = vld [vmem:[#allocation4 + $0x68] sm:$0xff]
        %v1789 = vld [vmem:[#allocation4 + $0x70] sm:$0xff]
        %v1790 = vld [vmem:[#allocation4 + $0x78] sm:$0xff]
        %v1791 = vld [vmem:[#allocation4 + $0x80] sm:$0xff]
        %v1792 = vld [vmem:[#allocation4 + $0x88] sm:$0xff]
        %v1793 = vld [vmem:[#allocation4 + $0x90] sm:$0xff]
        %v1794 = vld [vmem:[#allocation4 + $0x98] sm:$0xff]
        %v1795 = vld [vmem:[#allocation4 + $0xa0] sm:$0xff]
        %v1796 = vld [vmem:[#allocation4 + $0xa8] sm:$0xff]
        %v1797 = vld [vmem:[#allocation4 + $0xb0] sm:$0xff]
        %v1798 = vld [vmem:[#allocation4 + $0xb8] sm:$0xff]
        %v1799 = vld [vmem:[#allocation4 + $0xc0] sm:$0xff]
        %v1800 = vld [vmem:[#allocation4 + $0xc8] sm:$0xff]
        %v1801 = vld [vmem:[#allocation4 + $0xd0] sm:$0xff]
        %v1802 = vld [vmem:[#allocation4 + $0xd8] sm:$0xff]
        %v1803 = vld [vmem:[#allocation4 + $0xe0] sm:$0xff]
        %v1804 = vld [vmem:[#allocation4 + $0xe8] sm:$0xff]
        %v1805 = vld [vmem:[#allocation4 + $0xf0] sm:$0xff]
        %v1806 = vld [vmem:[#allocation4 + $0xf8] sm:$0xff]
        %1808 = vset.pattern.permute.xlu0 0
        %1809 = vperm.xlu0 %1808, %v1135
        %v1810 = vpop.permute.xlu0 %1809
        %1813 = vset.pattern.permute.xlu0 0
        %1814 = vperm.xlu0 %1813, %v1137
        %v1815 = vpop.permute.xlu0 %1814
        %1818 = vset.pattern.permute.xlu0 0
        %1819 = vperm.xlu0 %1818, %v1139
        %v1820 = vpop.permute.xlu0 %1819
        %1823 = vset.pattern.permute.xlu0 0
        %1824 = vperm.xlu0 %1823, %v1141
        %v1825 = vpop.permute.xlu0 %1824
        %1828 = vset.pattern.permute.xlu0 0
        %1829 = vperm.xlu0 %1828, %v1143
        %v1830 = vpop.permute.xlu0 %1829
        %1833 = vset.pattern.permute.xlu0 0
        %1834 = vperm.xlu0 %1833, %v1145
        %v1835 = vpop.permute.xlu0 %1834
        %1838 = vset.pattern.permute.xlu0 0
        %1839 = vperm.xlu0 %1838, %v1147
        %v1840 = vpop.permute.xlu0 %1839
        %1843 = vset.pattern.permute.xlu0 0
        %1844 = vperm.xlu0 %1843, %v1149
        %v1845 = vpop.permute.xlu0 %1844
        %1848 = vset.pattern.permute.xlu0 0
        %1849 = vperm.xlu0 %1848, %v1151
        %v1850 = vpop.permute.xlu0 %1849
        %1853 = vset.pattern.permute.xlu0 0
        %1854 = vperm.xlu0 %1853, %v1153
        %v1855 = vpop.permute.xlu0 %1854
        %1858 = vset.pattern.permute.xlu0 0
        %1859 = vperm.xlu0 %1858, %v1155
        %v1860 = vpop.permute.xlu0 %1859
        %1863 = vset.pattern.permute.xlu0 0
        %1864 = vperm.xlu0 %1863, %v1157
        %v1865 = vpop.permute.xlu0 %1864
        %1868 = vset.pattern.permute.xlu0 0
        %1869 = vperm.xlu0 %1868, %v1159
        %v1870 = vpop.permute.xlu0 %1869
        %1873 = vset.pattern.permute.xlu0 0
        %1874 = vperm.xlu0 %1873, %v1161
        %v1875 = vpop.permute.xlu0 %1874
        %1878 = vset.pattern.permute.xlu0 0
        %1879 = vperm.xlu0 %1878, %v1163
        %v1880 = vpop.permute.xlu0 %1879
        %1883 = vset.pattern.permute.xlu0 0
        %1884 = vperm.xlu0 %1883, %v1165
        %v1885 = vpop.permute.xlu0 %1884
        %1888 = vset.pattern.permute.xlu0 0
        %1889 = vperm.xlu0 %1888, %v1167
        %v1890 = vpop.permute.xlu0 %1889
        %1893 = vset.pattern.permute.xlu0 0
        %1894 = vperm.xlu0 %1893, %v1169
        %v1895 = vpop.permute.xlu0 %1894
        %1898 = vset.pattern.permute.xlu0 0
        %1899 = vperm.xlu0 %1898, %v1171
        %v1900 = vpop.permute.xlu0 %1899
        %1903 = vset.pattern.permute.xlu0 0
        %1904 = vperm.xlu0 %1903, %v1173
        %v1905 = vpop.permute.xlu0 %1904
        %1908 = vset.pattern.permute.xlu0 0
        %1909 = vperm.xlu0 %1908, %v1175
        %v1910 = vpop.permute.xlu0 %1909
        %1913 = vset.pattern.permute.xlu0 0
        %1914 = vperm.xlu0 %1913, %v1177
        %v1915 = vpop.permute.xlu0 %1914
        %1918 = vset.pattern.permute.xlu0 0
        %1919 = vperm.xlu0 %1918, %v1179
        %v1920 = vpop.permute.xlu0 %1919
        %1923 = vset.pattern.permute.xlu0 0
        %1924 = vperm.xlu0 %1923, %v1181
        %v1925 = vpop.permute.xlu0 %1924
        %1928 = vset.pattern.permute.xlu0 0
        %1929 = vperm.xlu0 %1928, %v1183
        %v1930 = vpop.permute.xlu0 %1929
        %1933 = vset.pattern.permute.xlu0 0
        %1934 = vperm.xlu0 %1933, %v1185
        %v1935 = vpop.permute.xlu0 %1934
        %1938 = vset.pattern.permute.xlu0 0
        %1939 = vperm.xlu0 %1938, %v1187
        %v1940 = vpop.permute.xlu0 %1939
        %1943 = vset.pattern.permute.xlu0 0
        %1944 = vperm.xlu0 %1943, %v1189
        %v1945 = vpop.permute.xlu0 %1944
        %1948 = vset.pattern.permute.xlu0 0
        %1949 = vperm.xlu0 %1948, %v1191
        %v1950 = vpop.permute.xlu0 %1949
        %1953 = vset.pattern.permute.xlu0 0
        %1954 = vperm.xlu0 %1953, %v1193
        %v1955 = vpop.permute.xlu0 %1954
        %1958 = vset.pattern.permute.xlu0 0
        %1959 = vperm.xlu0 %1958, %v1195
        %v1960 = vpop.permute.xlu0 %1959
        %1963 = vset.pattern.permute.xlu0 0
        %1964 = vperm.xlu0 %1963, %v1197
        %v1965 = vpop.permute.xlu0 %1964
        %v1967 = vmul.f32 %v1810, %v1775
        %v1968 = vmul.f32 %v1815, %v1776
        %v1969 = vmul.f32 %v1820, %v1777
        %v1970 = vmul.f32 %v1825, %v1778
        %v1971 = vmul.f32 %v1830, %v1779
        %v1972 = vmul.f32 %v1835, %v1780
        %v1973 = vmul.f32 %v1840, %v1781
        %v1974 = vmul.f32 %v1845, %v1782
        %v1975 = vmul.f32 %v1850, %v1783
        %v1976 = vmul.f32 %v1855, %v1784
        %v1977 = vmul.f32 %v1860, %v1785
        %v1978 = vmul.f32 %v1865, %v1786
        %v1979 = vmul.f32 %v1870, %v1787
        %v1980 = vmul.f32 %v1875, %v1788
        %v1981 = vmul.f32 %v1880, %v1789
        %v1982 = vmul.f32 %v1885, %v1790
        %v1983 = vmul.f32 %v1890, %v1791
        %v1984 = vmul.f32 %v1895, %v1792
        %v1985 = vmul.f32 %v1900, %v1793
        %v1986 = vmul.f32 %v1905, %v1794
        %v1987 = vmul.f32 %v1910, %v1795
        %v1988 = vmul.f32 %v1915, %v1796
        %v1989 = vmul.f32 %v1920, %v1797
        %v1990 = vmul.f32 %v1925, %v1798
        %v1991 = vmul.f32 %v1930, %v1799
        %v1992 = vmul.f32 %v1935, %v1800
        %v1993 = vmul.f32 %v1940, %v1801
        %v1994 = vmul.f32 %v1945, %v1802
        %v1995 = vmul.f32 %v1950, %v1803
        %v1996 = vmul.f32 %v1955, %v1804
        %v1997 = vmul.f32 %v1960, %v1805
        %v1998 = vmul.f32 %v1965, %v1806
        %v1999 = vpack.c.bf16 %v1427, %v1423
        %v2000 = vpack.c.bf16 %v1429, %v1425
        %v2001 = vpack.c.bf16 %v1435, %v1431
        %v2002 = vpack.c.bf16 %v1437, %v1433
        %v2003 = vpack.c.bf16 %v1443, %v1439
        %v2004 = vpack.c.bf16 %v1445, %v1441
        %v2005 = vpack.c.bf16 %v1451, %v1447
        %v2006 = vpack.c.bf16 %v1453, %v1449
        %v2007 = vpack.c.bf16 %v1459, %v1455
        %v2008 = vpack.c.bf16 %v1461, %v1457
        %v2009 = vpack.c.bf16 %v1467, %v1463
        %v2010 = vpack.c.bf16 %v1469, %v1465
        %v2011 = vpack.c.bf16 %v1475, %v1471
        %v2012 = vpack.c.bf16 %v1477, %v1473
        %v2013 = vpack.c.bf16 %v1483, %v1479
        %v2014 = vpack.c.bf16 %v1485, %v1481
        %v2015 = vpack.c.bf16 %v1491, %v1487
        %v2016 = vpack.c.bf16 %v1493, %v1489
        %v2017 = vpack.c.bf16 %v1499, %v1495
        %v2018 = vpack.c.bf16 %v1501, %v1497
        %v2019 = vpack.c.bf16 %v1507, %v1503
        %v2020 = vpack.c.bf16 %v1509, %v1505
        %v2021 = vpack.c.bf16 %v1515, %v1511
        %v2022 = vpack.c.bf16 %v1517, %v1513
        %v2023 = vpack.c.bf16 %v1523, %v1519
        %v2024 = vpack.c.bf16 %v1525, %v1521
        %v2025 = vpack.c.bf16 %v1531, %v1527
        %v2026 = vpack.c.bf16 %v1533, %v1529
        %v2027 = vpack.c.bf16 %v1539, %v1535
        %v2028 = vpack.c.bf16 %v1541, %v1537
        %v2029 = vpack.c.bf16 %v1547, %v1543
        %v2030 = vpack.c.bf16 %v1549, %v1545
        %v2031 = vld [vmem:[%s403] sm:$0xf]
        %v2032 = vld [vmem:[%s403 + $0x4] sm:$0xf]
        %v2033 = vld [vmem:[%s403 + $0x8] sm:$0xf]
        %v2034 = vld [vmem:[%s403 + $0xc] sm:$0xf]
        %v2035 = vld [vmem:[%s403 + $0x10] sm:$0xf]
        %v2036 = vld [vmem:[%s403 + $0x14] sm:$0xf]
        %v2037 = vld [vmem:[%s403 + $0x18] sm:$0xf]
        %v2038 = vld [vmem:[%s403 + $0x1c] sm:$0xf]
        %v2039 = vld [vmem:[%s403 + $0x20] sm:$0xf]
        %v2040 = vld [vmem:[%s403 + $0x24] sm:$0xf]
        %v2041 = vld [vmem:[%s403 + $0x28] sm:$0xf]
        %v2042 = vld [vmem:[%s403 + $0x2c] sm:$0xf]
        %v2043 = vld [vmem:[%s403 + $0x30] sm:$0xf]
        %v2044 = vld [vmem:[%s403 + $0x34] sm:$0xf]
        %v2045 = vld [vmem:[%s403 + $0x38] sm:$0xf]
        %v2046 = vld [vmem:[%s403 + $0x3c] sm:$0xf]
        %v2047 = vld [vmem:[%s403 + $0x40] sm:$0xf]
        %v2048 = vld [vmem:[%s403 + $0x44] sm:$0xf]
        %v2049 = vld [vmem:[%s403 + $0x48] sm:$0xf]
        %v2050 = vld [vmem:[%s403 + $0x4c] sm:$0xf]
        %v2051 = vld [vmem:[%s403 + $0x50] sm:$0xf]
        %v2052 = vld [vmem:[%s403 + $0x54] sm:$0xf]
        %v2053 = vld [vmem:[%s403 + $0x58] sm:$0xf]
        %v2054 = vld [vmem:[%s403 + $0x5c] sm:$0xf]
        %v2055 = vld [vmem:[%s403 + $0x60] sm:$0xf]
        %v2056 = vld [vmem:[%s403 + $0x64] sm:$0xf]
        %v2057 = vld [vmem:[%s403 + $0x68] sm:$0xf]
        %v2058 = vld [vmem:[%s403 + $0x6c] sm:$0xf]
        %v2059 = vld [vmem:[%s403 + $0x70] sm:$0xf]
        %v2060 = vld [vmem:[%s403 + $0x74] sm:$0xf]
        %v2061 = vld [vmem:[%s403 + $0x78] sm:$0xf]
        %v2062 = vld [vmem:[%s403 + $0x7c] sm:$0xf]
        %v2095 = vunpack.c.l.b16 %v2031
        %v2096 = vunpack.c.l.b16 %v2032
        %v2097 = vunpack.c.l.b16 %v2033
        %v2098 = vunpack.c.l.b16 %v2034
        %v2099 = vunpack.c.l.b16 %v2035
        %v2100 = vunpack.c.l.b16 %v2036
        %v2101 = vunpack.c.l.b16 %v2037
        %v2102 = vunpack.c.l.b16 %v2038
        %v2103 = vunpack.c.l.b16 %v2039
        %v2104 = vunpack.c.l.b16 %v2040
        %v2105 = vunpack.c.l.b16 %v2041
        %v2106 = vunpack.c.l.b16 %v2042
        %v2107 = vunpack.c.l.b16 %v2043
        %v2108 = vunpack.c.l.b16 %v2044
        %v2109 = vunpack.c.l.b16 %v2045
        %v2110 = vunpack.c.l.b16 %v2046
        %v2111 = vunpack.c.l.b16 %v2047
        %v2112 = vunpack.c.l.b16 %v2048
        %v2113 = vunpack.c.l.b16 %v2049
        %v2114 = vunpack.c.l.b16 %v2050
        %v2115 = vunpack.c.l.b16 %v2051
        %v2116 = vunpack.c.l.b16 %v2052
        %v2117 = vunpack.c.l.b16 %v2053
        %v2118 = vunpack.c.l.b16 %v2054
        %v2119 = vunpack.c.l.b16 %v2055
        %v2120 = vunpack.c.l.b16 %v2056
        %v2121 = vunpack.c.l.b16 %v2057
        %v2122 = vunpack.c.l.b16 %v2058
        %v2123 = vunpack.c.l.b16 %v2059
        %v2124 = vunpack.c.l.b16 %v2060
        %v2125 = vunpack.c.l.b16 %v2061
        %v2126 = vunpack.c.l.b16 %v2062
        %v2127 = vpack.c.b16 %v2096, %v2095
        %v2128 = vpack.c.b16 %v2098, %v2097
        %v2129 = vpack.c.b16 %v2100, %v2099
        %v2130 = vpack.c.b16 %v2102, %v2101
        %v2131 = vpack.c.b16 %v2104, %v2103
        %v2132 = vpack.c.b16 %v2106, %v2105
        %v2133 = vpack.c.b16 %v2108, %v2107
        %v2134 = vpack.c.b16 %v2110, %v2109
        %v2135 = vpack.c.b16 %v2112, %v2111
        %v2136 = vpack.c.b16 %v2114, %v2113
        %v2137 = vpack.c.b16 %v2116, %v2115
        %v2138 = vpack.c.b16 %v2118, %v2117
        %v2139 = vpack.c.b16 %v2120, %v2119
        %v2140 = vpack.c.b16 %v2122, %v2121
        %v2141 = vpack.c.b16 %v2124, %v2123
        %v2142 = vpack.c.b16 %v2126, %v2125
        %2159 = vmatpush.bf16.msra.mxu0 %v2134
        %2160 = vmatpush.bf16.msra.mxu0 %v2133
        %2161 = vmatpush.bf16.msra.mxu0 %v2132
        %2162 = vmatpush.bf16.msra.mxu0 %v2131
        %2163 = vmatpush.bf16.msra.mxu0 %v2130
        %2164 = vmatpush.bf16.msra.mxu0 %v2129
        %2165 = vmatpush.bf16.msra.mxu0 %v2128
        %2166 = vmatpush.bf16.msra.mxu0 %v2127
        %2167 = vmatmul.bf16.gmra.mxu0 %v1999
        %v2168 = vpop.f32.mrf.mxu0
        %v2169 = vadd.f32 0.0, %v2168
        %v2170 = vpop.f32.mrf.mxu0
        %v2171 = vadd.f32 0.0, %v2170
        %2172 = vmatmul.bf16.gmra.mxu0 %v2001
        %v2173 = vpop.f32.mrf.mxu0
        %v2174 = vadd.f32 0.0, %v2173
        %v2175 = vpop.f32.mrf.mxu0
        %v2176 = vadd.f32 0.0, %v2175
        %2177 = vmatmul.bf16.gmra.mxu0 %v2003
        %v2178 = vpop.f32.mrf.mxu0
        %v2179 = vadd.f32 0.0, %v2178
        %v2180 = vpop.f32.mrf.mxu0
        %v2181 = vadd.f32 0.0, %v2180
        %2182 = vmatmul.bf16.gmra.mxu0 %v2005
        %v2183 = vpop.f32.mrf.mxu0
        %v2184 = vadd.f32 0.0, %v2183
        %v2185 = vpop.f32.mrf.mxu0
        %v2186 = vadd.f32 0.0, %v2185
        %2187 = vmatmul.bf16.gmra.mxu0 %v2007
        %v2188 = vpop.f32.mrf.mxu0
        %v2189 = vadd.f32 0.0, %v2188
        %v2190 = vpop.f32.mrf.mxu0
        %v2191 = vadd.f32 0.0, %v2190
        %2192 = vmatmul.bf16.gmra.mxu0 %v2009
        %v2193 = vpop.f32.mrf.mxu0
        %v2194 = vadd.f32 0.0, %v2193
        %v2195 = vpop.f32.mrf.mxu0
        %v2196 = vadd.f32 0.0, %v2195
        %2197 = vmatmul.bf16.gmra.mxu0 %v2011
        %v2198 = vpop.f32.mrf.mxu0
        %v2199 = vadd.f32 0.0, %v2198
        %v2200 = vpop.f32.mrf.mxu0
        %v2201 = vadd.f32 0.0, %v2200
        %2202 = vmatmul.bf16.gmra.mxu0 %v2013
        %v2203 = vpop.f32.mrf.mxu0
        %v2204 = vadd.f32 0.0, %v2203
        %v2205 = vpop.f32.mrf.mxu0
        %v2206 = vadd.f32 0.0, %v2205
        %2207 = vmatmul.bf16.gmra.mxu0 %v2015
        %v2208 = vpop.f32.mrf.mxu0
        %v2209 = vadd.f32 0.0, %v2208
        %v2210 = vpop.f32.mrf.mxu0
        %v2211 = vadd.f32 0.0, %v2210
        %2212 = vmatmul.bf16.gmra.mxu0 %v2017
        %v2213 = vpop.f32.mrf.mxu0
        %v2214 = vadd.f32 0.0, %v2213
        %v2215 = vpop.f32.mrf.mxu0
        %v2216 = vadd.f32 0.0, %v2215
        %2217 = vmatmul.bf16.gmra.mxu0 %v2019
        %v2218 = vpop.f32.mrf.mxu0
        %v2219 = vadd.f32 0.0, %v2218
        %v2220 = vpop.f32.mrf.mxu0
        %v2221 = vadd.f32 0.0, %v2220
        %2222 = vmatmul.bf16.gmra.mxu0 %v2021
        %v2223 = vpop.f32.mrf.mxu0
        %v2224 = vadd.f32 0.0, %v2223
        %v2225 = vpop.f32.mrf.mxu0
        %v2226 = vadd.f32 0.0, %v2225
        %2227 = vmatmul.bf16.gmra.mxu0 %v2023
        %v2228 = vpop.f32.mrf.mxu0
        %v2229 = vadd.f32 0.0, %v2228
        %v2230 = vpop.f32.mrf.mxu0
        %v2231 = vadd.f32 0.0, %v2230
        %2232 = vmatmul.bf16.gmra.mxu0 %v2025
        %v2233 = vpop.f32.mrf.mxu0
        %v2234 = vadd.f32 0.0, %v2233
        %v2235 = vpop.f32.mrf.mxu0
        %v2236 = vadd.f32 0.0, %v2235
        %2237 = vmatmul.bf16.gmra.mxu0 %v2027
        %v2238 = vpop.f32.mrf.mxu0
        %v2239 = vadd.f32 0.0, %v2238
        %v2240 = vpop.f32.mrf.mxu0
        %v2241 = vadd.f32 0.0, %v2240
        %2242 = vmatmul.bf16.gmra.mxu0 %v2029
        %v2243 = vpop.f32.mrf.mxu0
        %v2244 = vadd.f32 0.0, %v2243
        %v2245 = vpop.f32.mrf.mxu0
        %v2246 = vadd.f32 0.0, %v2245
        %2247 = vdwg.mxu0
        %2248 = vmatpush.bf16.msra.mxu0 %v2142
        %2249 = vmatpush.bf16.msra.mxu0 %v2141
        %2250 = vmatpush.bf16.msra.mxu0 %v2140
        %2251 = vmatpush.bf16.msra.mxu0 %v2139
        %2252 = vmatpush.bf16.msra.mxu0 %v2138
        %2253 = vmatpush.bf16.msra.mxu0 %v2137
        %2254 = vmatpush.bf16.msra.mxu0 %v2136
        %2255 = vmatpush.bf16.msra.mxu0 %v2135
        %2256 = vmatmul.bf16.gmra.mxu0 %v2000
        %v2257 = vpop.f32.mrf.mxu0
        %v2258 = vadd.f32 %v2169, %v2257
        %v2259 = vpop.f32.mrf.mxu0
        %v2260 = vadd.f32 %v2171, %v2259
        %2261 = vmatmul.bf16.gmra.mxu0 %v2002
        %v2262 = vpop.f32.mrf.mxu0
        %v2263 = vadd.f32 %v2174, %v2262
        %v2264 = vpop.f32.mrf.mxu0
        %v2265 = vadd.f32 %v2176, %v2264
        %2266 = vmatmul.bf16.gmra.mxu0 %v2004
        %v2267 = vpop.f32.mrf.mxu0
        %v2268 = vadd.f32 %v2179, %v2267
        %v2269 = vpop.f32.mrf.mxu0
        %v2270 = vadd.f32 %v2181, %v2269
        %2271 = vmatmul.bf16.gmra.mxu0 %v2006
        %v2272 = vpop.f32.mrf.mxu0
        %v2273 = vadd.f32 %v2184, %v2272
        %v2274 = vpop.f32.mrf.mxu0
        %v2275 = vadd.f32 %v2186, %v2274
        %2276 = vmatmul.bf16.gmra.mxu0 %v2008
        %v2277 = vpop.f32.mrf.mxu0
        %v2278 = vadd.f32 %v2189, %v2277
        %v2279 = vpop.f32.mrf.mxu0
        %v2280 = vadd.f32 %v2191, %v2279
        %2281 = vmatmul.bf16.gmra.mxu0 %v2010
        %v2282 = vpop.f32.mrf.mxu0
        %v2283 = vadd.f32 %v2194, %v2282
        %v2284 = vpop.f32.mrf.mxu0
        %v2285 = vadd.f32 %v2196, %v2284
        %2286 = vmatmul.bf16.gmra.mxu0 %v2012
        %v2287 = vpop.f32.mrf.mxu0
        %v2288 = vadd.f32 %v2199, %v2287
        %v2289 = vpop.f32.mrf.mxu0
        %v2290 = vadd.f32 %v2201, %v2289
        %2291 = vmatmul.bf16.gmra.mxu0 %v2014
        %v2292 = vpop.f32.mrf.mxu0
        %v2293 = vadd.f32 %v2204, %v2292
        %v2294 = vpop.f32.mrf.mxu0
        %v2295 = vadd.f32 %v2206, %v2294
        %2296 = vmatmul.bf16.gmra.mxu0 %v2016
        %v2297 = vpop.f32.mrf.mxu0
        %v2298 = vadd.f32 %v2209, %v2297
        %v2299 = vpop.f32.mrf.mxu0
        %v2300 = vadd.f32 %v2211, %v2299
        %2301 = vmatmul.bf16.gmra.mxu0 %v2018
        %v2302 = vpop.f32.mrf.mxu0
        %v2303 = vadd.f32 %v2214, %v2302
        %v2304 = vpop.f32.mrf.mxu0
        %v2305 = vadd.f32 %v2216, %v2304
        %2306 = vmatmul.bf16.gmra.mxu0 %v2020
        %v2307 = vpop.f32.mrf.mxu0
        %v2308 = vadd.f32 %v2219, %v2307
        %v2309 = vpop.f32.mrf.mxu0
        %v2310 = vadd.f32 %v2221, %v2309
        %2311 = vmatmul.bf16.gmra.mxu0 %v2022
        %v2312 = vpop.f32.mrf.mxu0
        %v2313 = vadd.f32 %v2224, %v2312
        %v2314 = vpop.f32.mrf.mxu0
        %v2315 = vadd.f32 %v2226, %v2314
        %2316 = vmatmul.bf16.gmra.mxu0 %v2024
        %v2317 = vpop.f32.mrf.mxu0
        %v2318 = vadd.f32 %v2229, %v2317
        %v2319 = vpop.f32.mrf.mxu0
        %v2320 = vadd.f32 %v2231, %v2319
        %2321 = vmatmul.bf16.gmra.mxu0 %v2026
        %v2322 = vpop.f32.mrf.mxu0
        %v2323 = vadd.f32 %v2234, %v2322
        %v2324 = vpop.f32.mrf.mxu0
        %v2325 = vadd.f32 %v2236, %v2324
        %2326 = vmatmul.bf16.gmra.mxu0 %v2028
        %v2327 = vpop.f32.mrf.mxu0
        %v2328 = vadd.f32 %v2239, %v2327
        %v2329 = vpop.f32.mrf.mxu0
        %v2330 = vadd.f32 %v2241, %v2329
        %2331 = vmatmul.bf16.gmra.mxu0 %v2030
        %v2332 = vpop.f32.mrf.mxu0
        %v2333 = vadd.f32 %v2244, %v2332
        %v2334 = vpop.f32.mrf.mxu0
        %v2335 = vadd.f32 %v2246, %v2334
        %2336 = vdwg.mxu0
        %v2337 = vadd.f32 %v1967, %v2258
        %v2338 = vadd.f32 %v1968, %v2260
        %v2339 = vadd.f32 %v1969, %v2263
        %v2340 = vadd.f32 %v1970, %v2265
        %v2341 = vadd.f32 %v1971, %v2268
        %v2342 = vadd.f32 %v1972, %v2270
        %v2343 = vadd.f32 %v1973, %v2273
        %v2344 = vadd.f32 %v1974, %v2275
        %v2345 = vadd.f32 %v1975, %v2278
        %v2346 = vadd.f32 %v1976, %v2280
        %v2347 = vadd.f32 %v1977, %v2283
        %v2348 = vadd.f32 %v1978, %v2285
        %v2349 = vadd.f32 %v1979, %v2288
        %v2350 = vadd.f32 %v1980, %v2290
        %v2351 = vadd.f32 %v1981, %v2293
        %v2352 = vadd.f32 %v1982, %v2295
        %v2353 = vadd.f32 %v1983, %v2298
        %v2354 = vadd.f32 %v1984, %v2300
        %v2355 = vadd.f32 %v1985, %v2303
        %v2356 = vadd.f32 %v1986, %v2305
        %v2357 = vadd.f32 %v1987, %v2308
        %v2358 = vadd.f32 %v1988, %v2310
        %v2359 = vadd.f32 %v1989, %v2313
        %v2360 = vadd.f32 %v1990, %v2315
        %v2361 = vadd.f32 %v1991, %v2318
        %v2362 = vadd.f32 %v1992, %v2320
        %v2363 = vadd.f32 %v1993, %v2323
        %v2364 = vadd.f32 %v1994, %v2325
        %v2365 = vadd.f32 %v1995, %v2328
        %v2366 = vadd.f32 %v1996, %v2330
        %v2367 = vadd.f32 %v1997, %v2333
        %v2368 = vadd.f32 %v1998, %v2335
        %2369 = vst [vmem:[#allocation4] sm:$0xff] %v2337
        %2370 = vst [vmem:[#allocation4 + $0x8] sm:$0xff] %v2338
        %2371 = vst [vmem:[#allocation4 + $0x10] sm:$0xff] %v2339
        %2372 = vst [vmem:[#allocation4 + $0x18] sm:$0xff] %v2340
        %2373 = vst [vmem:[#allocation4 + $0x20] sm:$0xff] %v2341
        %2374 = vst [vmem:[#allocation4 + $0x28] sm:$0xff] %v2342
        %2375 = vst [vmem:[#allocation4 + $0x30] sm:$0xff] %v2343
        %2376 = vst [vmem:[#allocation4 + $0x38] sm:$0xff] %v2344
        %2377 = vst [vmem:[#allocation4 + $0x40] sm:$0xff] %v2345
        %2378 = vst [vmem:[#allocation4 + $0x48] sm:$0xff] %v2346
        %2379 = vst [vmem:[#allocation4 + $0x50] sm:$0xff] %v2347
        %2380 = vst [vmem:[#allocation4 + $0x58] sm:$0xff] %v2348
        %2381 = vst [vmem:[#allocation4 + $0x60] sm:$0xff] %v2349
        %2382 = vst [vmem:[#allocation4 + $0x68] sm:$0xff] %v2350
        %2383 = vst [vmem:[#allocation4 + $0x70] sm:$0xff] %v2351
        %2384 = vst [vmem:[#allocation4 + $0x78] sm:$0xff] %v2352
        %2385 = vst [vmem:[#allocation4 + $0x80] sm:$0xff] %v2353
        %2386 = vst [vmem:[#allocation4 + $0x88] sm:$0xff] %v2354
        %2387 = vst [vmem:[#allocation4 + $0x90] sm:$0xff] %v2355
        %2388 = vst [vmem:[#allocation4 + $0x98] sm:$0xff] %v2356
        %2389 = vst [vmem:[#allocation4 + $0xa0] sm:$0xff] %v2357
        %2390 = vst [vmem:[#allocation4 + $0xa8] sm:$0xff] %v2358
        %2391 = vst [vmem:[#allocation4 + $0xb0] sm:$0xff] %v2359
        %2392 = vst [vmem:[#allocation4 + $0xb8] sm:$0xff] %v2360
        %2393 = vst [vmem:[#allocation4 + $0xc0] sm:$0xff] %v2361
        %2394 = vst [vmem:[#allocation4 + $0xc8] sm:$0xff] %v2362
        %2395 = vst [vmem:[#allocation4 + $0xd0] sm:$0xff] %v2363
        %2396 = vst [vmem:[#allocation4 + $0xd8] sm:$0xff] %v2364
        %2397 = vst [vmem:[#allocation4 + $0xe0] sm:$0xff] %v2365
        %2398 = vst [vmem:[#allocation4 + $0xe8] sm:$0xff] %v2366
        %2399 = vst [vmem:[#allocation4 + $0xf0] sm:$0xff] %v2367
        %2400 = vst [vmem:[#allocation4 + $0xf8] sm:$0xff] %v2368
        %2401 = vst.msk [vmem:[#allocation2] sm:$0xff] %vm1742, %v1070
        %2402 = vst.msk [vmem:[#allocation2 + $0x8] sm:$0xff] %vm1742, %v1071
        %2403 = vst.msk [vmem:[#allocation2 + $0x10] sm:$0xff] %vm1742, %v1072
        %2404 = vst.msk [vmem:[#allocation2 + $0x18] sm:$0xff] %vm1742, %v1073
        %2405 = vst.msk [vmem:[#allocation2 + $0x20] sm:$0xff] %vm1742, %v1074
        %2406 = vst.msk [vmem:[#allocation2 + $0x28] sm:$0xff] %vm1742, %v1075
        %2407 = vst.msk [vmem:[#allocation2 + $0x30] sm:$0xff] %vm1742, %v1076
        %2408 = vst.msk [vmem:[#allocation2 + $0x38] sm:$0xff] %vm1742, %v1077
        %2409 = vst.msk [vmem:[#allocation2 + $0x40] sm:$0xff] %vm1742, %v1078
        %2410 = vst.msk [vmem:[#allocation2 + $0x48] sm:$0xff] %vm1742, %v1079
        %2411 = vst.msk [vmem:[#allocation2 + $0x50] sm:$0xff] %vm1742, %v1080
        %2412 = vst.msk [vmem:[#allocation2 + $0x58] sm:$0xff] %vm1742, %v1081
        %2413 = vst.msk [vmem:[#allocation2 + $0x60] sm:$0xff] %vm1742, %v1082
        %2414 = vst.msk [vmem:[#allocation2 + $0x68] sm:$0xff] %vm1742, %v1083
        %2415 = vst.msk [vmem:[#allocation2 + $0x70] sm:$0xff] %vm1742, %v1084
        %2416 = vst.msk [vmem:[#allocation2 + $0x78] sm:$0xff] %vm1742, %v1085
        %2417 = vst.msk [vmem:[#allocation2 + $0x80] sm:$0xff] %vm1742, %v1086
        %2418 = vst.msk [vmem:[#allocation2 + $0x88] sm:$0xff] %vm1742, %v1087
        %2419 = vst.msk [vmem:[#allocation2 + $0x90] sm:$0xff] %vm1742, %v1088
        %2420 = vst.msk [vmem:[#allocation2 + $0x98] sm:$0xff] %vm1742, %v1089
        %2421 = vst.msk [vmem:[#allocation2 + $0xa0] sm:$0xff] %vm1742, %v1090
        %2422 = vst.msk [vmem:[#allocation2 + $0xa8] sm:$0xff] %vm1742, %v1091
        %2423 = vst.msk [vmem:[#allocation2 + $0xb0] sm:$0xff] %vm1742, %v1092
        %2424 = vst.msk [vmem:[#allocation2 + $0xb8] sm:$0xff] %vm1742, %v1093
        %2425 = vst.msk [vmem:[#allocation2 + $0xc0] sm:$0xff] %vm1742, %v1094
        %2426 = vst.msk [vmem:[#allocation2 + $0xc8] sm:$0xff] %vm1742, %v1095
        %2427 = vst.msk [vmem:[#allocation2 + $0xd0] sm:$0xff] %vm1742, %v1096
        %2428 = vst.msk [vmem:[#allocation2 + $0xd8] sm:$0xff] %vm1742, %v1097
        %2429 = vst.msk [vmem:[#allocation2 + $0xe0] sm:$0xff] %vm1742, %v1098
        %2430 = vst.msk [vmem:[#allocation2 + $0xe8] sm:$0xff] %vm1742, %v1099
        %2431 = vst.msk [vmem:[#allocation2 + $0xf0] sm:$0xff] %vm1742, %v1100
        %2432 = vst.msk [vmem:[#allocation2 + $0xf8] sm:$0xff] %vm1742, %v1101
        // Predicated region
        $region53: #{attn_block.5} parent=43 // pred_check
          %p2433 = pneg %p407
        $region54: #{attn_block.5} parent=43 // pred_check_branch
          %2435 = sbr.rel (%p2433) target = $region56
        $region55: #{attn_block.5} parent=43 // pred_region
          %v2436 = vld [vmem:[#allocation4] sm:$0xff]
          %v2437 = vld [vmem:[#allocation4 + $0x8] sm:$0xff]
          %v2438 = vld [vmem:[#allocation4 + $0x10] sm:$0xff]
          %v2439 = vld [vmem:[#allocation4 + $0x18] sm:$0xff]
          %v2440 = vld [vmem:[#allocation4 + $0x20] sm:$0xff]
          %v2441 = vld [vmem:[#allocation4 + $0x28] sm:$0xff]
          %v2442 = vld [vmem:[#allocation4 + $0x30] sm:$0xff]
          %v2443 = vld [vmem:[#allocation4 + $0x38] sm:$0xff]
          %v2444 = vld [vmem:[#allocation4 + $0x40] sm:$0xff]
          %v2445 = vld [vmem:[#allocation4 + $0x48] sm:$0xff]
          %v2446 = vld [vmem:[#allocation4 + $0x50] sm:$0xff]
          %v2447 = vld [vmem:[#allocation4 + $0x58] sm:$0xff]
          %v2448 = vld [vmem:[#allocation4 + $0x60] sm:$0xff]
          %v2449 = vld [vmem:[#allocation4 + $0x68] sm:$0xff]
          %v2450 = vld [vmem:[#allocation4 + $0x70] sm:$0xff]
          %v2451 = vld [vmem:[#allocation4 + $0x78] sm:$0xff]
          %v2452 = vld [vmem:[#allocation4 + $0x80] sm:$0xff]
          %v2453 = vld [vmem:[#allocation4 + $0x88] sm:$0xff]
          %v2454 = vld [vmem:[#allocation4 + $0x90] sm:$0xff]
          %v2455 = vld [vmem:[#allocation4 + $0x98] sm:$0xff]
          %v2456 = vld [vmem:[#allocation4 + $0xa0] sm:$0xff]
          %v2457 = vld [vmem:[#allocation4 + $0xa8] sm:$0xff]
          %v2458 = vld [vmem:[#allocation4 + $0xb0] sm:$0xff]
          %v2459 = vld [vmem:[#allocation4 + $0xb8] sm:$0xff]
          %v2460 = vld [vmem:[#allocation4 + $0xc0] sm:$0xff]
          %v2461 = vld [vmem:[#allocation4 + $0xc8] sm:$0xff]
          %v2462 = vld [vmem:[#allocation4 + $0xd0] sm:$0xff]
          %v2463 = vld [vmem:[#allocation4 + $0xd8] sm:$0xff]
          %v2464 = vld [vmem:[#allocation4 + $0xe0] sm:$0xff]
          %v2465 = vld [vmem:[#allocation4 + $0xe8] sm:$0xff]
          %v2466 = vld [vmem:[#allocation4 + $0xf0] sm:$0xff]
          %v2467 = vld [vmem:[#allocation4 + $0xf8] sm:$0xff]
          %v2468 = vld [vmem:[#allocation3] sm:$0xff]
          %v2469 = vld [vmem:[#allocation3 + $0x8] sm:$0xff]
          %v2470 = vld [vmem:[#allocation3 + $0x10] sm:$0xff]
          %v2471 = vld [vmem:[#allocation3 + $0x18] sm:$0xff]
          %v2472 = vld [vmem:[#allocation3 + $0x20] sm:$0xff]
          %v2473 = vld [vmem:[#allocation3 + $0x28] sm:$0xff]
          %v2474 = vld [vmem:[#allocation3 + $0x30] sm:$0xff]
          %v2475 = vld [vmem:[#allocation3 + $0x38] sm:$0xff]
          %v2476 = vld [vmem:[#allocation3 + $0x40] sm:$0xff]
          %v2477 = vld [vmem:[#allocation3 + $0x48] sm:$0xff]
          %v2478 = vld [vmem:[#allocation3 + $0x50] sm:$0xff]
          %v2479 = vld [vmem:[#allocation3 + $0x58] sm:$0xff]
          %v2480 = vld [vmem:[#allocation3 + $0x60] sm:$0xff]
          %v2481 = vld [vmem:[#allocation3 + $0x68] sm:$0xff]
          %v2482 = vld [vmem:[#allocation3 + $0x70] sm:$0xff]
          %v2483 = vld [vmem:[#allocation3 + $0x78] sm:$0xff]
          %v2484 = vld [vmem:[#allocation3 + $0x80] sm:$0xff]
          %v2485 = vld [vmem:[#allocation3 + $0x88] sm:$0xff]
          %v2486 = vld [vmem:[#allocation3 + $0x90] sm:$0xff]
          %v2487 = vld [vmem:[#allocation3 + $0x98] sm:$0xff]
          %v2488 = vld [vmem:[#allocation3 + $0xa0] sm:$0xff]
          %v2489 = vld [vmem:[#allocation3 + $0xa8] sm:$0xff]
          %v2490 = vld [vmem:[#allocation3 + $0xb0] sm:$0xff]
          %v2491 = vld [vmem:[#allocation3 + $0xb8] sm:$0xff]
          %v2492 = vld [vmem:[#allocation3 + $0xc0] sm:$0xff]
          %v2493 = vld [vmem:[#allocation3 + $0xc8] sm:$0xff]
          %v2494 = vld [vmem:[#allocation3 + $0xd0] sm:$0xff]
          %v2495 = vld [vmem:[#allocation3 + $0xd8] sm:$0xff]
          %v2496 = vld [vmem:[#allocation3 + $0xe0] sm:$0xff]
          %v2497 = vld [vmem:[#allocation3 + $0xe8] sm:$0xff]
          %v2498 = vld [vmem:[#allocation3 + $0xf0] sm:$0xff]
          %v2499 = vld [vmem:[#allocation3 + $0xf8] sm:$0xff]
          %v2500 = vrcp.pop %v2468
          %v2501 = vrcp.pop %v2469
          %v2502 = vrcp.pop %v2470
          %v2503 = vrcp.pop %v2471
          %v2504 = vrcp.pop %v2472
          %v2505 = vrcp.pop %v2473
          %v2506 = vrcp.pop %v2474
          %v2507 = vrcp.pop %v2475
          %v2508 = vrcp.pop %v2476
          %v2509 = vrcp.pop %v2477
          %v2510 = vrcp.pop %v2478
          %v2511 = vrcp.pop %v2479
          %v2512 = vrcp.pop %v2480
          %v2513 = vrcp.pop %v2481
          %v2514 = vrcp.pop %v2482
          %v2515 = vrcp.pop %v2483
          %v2516 = vrcp.pop %v2484
          %v2517 = vrcp.pop %v2485
          %v2518 = vrcp.pop %v2486
          %v2519 = vrcp.pop %v2487
          %v2520 = vrcp.pop %v2488
          %v2521 = vrcp.pop %v2489
          %v2522 = vrcp.pop %v2490
          %v2523 = vrcp.pop %v2491
          %v2524 = vrcp.pop %v2492
          %v2525 = vrcp.pop %v2493
          %v2526 = vrcp.pop %v2494
          %v2527 = vrcp.pop %v2495
          %v2528 = vrcp.pop %v2496
          %v2529 = vrcp.pop %v2497
          %v2530 = vrcp.pop %v2498
          %v2531 = vrcp.pop %v2499
          %2533 = vset.pattern.permute.xlu0 0
          %2534 = vperm.xlu0 %2533, %v2500
          %v2535 = vpop.permute.xlu0 %2534
          %2538 = vset.pattern.permute.xlu0 0
          %2539 = vperm.xlu0 %2538, %v2501
          %v2540 = vpop.permute.xlu0 %2539
          %2543 = vset.pattern.permute.xlu0 0
          %2544 = vperm.xlu0 %2543, %v2502
          %v2545 = vpop.permute.xlu0 %2544
          %2548 = vset.pattern.permute.xlu0 0
          %2549 = vperm.xlu0 %2548, %v2503
          %v2550 = vpop.permute.xlu0 %2549
          %2553 = vset.pattern.permute.xlu0 0
          %2554 = vperm.xlu0 %2553, %v2504
          %v2555 = vpop.permute.xlu0 %2554
          %2558 = vset.pattern.permute.xlu0 0
          %2559 = vperm.xlu0 %2558, %v2505
          %v2560 = vpop.permute.xlu0 %2559
          %2563 = vset.pattern.permute.xlu0 0
          %2564 = vperm.xlu0 %2563, %v2506
          %v2565 = vpop.permute.xlu0 %2564
          %2568 = vset.pattern.permute.xlu0 0
          %2569 = vperm.xlu0 %2568, %v2507
          %v2570 = vpop.permute.xlu0 %2569
          %2573 = vset.pattern.permute.xlu0 0
          %2574 = vperm.xlu0 %2573, %v2508
          %v2575 = vpop.permute.xlu0 %2574
          %2578 = vset.pattern.permute.xlu0 0
          %2579 = vperm.xlu0 %2578, %v2509
          %v2580 = vpop.permute.xlu0 %2579
          %2583 = vset.pattern.permute.xlu0 0
          %2584 = vperm.xlu0 %2583, %v2510
          %v2585 = vpop.permute.xlu0 %2584
          %2588 = vset.pattern.permute.xlu0 0
          %2589 = vperm.xlu0 %2588, %v2511
          %v2590 = vpop.permute.xlu0 %2589
          %2593 = vset.pattern.permute.xlu0 0
          %2594 = vperm.xlu0 %2593, %v2512
          %v2595 = vpop.permute.xlu0 %2594
          %2598 = vset.pattern.permute.xlu0 0
          %2599 = vperm.xlu0 %2598, %v2513
          %v2600 = vpop.permute.xlu0 %2599
          %2603 = vset.pattern.permute.xlu0 0
          %2604 = vperm.xlu0 %2603, %v2514
          %v2605 = vpop.permute.xlu0 %2604
          %2608 = vset.pattern.permute.xlu0 0
          %2609 = vperm.xlu0 %2608, %v2515
          %v2610 = vpop.permute.xlu0 %2609
          %2613 = vset.pattern.permute.xlu0 0
          %2614 = vperm.xlu0 %2613, %v2516
          %v2615 = vpop.permute.xlu0 %2614
          %2618 = vset.pattern.permute.xlu0 0
          %2619 = vperm.xlu0 %2618, %v2517
          %v2620 = vpop.permute.xlu0 %2619
          %2623 = vset.pattern.permute.xlu0 0
          %2624 = vperm.xlu0 %2623, %v2518
          %v2625 = vpop.permute.xlu0 %2624
          %2628 = vset.pattern.permute.xlu0 0
          %2629 = vperm.xlu0 %2628, %v2519
          %v2630 = vpop.permute.xlu0 %2629
          %2633 = vset.pattern.permute.xlu0 0
          %2634 = vperm.xlu0 %2633, %v2520
          %v2635 = vpop.permute.xlu0 %2634
          %2638 = vset.pattern.permute.xlu0 0
          %2639 = vperm.xlu0 %2638, %v2521
          %v2640 = vpop.permute.xlu0 %2639
          %2643 = vset.pattern.permute.xlu0 0
          %2644 = vperm.xlu0 %2643, %v2522
          %v2645 = vpop.permute.xlu0 %2644
          %2648 = vset.pattern.permute.xlu0 0
          %2649 = vperm.xlu0 %2648, %v2523
          %v2650 = vpop.permute.xlu0 %2649
          %2653 = vset.pattern.permute.xlu0 0
          %2654 = vperm.xlu0 %2653, %v2524
          %v2655 = vpop.permute.xlu0 %2654
          %2658 = vset.pattern.permute.xlu0 0
          %2659 = vperm.xlu0 %2658, %v2525
          %v2660 = vpop.permute.xlu0 %2659
          %2663 = vset.pattern.permute.xlu0 0
          %2664 = vperm.xlu0 %2663, %v2526
          %v2665 = vpop.permute.xlu0 %2664
          %2668 = vset.pattern.permute.xlu0 0
          %2669 = vperm.xlu0 %2668, %v2527
          %v2670 = vpop.permute.xlu0 %2669
          %2673 = vset.pattern.permute.xlu0 0
          %2674 = vperm.xlu0 %2673, %v2528
          %v2675 = vpop.permute.xlu0 %2674
          %2678 = vset.pattern.permute.xlu0 0
          %2679 = vperm.xlu0 %2678, %v2529
          %v2680 = vpop.permute.xlu0 %2679
          %2683 = vset.pattern.permute.xlu0 0
          %2684 = vperm.xlu0 %2683, %v2530
          %v2685 = vpop.permute.xlu0 %2684
          %2688 = vset.pattern.permute.xlu0 0
          %2689 = vperm.xlu0 %2688, %v2531
          %v2690 = vpop.permute.xlu0 %2689
          %v2692 = vmul.f32 %v2436, %v2535
          %v2693 = vmul.f32 %v2437, %v2540
          %v2694 = vmul.f32 %v2438, %v2545
          %v2695 = vmul.f32 %v2439, %v2550
          %v2696 = vmul.f32 %v2440, %v2555
          %v2697 = vmul.f32 %v2441, %v2560
          %v2698 = vmul.f32 %v2442, %v2565
          %v2699 = vmul.f32 %v2443, %v2570
          %v2700 = vmul.f32 %v2444, %v2575
          %v2701 = vmul.f32 %v2445, %v2580
          %v2702 = vmul.f32 %v2446, %v2585
          %v2703 = vmul.f32 %v2447, %v2590
          %v2704 = vmul.f32 %v2448, %v2595
          %v2705 = vmul.f32 %v2449, %v2600
          %v2706 = vmul.f32 %v2450, %v2605
          %v2707 = vmul.f32 %v2451, %v2610
          %v2708 = vmul.f32 %v2452, %v2615
          %v2709 = vmul.f32 %v2453, %v2620
          %v2710 = vmul.f32 %v2454, %v2625
          %v2711 = vmul.f32 %v2455, %v2630
          %v2712 = vmul.f32 %v2456, %v2635
          %v2713 = vmul.f32 %v2457, %v2640
          %v2714 = vmul.f32 %v2458, %v2645
          %v2715 = vmul.f32 %v2459, %v2650
          %v2716 = vmul.f32 %v2460, %v2655
          %v2717 = vmul.f32 %v2461, %v2660
          %v2718 = vmul.f32 %v2462, %v2665
          %v2719 = vmul.f32 %v2463, %v2670
          %v2720 = vmul.f32 %v2464, %v2675
          %v2721 = vmul.f32 %v2465, %v2680
          %v2722 = vmul.f32 %v2466, %v2685
          %v2723 = vmul.f32 %v2467, %v2690
          %v2724 = vpack.c.bf16 %v2693, %v2692
          %v2725 = vpack.c.bf16 %v2695, %v2694
          %v2726 = vpack.c.bf16 %v2697, %v2696
          %v2727 = vpack.c.bf16 %v2699, %v2698
          %v2728 = vpack.c.bf16 %v2701, %v2700
          %v2729 = vpack.c.bf16 %v2703, %v2702
          %v2730 = vpack.c.bf16 %v2705, %v2704
          %v2731 = vpack.c.bf16 %v2707, %v2706
          %v2732 = vpack.c.bf16 %v2709, %v2708
          %v2733 = vpack.c.bf16 %v2711, %v2710
          %v2734 = vpack.c.bf16 %v2713, %v2712
          %v2735 = vpack.c.bf16 %v2715, %v2714
          %v2736 = vpack.c.bf16 %v2717, %v2716
          %v2737 = vpack.c.bf16 %v2719, %v2718
          %v2738 = vpack.c.bf16 %v2721, %v2720
          %v2739 = vpack.c.bf16 %v2723, %v2722
          %v2740 = vld [vmem:[%s4] sm:$0xf]
          %v2741 = vld [vmem:[%s4 + $0x4] sm:$0xf]
          %v2742 = vld [vmem:[%s4 + $0x8] sm:$0xf]
          %v2743 = vld [vmem:[%s4 + $0xc] sm:$0xf]
          %v2744 = vld [vmem:[%s4 + $0x10] sm:$0xf]
          %v2745 = vld [vmem:[%s4 + $0x14] sm:$0xf]
          %v2746 = vld [vmem:[%s4 + $0x18] sm:$0xf]
          %v2747 = vld [vmem:[%s4 + $0x1c] sm:$0xf]
          %v2748 = vld [vmem:[%s4 + $0x20] sm:$0xf]
          %v2749 = vld [vmem:[%s4 + $0x24] sm:$0xf]
          %v2750 = vld [vmem:[%s4 + $0x28] sm:$0xf]
          %v2751 = vld [vmem:[%s4 + $0x2c] sm:$0xf]
          %v2752 = vld [vmem:[%s4 + $0x30] sm:$0xf]
          %v2753 = vld [vmem:[%s4 + $0x34] sm:$0xf]
          %v2754 = vld [vmem:[%s4 + $0x38] sm:$0xf]
          %v2755 = vld [vmem:[%s4 + $0x3c] sm:$0xf]
          %v2756 = vld [vmem:[%s5] sm:$0x1]
          %v2758 = vperm.slane %v2756, 0
          %v2776 = vunpack.c.l.b16 %v2740
          %v2777 = vunpack.c.l.b16 %v2741
          %v2778 = vunpack.c.l.b16 %v2742
          %v2779 = vunpack.c.l.b16 %v2743
          %v2780 = vunpack.c.l.b16 %v2744
          %v2781 = vunpack.c.l.b16 %v2745
          %v2782 = vunpack.c.l.b16 %v2746
          %v2783 = vunpack.c.l.b16 %v2747
          %v2784 = vunpack.c.l.b16 %v2748
          %v2785 = vunpack.c.l.b16 %v2749
          %v2786 = vunpack.c.l.b16 %v2750
          %v2787 = vunpack.c.l.b16 %v2751
          %v2788 = vunpack.c.l.b16 %v2752
          %v2789 = vunpack.c.l.b16 %v2753
          %v2790 = vunpack.c.l.b16 %v2754
          %v2791 = vunpack.c.l.b16 %v2755
          %v2792 = vpack.c.b16 %v2777, %v2776
          %v2793 = vpack.c.b16 %v2779, %v2778
          %v2794 = vpack.c.b16 %v2781, %v2780
          %v2795 = vpack.c.b16 %v2783, %v2782
          %v2796 = vpack.c.b16 %v2785, %v2784
          %v2797 = vpack.c.b16 %v2787, %v2786
          %v2798 = vpack.c.b16 %v2789, %v2788
          %v2799 = vpack.c.b16 %v2791, %v2790
          %2808 = vmatpush.bf16.msra.mxu0 %v2799
          %2809 = vmatpush.bf16.msra.mxu0 %v2798
          %2810 = vmatpush.bf16.msra.mxu0 %v2797
          %2811 = vmatpush.bf16.msra.mxu0 %v2796
          %2812 = vmatpush.bf16.msra.mxu0 %v2795
          %2813 = vmatpush.bf16.msra.mxu0 %v2794
          %2814 = vmatpush.bf16.msra.mxu0 %v2793
          %2815 = vmatpush.bf16.msra.mxu0 %v2792
          %2816 = vmatmul.bf16.gmra.mxu0 %v2724
          %v2817 = vpop.f32.mrf.mxu0
          %v2818 = vadd.f32 %v2758, %v2817
          %v2819 = vpop.f32.mrf.mxu0
          %v2820 = vadd.f32 %v2758, %v2819
          %2821 = vmatmul.bf16.gmra.mxu0 %v2725
          %v2822 = vpop.f32.mrf.mxu0
          %v2823 = vadd.f32 %v2758, %v2822
          %v2824 = vpop.f32.mrf.mxu0
          %v2825 = vadd.f32 %v2758, %v2824
          %2826 = vmatmul.bf16.gmra.mxu0 %v2726
          %v2827 = vpop.f32.mrf.mxu0
          %v2828 = vadd.f32 %v2758, %v2827
          %v2829 = vpop.f32.mrf.mxu0
          %v2830 = vadd.f32 %v2758, %v2829
          %2831 = vmatmul.bf16.gmra.mxu0 %v2727
          %v2832 = vpop.f32.mrf.mxu0
          %v2833 = vadd.f32 %v2758, %v2832
          %v2834 = vpop.f32.mrf.mxu0
          %v2835 = vadd.f32 %v2758, %v2834
          %2836 = vmatmul.bf16.gmra.mxu0 %v2728
          %v2837 = vpop.f32.mrf.mxu0
          %v2838 = vadd.f32 %v2758, %v2837
          %v2839 = vpop.f32.mrf.mxu0
          %v2840 = vadd.f32 %v2758, %v2839
          %2841 = vmatmul.bf16.gmra.mxu0 %v2729
          %v2842 = vpop.f32.mrf.mxu0
          %v2843 = vadd.f32 %v2758, %v2842
          %v2844 = vpop.f32.mrf.mxu0
          %v2845 = vadd.f32 %v2758, %v2844
          %2846 = vmatmul.bf16.gmra.mxu0 %v2730
          %v2847 = vpop.f32.mrf.mxu0
          %v2848 = vadd.f32 %v2758, %v2847
          %v2849 = vpop.f32.mrf.mxu0
          %v2850 = vadd.f32 %v2758, %v2849
          %2851 = vmatmul.bf16.gmra.mxu0 %v2731
          %v2852 = vpop.f32.mrf.mxu0
          %v2853 = vadd.f32 %v2758, %v2852
          %v2854 = vpop.f32.mrf.mxu0
          %v2855 = vadd.f32 %v2758, %v2854
          %2856 = vmatmul.bf16.gmra.mxu0 %v2732
          %v2857 = vpop.f32.mrf.mxu0
          %v2858 = vadd.f32 %v2758, %v2857
          %v2859 = vpop.f32.mrf.mxu0
          %v2860 = vadd.f32 %v2758, %v2859
          %2861 = vmatmul.bf16.gmra.mxu0 %v2733
          %v2862 = vpop.f32.mrf.mxu0
          %v2863 = vadd.f32 %v2758, %v2862
          %v2864 = vpop.f32.mrf.mxu0
          %v2865 = vadd.f32 %v2758, %v2864
          %2866 = vmatmul.bf16.gmra.mxu0 %v2734
          %v2867 = vpop.f32.mrf.mxu0
          %v2868 = vadd.f32 %v2758, %v2867
          %v2869 = vpop.f32.mrf.mxu0
          %v2870 = vadd.f32 %v2758, %v2869
          %2871 = vmatmul.bf16.gmra.mxu0 %v2735
          %v2872 = vpop.f32.mrf.mxu0
          %v2873 = vadd.f32 %v2758, %v2872
          %v2874 = vpop.f32.mrf.mxu0
          %v2875 = vadd.f32 %v2758, %v2874
          %2876 = vmatmul.bf16.gmra.mxu0 %v2736
          %v2877 = vpop.f32.mrf.mxu0
          %v2878 = vadd.f32 %v2758, %v2877
          %v2879 = vpop.f32.mrf.mxu0
          %v2880 = vadd.f32 %v2758, %v2879
          %2881 = vmatmul.bf16.gmra.mxu0 %v2737
          %v2882 = vpop.f32.mrf.mxu0
          %v2883 = vadd.f32 %v2758, %v2882
          %v2884 = vpop.f32.mrf.mxu0
          %v2885 = vadd.f32 %v2758, %v2884
          %2886 = vmatmul.bf16.gmra.mxu0 %v2738
          %v2887 = vpop.f32.mrf.mxu0
          %v2888 = vadd.f32 %v2758, %v2887
          %v2889 = vpop.f32.mrf.mxu0
          %v2890 = vadd.f32 %v2758, %v2889
          %2891 = vmatmul.bf16.gmra.mxu0 %v2739
          %v2892 = vpop.f32.mrf.mxu0
          %v2893 = vadd.f32 %v2758, %v2892
          %v2894 = vpop.f32.mrf.mxu0
          %v2895 = vadd.f32 %v2758, %v2894
          %2896 = vdwg.mxu0
          %v2897 = vld [vmem:[%s318] sm:$0xff]
          %v2898 = vld [vmem:[%s318 + $0x8] sm:$0xff]
          %v2899 = vld [vmem:[%s318 + $0x10] sm:$0xff]
          %v2900 = vld [vmem:[%s318 + $0x18] sm:$0xff]
          %v2901 = vld [vmem:[%s318 + $0x20] sm:$0xff]
          %v2902 = vld [vmem:[%s318 + $0x28] sm:$0xff]
          %v2903 = vld [vmem:[%s318 + $0x30] sm:$0xff]
          %v2904 = vld [vmem:[%s318 + $0x38] sm:$0xff]
          %v2905 = vld [vmem:[%s318 + $0x40] sm:$0xff]
          %v2906 = vld [vmem:[%s318 + $0x48] sm:$0xff]
          %v2907 = vld [vmem:[%s318 + $0x50] sm:$0xff]
          %v2908 = vld [vmem:[%s318 + $0x58] sm:$0xff]
          %v2909 = vld [vmem:[%s318 + $0x60] sm:$0xff]
          %v2910 = vld [vmem:[%s318 + $0x68] sm:$0xff]
          %v2911 = vld [vmem:[%s318 + $0x70] sm:$0xff]
          %v2912 = vld [vmem:[%s318 + $0x78] sm:$0xff]
          %v2913 = vld [vmem:[%s318 + $0x80] sm:$0xff]
          %v2914 = vld [vmem:[%s318 + $0x88] sm:$0xff]
          %v2915 = vld [vmem:[%s318 + $0x90] sm:$0xff]
          %v2916 = vld [vmem:[%s318 + $0x98] sm:$0xff]
          %v2917 = vld [vmem:[%s318 + $0xa0] sm:$0xff]
          %v2918 = vld [vmem:[%s318 + $0xa8] sm:$0xff]
          %v2919 = vld [vmem:[%s318 + $0xb0] sm:$0xff]
          %v2920 = vld [vmem:[%s318 + $0xb8] sm:$0xff]
          %v2921 = vld [vmem:[%s318 + $0xc0] sm:$0xff]
          %v2922 = vld [vmem:[%s318 + $0xc8] sm:$0xff]
          %v2923 = vld [vmem:[%s318 + $0xd0] sm:$0xff]
          %v2924 = vld [vmem:[%s318 + $0xd8] sm:$0xff]
          %v2925 = vld [vmem:[%s318 + $0xe0] sm:$0xff]
          %v2926 = vld [vmem:[%s318 + $0xe8] sm:$0xff]
          %v2927 = vld [vmem:[%s318 + $0xf0] sm:$0xff]
          %v2928 = vld [vmem:[%s318 + $0xf8] sm:$0xff]
          %v2929 = vadd.f32 %v2897, %v2818
          %v2930 = vadd.f32 %v2898, %v2820
          %v2931 = vadd.f32 %v2899, %v2823
          %v2932 = vadd.f32 %v2900, %v2825
          %v2933 = vadd.f32 %v2901, %v2828
          %v2934 = vadd.f32 %v2902, %v2830
          %v2935 = vadd.f32 %v2903, %v2833
          %v2936 = vadd.f32 %v2904, %v2835
          %v2937 = vadd.f32 %v2905, %v2838
          %v2938 = vadd.f32 %v2906, %v2840
          %v2939 = vadd.f32 %v2907, %v2843
          %v2940 = vadd.f32 %v2908, %v2845
          %v2941 = vadd.f32 %v2909, %v2848
          %v2942 = vadd.f32 %v2910, %v2850
          %v2943 = vadd.f32 %v2911, %v2853
          %v2944 = vadd.f32 %v2912, %v2855
          %v2945 = vadd.f32 %v2913, %v2858
          %v2946 = vadd.f32 %v2914, %v2860
          %v2947 = vadd.f32 %v2915, %v2863
          %v2948 = vadd.f32 %v2916, %v2865
          %v2949 = vadd.f32 %v2917, %v2868
          %v2950 = vadd.f32 %v2918, %v2870
          %v2951 = vadd.f32 %v2919, %v2873
          %v2952 = vadd.f32 %v2920, %v2875
          %v2953 = vadd.f32 %v2921, %v2878
          %v2954 = vadd.f32 %v2922, %v2880
          %v2955 = vadd.f32 %v2923, %v2883
          %v2956 = vadd.f32 %v2924, %v2885
          %v2957 = vadd.f32 %v2925, %v2888
          %v2958 = vadd.f32 %v2926, %v2890
          %v2959 = vadd.f32 %v2927, %v2893
          %v2960 = vadd.f32 %v2928, %v2895
          %2961 = vst [vmem:[%s374] sm:$0xff] %v2929
          %2962 = vst [vmem:[%s374 + $0x8] sm:$0xff] %v2930
          %2963 = vst [vmem:[%s374 + $0x10] sm:$0xff] %v2931
          %2964 = vst [vmem:[%s374 + $0x18] sm:$0xff] %v2932
          %2965 = vst [vmem:[%s374 + $0x20] sm:$0xff] %v2933
          %2966 = vst [vmem:[%s374 + $0x28] sm:$0xff] %v2934
          %2967 = vst [vmem:[%s374 + $0x30] sm:$0xff] %v2935
          %2968 = vst [vmem:[%s374 + $0x38] sm:$0xff] %v2936
          %2969 = vst [vmem:[%s374 + $0x40] sm:$0xff] %v2937
          %2970 = vst [vmem:[%s374 + $0x48] sm:$0xff] %v2938
          %2971 = vst [vmem:[%s374 + $0x50] sm:$0xff] %v2939
          %2972 = vst [vmem:[%s374 + $0x58] sm:$0xff] %v2940
          %2973 = vst [vmem:[%s374 + $0x60] sm:$0xff] %v2941
          %2974 = vst [vmem:[%s374 + $0x68] sm:$0xff] %v2942
          %2975 = vst [vmem:[%s374 + $0x70] sm:$0xff] %v2943
          %2976 = vst [vmem:[%s374 + $0x78] sm:$0xff] %v2944
          %2977 = vst [vmem:[%s374 + $0x80] sm:$0xff] %v2945
          %2978 = vst [vmem:[%s374 + $0x88] sm:$0xff] %v2946
          %2979 = vst [vmem:[%s374 + $0x90] sm:$0xff] %v2947
          %2980 = vst [vmem:[%s374 + $0x98] sm:$0xff] %v2948
          %2981 = vst [vmem:[%s374 + $0xa0] sm:$0xff] %v2949
          %2982 = vst [vmem:[%s374 + $0xa8] sm:$0xff] %v2950
          %2983 = vst [vmem:[%s374 + $0xb0] sm:$0xff] %v2951
          %2984 = vst [vmem:[%s374 + $0xb8] sm:$0xff] %v2952
          %2985 = vst [vmem:[%s374 + $0xc0] sm:$0xff] %v2953
          %2986 = vst [vmem:[%s374 + $0xc8] sm:$0xff] %v2954
          %2987 = vst [vmem:[%s374 + $0xd0] sm:$0xff] %v2955
          %2988 = vst [vmem:[%s374 + $0xd8] sm:$0xff] %v2956
          %2989 = vst [vmem:[%s374 + $0xe0] sm:$0xff] %v2957
          %2990 = vst [vmem:[%s374 + $0xe8] sm:$0xff] %v2958
          %2991 = vst [vmem:[%s374 + $0xf0] sm:$0xff] %v2959
          %2992 = vst [vmem:[%s374 + $0xf8] sm:$0xff] %v2960
        $region56: #{attn_block.5} parent=43 // pred_fallthru
          _
        %s2993 = sand.u32 %s206, 1
        %s2994 = scalar_lea.sflag [#allocation7], %s2993
        %s2995 = sand.u32 %s206, 1
        %s2996 = smul.addr %s2995, 256
        %s2997 = scalar_lea.vmem [#allocation8], %s2996
        // Predicated region
        $region57: #{attn_block.5} parent=43 // pred_check
          %p2998 = pneg %p216
        $region58: #{attn_block.5} parent=43 // pred_check_branch
          %3000 = sbr.rel (%p2998) target = $region60
        $region59: #{attn_block.5} parent=43 // pred_region
          %s3001 = smul.u32 32, %s29
          %3003 = vsyncadd %s2994, 0
          %s3004 = smul.addr %s28, 32
          %s3005 = sadd.s32 %s3001, %s3004
          %s3006 = smul.addr %s3005, 8
          %s3007 = scalar_lea.hbm %s6, %s3006
          %s3008 = sshll.u32 %s2997, 4
          %s3009 = int_to_ptr.vmem [resolvable:$true] %s3008
          %s3010 = sshll.u32 %s3007, 4
          %s3011 = int_to_ptr.hbm [resolvable:$true] %s3010
          %3016 = dma.vmem_to_hbm [thread:$0]  %s3009, 4096, %s3011, %s2994, 128, 128, 8
        $region60: #{attn_block.5} parent=43 // pred_fallthru
          _
      $region44: #{attn_block.5} parent=5 // pred_fallthru
        _
      %p3017 = scmp.le.s32.totalorder 2, %s18
      // Predicated region
      $region61: #{attn_block.5} parent=5 // pred_check
        %p3018 = pneg %p3017
      $region62: #{attn_block.5} parent=5 // pred_check_branch
        %3020 = sbr.rel (%p3018) target = $region64
      $region63: #{attn_block.5} parent=5 // pred_region
        %s3021 = ssub.s32 %s18, 2
        // Predicated region
        $region65: #{attn_block.5} parent=63 // pred_check
          %p3022 = pneg %p222
        $region66: #{attn_block.5} parent=63 // pred_check_branch
          %3024 = sbr.rel (%p3022) target = $region68
        $region67: #{attn_block.5} parent=63 // pred_region
          %s3025 = sand.u32 %s207, 1
          %s3026 = scalar_lea.sflag [#allocation7], %s3025
          %s3027 = sand.u32 %s207, 1
          %s3028 = smul.addr %s3027, 256
          %s3029 = scalar_lea.vmem [#allocation8], %s3028
          %3031 = dma.done %s3026, 4096
        $region68: #{attn_block.5} parent=63 // pred_fallthru
          _
      $region64: #{attn_block.5} parent=5 // pred_fallthru
        _
    $region6: #{attn_block.5} parent=1 // loop_footer
      %s22 = sadd.s32 1, %s18
    $region7: #{attn_block.5} parent=1 // loop_footer_branch
      %17 = sbr.rel target = $region3
    $region8: #{attn_block.5} parent=1 // loop_exit
      _
    %3032 = vsyncpa [#allocation6], 1
    %s3033 = scalar_lea.sflag [#allocation6], 1
    %3034 = vsyncpa %s3033, 1
    %3035 = vsyncpa [#allocation7], 1
    %s3036 = scalar_lea.sflag [#allocation7], 1
    %3037 = vsyncpa %s3036, 1

</llo_original>
